<compile_context>
chip_gen: v6e
topology: v6e:2x2x1
jax: 0.10.0
libtpu: 0.0.40
codegen_flags: <defaults>
</compile_context>

<pallas_src>
import functools

import jax
import jax.numpy as jnp
from jax.experimental import pallas as pl
from jax.experimental.pallas import tpu as pltpu


# ----------------------------------------------------------------------------
# Kernel: 6 fused Linear(+ReLU) layers, one batch tile per grid step.
# ----------------------------------------------------------------------------
def _autoencoder_kernel(
    x_ref,
    # encoder params (bf16 weights, f32 biases)
    w1_ref, b1_ref, w2_ref, b2_ref, w3_ref, b3_ref,
    # decoder params
    w4_ref, b4_ref, w5_ref, b5_ref, w6_ref, b6_ref,
    # outputs
    latent_ref, recon_ref,
):
    def linear(h_bf16, w_ref, b_ref):
        # bf16 x bf16 matmul on the MXU, f32 accumulation, f32 bias add (VPU).
        return (
            jnp.dot(h_bf16, w_ref[...], preferred_element_type=jnp.float32)
            + b_ref[...]
        )

    def relu_bf16(z_f32):
        # ReLU in f32, keep the intermediate activation in bf16 (matmul inputs
        # are bf16 anyway; halves intermediate vreg/VMEM footprint).
        return jnp.maximum(z_f32, 0.0).astype(jnp.bfloat16)

    x = x_ref[...]                                    # (tile_b, input_dim) bf16

    # -------- encoder: (Linear -> ReLU -> Dropout[id]) x2, then Linear --------
    h = relu_bf16(linear(x, w1_ref, b1_ref))
    h = relu_bf16(linear(h, w2_ref, b2_ref))
    latent = linear(h, w3_ref, b3_ref)                # (tile_b, latent_pad) f32
    latent_ref[...] = latent.astype(latent_ref.dtype)

    # -------- decoder: (Linear -> ReLU -> Dropout[id]) x2, then Linear --------
    h = relu_bf16(linear(latent.astype(jnp.bfloat16), w4_ref, b4_ref))
    h = relu_bf16(linear(h, w5_ref, b5_ref))
    recon_ref[...] = linear(h, w6_ref, b6_ref).astype(recon_ref.dtype)


# ----------------------------------------------------------------------------
# Wrapper
# ----------------------------------------------------------------------------
def _resident_spec(arr):
    """Full-array block with a constant block index -> DMA'd once and VMEM-
    resident for the whole call.  Single-buffered (Buffered(1)): no second DMA
    buffer for a block whose index never changes.  ndim is bound via a default
    arg to avoid the late-binding closure pitfall."""
    return pl.BlockSpec(
        arr.shape,
        lambda i, _nd=arr.ndim: (0,) * _nd,
        pipeline_mode=pl.Buffered(1),
    )


def _select_tile_b(batch, max_tile=512):
    """Batch tile: multiple of 16 (bf16 sublane packing), capped at max_tile,
    and small enough that the batch grid has >= 2 steps (v7x megacore) whenever
    the batch allows it."""
    if batch <= 16:
        return 16
    tile = min(max_tile, -(-batch // 2))      # ceil(batch / 2), capped at 512
    return ((tile + 15) // 16) * 16


@functools.partial(jax.jit, static_argnames=("latent_dim", "tile_b", "out_dtype"))
def contrastive_autoencoder_forward(x, params, *, latent_dim, tile_b=None,
                                    out_dtype=jnp.float32):
    """Fused forward pass. x: [B, input_dim]. Returns (latent, reconstructed)."""
    batch, input_dim = x.shape
    latent_pad = params["w3"].shape[1]        # latent_dim rounded up to 128

    if tile_b is None:
        tile_b = _select_tile_b(batch)

    # Stream x in bf16: the matmul path is bf16 anyway (no numeric change) and
    # it halves the x HBM read.  Ideally callers pass bf16 directly.
    if x.dtype != jnp.bfloat16:
        x = x.astype(jnp.bfloat16)

    # Pad the batch only when needed (avoid an extra HBM pass in the common case).
    batch_p = pl.cdiv(batch, tile_b) * tile_b
    if batch_p != batch:
        x = jnp.pad(x, ((0, batch_p - batch), (0, 0)))

    weights = (
        params["w1"], params["b1"],
        params["w2"], params["b2"],
        params["w3"], params["b3"],
        params["w4"], params["b4"],
        params["w5"], params["b5"],
        params["w6"], params["b6"],
    )

    grid = (batch_p // tile_b,)

    in_specs = [pl.BlockSpec((tile_b, input_dim), lambda i: (i, 0))]
    in_specs += [_resident_spec(w) for w in weights]

    out_specs = (
        pl.BlockSpec((tile_b, latent_pad), lambda i: (i, 0)),
        pl.BlockSpec((tile_b, input_dim), lambda i: (i, 0)),
    )

    latent_p, recon_p = pl.pallas_call(
        _autoencoder_kernel,
        grid=grid,
        out_shape=(
            jax.ShapeDtypeStruct((batch_p, latent_pad), out_dtype),
            jax.ShapeDtypeStruct((batch_p, input_dim), out_dtype),
        ),
        in_specs=in_specs,
        out_specs=out_specs,
        compiler_params=pltpu.CompilerParams(
            dimension_semantics=("parallel",),
            # ~2.2 MB single-buffered weights + a few MB of double-buffered
            # activation tiles even at tile_b=512; 32 MiB leaves headroom on
            # every generation (v7x has 64 MiB/TC physical).
            vmem_limit_bytes=32 << 20,
        ),
    )(x, *weights)

    # Strip latent lane padding (always) and batch padding (only if added).
    if batch_p != batch:
        return latent_p[:batch, :latent_dim], recon_p[:batch]
    return latent_p[:, :latent_dim], recon_p


# ----------------------------------------------------------------------------
# Deterministic parameter init (Xavier uniform weights, zero biases), stored
# transposed vs. PyTorch as (in, out).  Kernel params: bf16 weights, f32 biases
# (1, out), with the latent axis of layers 3/4 zero-padded to latent_pad.
# Also returns the unpadded float32 params for a true-f32 reference check.
# ----------------------------------------------------------------------------
def init_params(key, input_dim, latent_dim, hidden_dims, latent_pad):
    assert len(hidden_dims) == 2, "fused kernel is specialized to 2 hidden layers"
    layer_dims = [
        (input_dim, hidden_dims[0]),
        (hidden_dims[0], hidden_dims[1]),
        (hidden_dims[1], latent_dim),      # encoder output
        (latent_dim, hidden_dims[1]),      # decoder input
        (hidden_dims[1], hidden_dims[0]),
        (hidden_dims[0], input_dim),
    ]
    keys = jax.random.split(key, len(layer_dims))
    params, params_f32 = {}, {}
    for i, ((fi, fo), k) in enumerate(zip(layer_dims, keys), start=1):
        bound = (6.0 / (fi + fo)) ** 0.5
        w = jax.random.uniform(k, (fi, fo), jnp.float32, minval=-bound, maxval=bound)
        b = jnp.zeros((1, fo), jnp.float32)
        params_f32[f"w{i}"] = w
        params_f32[f"b{i}"] = b
        wp, bp = w, b
        if i == 3:  # pad latent output columns to 128 (lane-dense latent block)
            wp = jnp.pad(wp, ((0, 0), (0, latent_pad - fo)))
            bp = jnp.pad(bp, ((0, 0), (0, latent_pad - fo)))
        if i == 4:  # pad latent input rows (zero rows contribute nothing)
            wp = jnp.pad(wp, ((0, latent_pad - fi), (0, 0)))
        params[f"w{i}"] = wp.astype(jnp.bfloat16)
        params[f"b{i}"] = bp
    return params, params_f32


# ----------------------------------------------------------------------------
# References.
# ----------------------------------------------------------------------------
def reference_forward_bf16path(x, p, latent_dim):
    """Pure-JAX reference following the same bf16-matmul / f32-accumulate path."""
    def lin(h_bf16, w, b):
        return jnp.dot(h_bf16, w, preferred_element_type=jnp.float32) + b

    xb = x.astype(jnp.bfloat16)
    h = jnp.maximum(lin(xb, p["w1"], p["b1"]), 0.0).astype(jnp.bfloat16)
    h = jnp.maximum(lin(h, p["w2"], p["b2"]), 0.0).astype(jnp.bfloat16)
    latent = lin(h, p["w3"], p["b3"])
    h = jnp.maximum(lin(latent.astype(jnp.bfloat16), p["w4"], p["b4"]), 0.0)
    h = h.astype(jnp.bfloat16)
    h = jnp.maximum(lin(h, p["w5"], p["b5"]), 0.0).astype(jnp.bfloat16)
    recon = lin(h, p["w6"], p["b6"])
    return latent[:, :latent_dim], recon


def reference_forward_f32(x, p):
    """True float32 forward (matches the PyTorch module semantics)."""
    def lin(h, w, b):
        return jnp.dot(h, w) + b

    h = jax.nn.relu(lin(x, p["w1"], p["b1"]))
    h = jax.nn.relu(lin(h, p["w2"], p["b2"]))
    latent = lin(h, p["w3"], p["b3"])
    h = jax.nn.relu(lin(latent, p["w4"], p["b4"]))
    h = jax.nn.relu(lin(h, p["w5"], p["b5"]))
    recon = lin(h, p["w6"], p["b6"])
    return latent, recon


if __name__ == "__main__":
    # Module-default dims, small batch.
    input_dim, latent_dim, hidden_dims = 768, 75, [512, 256]
    latent_pad = ((latent_dim + 127) // 128) * 128   # 75 -> 128
    batch = 64                                       # auto tile -> 32, grid of 2

    key = jax.random.PRNGKey(0)
    k_param, k_x = jax.random.split(key)
    params, params_f32 = init_params(k_param, input_dim, latent_dim, hidden_dims,
                                     latent_pad)
    x = jax.random.normal(k_x, (batch, input_dim), jnp.float32)

    latent, recon = contrastive_autoencoder_forward(x, params, latent_dim=latent_dim)
    jax.block_until_ready((latent, recon))

    assert latent.shape == (batch, latent_dim), latent.shape
    assert recon.shape == (batch, input_dim), recon.shape
    assert latent.dtype == jnp.float32 and recon.dtype == jnp.float32

    # Tight check against a reference that follows the identical bf16 path.
    lat_bf, rec_bf = reference_forward_bf16path(x, params, latent_dim)
    assert jnp.allclose(latent, lat_bf, atol=1e-2, rtol=1e-2)
    assert jnp.allclose(recon, rec_bf, atol=1e-2, rtol=1e-2)

    # Loose drift check against the true float32 module forward (bounds the
    # bf16 weight/matmul error vs. the PyTorch f32 reference).
    lat_f32, rec_f32 = reference_forward_f32(x, params_f32)
    assert jnp.allclose(latent, lat_f32, atol=0.25, rtol=0.05)
    assert jnp.allclose(recon, rec_f32, atol=0.25, rtol=0.05)

    print("KERNEL_OK")
</pallas_src>

<mosaic_0001>
module attributes {stable_mosaic.version = 11 : i64} {
  func.func @_autoencoder_kernel(%arg0: i32, %arg1: memref<32x768xbf16, #tpu.memory_space<vmem>>, %arg2: memref<768x512xbf16, #tpu.memory_space<vmem>>, %arg3: memref<1x512xf32, #tpu.memory_space<vmem>>, %arg4: memref<512x256xbf16, #tpu.memory_space<vmem>>, %arg5: memref<1x256xf32, #tpu.memory_space<vmem>>, %arg6: memref<256x128xbf16, #tpu.memory_space<vmem>>, %arg7: memref<1x128xf32, #tpu.memory_space<vmem>>, %arg8: memref<128x256xbf16, #tpu.memory_space<vmem>>, %arg9: memref<1x256xf32, #tpu.memory_space<vmem>>, %arg10: memref<256x512xbf16, #tpu.memory_space<vmem>>, %arg11: memref<1x512xf32, #tpu.memory_space<vmem>>, %arg12: memref<512x768xbf16, #tpu.memory_space<vmem>>, %arg13: memref<1x768xf32, #tpu.memory_space<vmem>>, %arg14: memref<32x128xf32, #tpu.memory_space<vmem>>, %arg15: memref<32x768xf32, #tpu.memory_space<vmem>>) attributes {dimension_semantics = [#tpu.dimension_semantics<parallel>], iteration_bounds = array<i64: 2>, scalar_prefetch = 0 : i64, scratch_operands = 0 : i64, tpu.core_type = #tpu.core_type<tc>, window_params = [{transform_indices = @transform_0, window_bounds = array<i64: 32, 768>}, {pipeline_mode = #tpu.pipeline_mode<synchronous>, transform_indices = @transform_1, window_bounds = array<i64: 768, 512>}, {pipeline_mode = #tpu.pipeline_mode<synchronous>, transform_indices = @transform_2, window_bounds = array<i64: 1, 512>}, {pipeline_mode = #tpu.pipeline_mode<synchronous>, transform_indices = @transform_3, window_bounds = array<i64: 512, 256>}, {pipeline_mode = #tpu.pipeline_mode<synchronous>, transform_indices = @transform_4, window_bounds = array<i64: 1, 256>}, {pipeline_mode = #tpu.pipeline_mode<synchronous>, transform_indices = @transform_5, window_bounds = array<i64: 256, 128>}, {pipeline_mode = #tpu.pipeline_mode<synchronous>, transform_indices = @transform_6, window_bounds = array<i64: 1, 128>}, {pipeline_mode = #tpu.pipeline_mode<synchronous>, transform_indices = @transform_7, window_bounds = array<i64: 128, 256>}, {pipeline_mode = #tpu.pipeline_mode<synchronous>, transform_indices = @transform_8, window_bounds = array<i64: 1, 256>}, {pipeline_mode = #tpu.pipeline_mode<synchronous>, transform_indices = @transform_9, window_bounds = array<i64: 256, 512>}, {pipeline_mode = #tpu.pipeline_mode<synchronous>, transform_indices = @transform_10, window_bounds = array<i64: 1, 512>}, {pipeline_mode = #tpu.pipeline_mode<synchronous>, transform_indices = @transform_11, window_bounds = array<i64: 512, 768>}, {pipeline_mode = #tpu.pipeline_mode<synchronous>, transform_indices = @transform_12, window_bounds = array<i64: 1, 768>}, {transform_indices = @transform_13, window_bounds = array<i64: 32, 128>}, {transform_indices = @transform_14, window_bounds = array<i64: 32, 768>}]} {
    %c0 = arith.constant 0 : index
    %c0_0 = arith.constant 0 : index
    %0 = vector.load %arg1[%c0, %c0_0] : memref<32x768xbf16, #tpu.memory_space<vmem>>, vector<32x768xbf16>
    %c0_1 = arith.constant 0 : index
    %c0_2 = arith.constant 0 : index
    %1 = vector.load %arg2[%c0_1, %c0_2] : memref<768x512xbf16, #tpu.memory_space<vmem>>, vector<768x512xbf16>
    %cst = arith.constant dense<0.000000e+00> : vector<32x512xf32>
    %2 = tpu.matmul %0, %1, %cst {dimension_numbers = #tpu.dot_dimension_numbers<[1], [0], [0], [1], [0, 0, 1, 1], [], []>} : vector<32x768xbf16>, vector<768x512xbf16>, vector<32x512xf32> -> vector<32x512xf32>
    %c0_3 = arith.constant 0 : index
    %c0_4 = arith.constant 0 : index
    %3 = vector.load %arg3[%c0_3, %c0_4] : memref<1x512xf32, #tpu.memory_space<vmem>>, vector<1x512xf32>
    %4 = vector.broadcast %3 : vector<1x512xf32> to vector<32x512xf32>
    %5 = arith.addf %2, %4 : vector<32x512xf32>
    %cst_5 = arith.constant 0.000000e+00 : f32
    %6 = vector.broadcast %cst_5 : f32 to vector<32x512xf32>
    %7 = arith.maximumf %5, %6 : vector<32x512xf32>
    %8 = arith.truncf %7 : vector<32x512xf32> to vector<32x512xbf16>
    %c0_6 = arith.constant 0 : index
    %c0_7 = arith.constant 0 : index
    %9 = vector.load %arg4[%c0_6, %c0_7] : memref<512x256xbf16, #tpu.memory_space<vmem>>, vector<512x256xbf16>
    %cst_8 = arith.constant dense<0.000000e+00> : vector<32x256xf32>
    %10 = tpu.matmul %8, %9, %cst_8 {dimension_numbers = #tpu.dot_dimension_numbers<[1], [0], [0], [1], [0, 0, 1, 1], [], []>} : vector<32x512xbf16>, vector<512x256xbf16>, vector<32x256xf32> -> vector<32x256xf32>
    %c0_9 = arith.constant 0 : index
    %c0_10 = arith.constant 0 : index
    %11 = vector.load %arg5[%c0_9, %c0_10] : memref<1x256xf32, #tpu.memory_space<vmem>>, vector<1x256xf32>
    %12 = vector.broadcast %11 : vector<1x256xf32> to vector<32x256xf32>
    %13 = arith.addf %10, %12 : vector<32x256xf32>
    %cst_11 = arith.constant 0.000000e+00 : f32
    %14 = vector.broadcast %cst_11 : f32 to vector<32x256xf32>
    %15 = arith.maximumf %13, %14 : vector<32x256xf32>
    %16 = arith.truncf %15 : vector<32x256xf32> to vector<32x256xbf16>
    %c0_12 = arith.constant 0 : index
    %c0_13 = arith.constant 0 : index
    %17 = vector.load %arg6[%c0_12, %c0_13] : memref<256x128xbf16, #tpu.memory_space<vmem>>, vector<256x128xbf16>
    %cst_14 = arith.constant dense<0.000000e+00> : vector<32x128xf32>
    %18 = tpu.matmul %16, %17, %cst_14 {dimension_numbers = #tpu.dot_dimension_numbers<[1], [0], [0], [1], [0, 0, 1, 1], [], []>} : vector<32x256xbf16>, vector<256x128xbf16>, vector<32x128xf32> -> vector<32x128xf32>
    %c0_15 = arith.constant 0 : index
    %c0_16 = arith.constant 0 : index
    %19 = vector.load %arg7[%c0_15, %c0_16] : memref<1x128xf32, #tpu.memory_space<vmem>>, vector<1x128xf32>
    %20 = vector.broadcast %19 : vector<1x128xf32> to vector<32x128xf32>
    %21 = arith.addf %18, %20 : vector<32x128xf32>
    %c0_17 = arith.constant 0 : index
    %c0_18 = arith.constant 0 : index
    %22 = vector.load %arg14[%c0_17, %c0_18] : memref<32x128xf32, #tpu.memory_space<vmem>>, vector<32x128xf32>
    tpu.vector_store %arg14[%c0_17, %c0_18], %21 {strides = array<i32>} : memref<32x128xf32, #tpu.memory_space<vmem>>, vector<32x128xf32>,
    %23 = arith.truncf %21 : vector<32x128xf32> to vector<32x128xbf16>
    %c0_19 = arith.constant 0 : index
    %c0_20 = arith.constant 0 : index
    %24 = vector.load %arg8[%c0_19, %c0_20] : memref<128x256xbf16, #tpu.memory_space<vmem>>, vector<128x256xbf16>
    %cst_21 = arith.constant dense<0.000000e+00> : vector<32x256xf32>
    %25 = tpu.matmul %23, %24, %cst_21 {dimension_numbers = #tpu.dot_dimension_numbers<[1], [0], [0], [1], [0, 0, 1, 1], [], []>} : vector<32x128xbf16>, vector<128x256xbf16>, vector<32x256xf32> -> vector<32x256xf32>
    %c0_22 = arith.constant 0 : index
    %c0_23 = arith.constant 0 : index
    %26 = vector.load %arg9[%c0_22, %c0_23] : memref<1x256xf32, #tpu.memory_space<vmem>>, vector<1x256xf32>
    %27 = vector.broadcast %26 : vector<1x256xf32> to vector<32x256xf32>
    %28 = arith.addf %25, %27 : vector<32x256xf32>
    %cst_24 = arith.constant 0.000000e+00 : f32
    %29 = vector.broadcast %cst_24 : f32 to vector<32x256xf32>
    %30 = arith.maximumf %28, %29 : vector<32x256xf32>
    %31 = arith.truncf %30 : vector<32x256xf32> to vector<32x256xbf16>
    %c0_25 = arith.constant 0 : index
    %c0_26 = arith.constant 0 : index
    %32 = vector.load %arg10[%c0_25, %c0_26] : memref<256x512xbf16, #tpu.memory_space<vmem>>, vector<256x512xbf16>
    %cst_27 = arith.constant dense<0.000000e+00> : vector<32x512xf32>
    %33 = tpu.matmul %31, %32, %cst_27 {dimension_numbers = #tpu.dot_dimension_numbers<[1], [0], [0], [1], [0, 0, 1, 1], [], []>} : vector<32x256xbf16>, vector<256x512xbf16>, vector<32x512xf32> -> vector<32x512xf32>
    %c0_28 = arith.constant 0 : index
    %c0_29 = arith.constant 0 : index
    %34 = vector.load %arg11[%c0_28, %c0_29] : memref<1x512xf32, #tpu.memory_space<vmem>>, vector<1x512xf32>
    %35 = vector.broadcast %34 : vector<1x512xf32> to vector<32x512xf32>
    %36 = arith.addf %33, %35 : vector<32x512xf32>
    %cst_30 = arith.constant 0.000000e+00 : f32
    %37 = vector.broadcast %cst_30 : f32 to vector<32x512xf32>
    %38 = arith.maximumf %36, %37 : vector<32x512xf32>
    %39 = arith.truncf %38 : vector<32x512xf32> to vector<32x512xbf16>
    %c0_31 = arith.constant 0 : index
    %c0_32 = arith.constant 0 : index
    %40 = vector.load %arg12[%c0_31, %c0_32] : memref<512x768xbf16, #tpu.memory_space<vmem>>, vector<512x768xbf16>
    %cst_33 = arith.constant dense<0.000000e+00> : vector<32x768xf32>
    %41 = tpu.matmul %39, %40, %cst_33 {dimension_numbers = #tpu.dot_dimension_numbers<[1], [0], [0], [1], [0, 0, 1, 1], [], []>} : vector<32x512xbf16>, vector<512x768xbf16>, vector<32x768xf32> -> vector<32x768xf32>
    %c0_34 = arith.constant 0 : index
    %c0_35 = arith.constant 0 : index
    %42 = vector.load %arg13[%c0_34, %c0_35] : memref<1x768xf32, #tpu.memory_space<vmem>>, vector<1x768xf32>
    %43 = vector.broadcast %42 : vector<1x768xf32> to vector<32x768xf32>
    %44 = arith.addf %41, %43 : vector<32x768xf32>
    %c0_36 = arith.constant 0 : index
    %c0_37 = arith.constant 0 : index
    %45 = vector.load %arg15[%c0_36, %c0_37] : memref<32x768xf32, #tpu.memory_space<vmem>>, vector<32x768xf32>
    tpu.vector_store %arg15[%c0_36, %c0_37], %44 {strides = array<i32>} : memref<32x768xf32, #tpu.memory_space<vmem>>, vector<32x768xf32>,
    return
  }
  func.func @transform_0(%arg0: i32) -> (i32, i32) {
    %c0_i32 = arith.constant 0 : i32
    %c0_i32_0 = arith.constant 0 : i32
    return %arg0, %c0_i32 : i32, i32
  }
  func.func @transform_1(%arg0: i32) -> (i32, i32) {
    %c0_i32 = arith.constant 0 : i32
    %c0_i32_0 = arith.constant 0 : i32
    %c0_i32_1 = arith.constant 0 : i32
    return %c0_i32, %c0_i32_0 : i32, i32
  }
  func.func @transform_2(%arg0: i32) -> (i32, i32) {
    %c0_i32 = arith.constant 0 : i32
    %c0_i32_0 = arith.constant 0 : i32
    %c0_i32_1 = arith.constant 0 : i32
    return %c0_i32, %c0_i32_0 : i32, i32
  }
  func.func @transform_3(%arg0: i32) -> (i32, i32) {
    %c0_i32 = arith.constant 0 : i32
    %c0_i32_0 = arith.constant 0 : i32
    %c0_i32_1 = arith.constant 0 : i32
    return %c0_i32, %c0_i32_0 : i32, i32
  }
  func.func @transform_4(%arg0: i32) -> (i32, i32) {
    %c0_i32 = arith.constant 0 : i32
    %c0_i32_0 = arith.constant 0 : i32
    %c0_i32_1 = arith.constant 0 : i32
    return %c0_i32, %c0_i32_0 : i32, i32
  }
  func.func @transform_5(%arg0: i32) -> (i32, i32) {
    %c0_i32 = arith.constant 0 : i32
    %c0_i32_0 = arith.constant 0 : i32
    %c0_i32_1 = arith.constant 0 : i32
    return %c0_i32, %c0_i32_0 : i32, i32
  }
  func.func @transform_6(%arg0: i32) -> (i32, i32) {
    %c0_i32 = arith.constant 0 : i32
    %c0_i32_0 = arith.constant 0 : i32
    %c0_i32_1 = arith.constant 0 : i32
    return %c0_i32, %c0_i32_0 : i32, i32
  }
  func.func @transform_7(%arg0: i32) -> (i32, i32) {
    %c0_i32 = arith.constant 0 : i32
    %c0_i32_0 = arith.constant 0 : i32
    %c0_i32_1 = arith.constant 0 : i32
    return %c0_i32, %c0_i32_0 : i32, i32
  }
  func.func @transform_8(%arg0: i32) -> (i32, i32) {
    %c0_i32 = arith.constant 0 : i32
    %c0_i32_0 = arith.constant 0 : i32
    %c0_i32_1 = arith.constant 0 : i32
    return %c0_i32, %c0_i32_0 : i32, i32
  }
  func.func @transform_9(%arg0: i32) -> (i32, i32) {
    %c0_i32 = arith.constant 0 : i32
    %c0_i32_0 = arith.constant 0 : i32
    %c0_i32_1 = arith.constant 0 : i32
    return %c0_i32, %c0_i32_0 : i32, i32
  }
  func.func @transform_10(%arg0: i32) -> (i32, i32) {
    %c0_i32 = arith.constant 0 : i32
    %c0_i32_0 = arith.constant 0 : i32
    %c0_i32_1 = arith.constant 0 : i32
    return %c0_i32, %c0_i32_0 : i32, i32
  }
  func.func @transform_11(%arg0: i32) -> (i32, i32) {
    %c0_i32 = arith.constant 0 : i32
    %c0_i32_0 = arith.constant 0 : i32
    %c0_i32_1 = arith.constant 0 : i32
    return %c0_i32, %c0_i32_0 : i32, i32
  }
  func.func @transform_12(%arg0: i32) -> (i32, i32) {
    %c0_i32 = arith.constant 0 : i32
    %c0_i32_0 = arith.constant 0 : i32
    %c0_i32_1 = arith.constant 0 : i32
    return %c0_i32, %c0_i32_0 : i32, i32
  }
  func.func @transform_13(%arg0: i32) -> (i32, i32) {
    %c0_i32 = arith.constant 0 : i32
    %c0_i32_0 = arith.constant 0 : i32
    return %arg0, %c0_i32 : i32, i32
  }
  func.func @transform_14(%arg0: i32) -> (i32, i32) {
    %c0_i32 = arith.constant 0 : i32
    %c0_i32_0 = arith.constant 0 : i32
    return %arg0, %c0_i32 : i32, i32
  }
}

</mosaic_0001>

<llo_original>
// kernel: contrastive_autoencoder_forward.1
$region0: #{contrastive_autoencoder_forward.1}
  #allocation0 [shape = 'u32[]', space=smem, size = 0x4, offset = 0x4, fixed_abs, tag = 'smem constant byte address 0x4 - core index']
  #allocation1 [shape = 'u32[144,128]{1,0:T(1,128)}', space=vmem, size = 0x12000, scoped, tag = 'internal scratch']
  %s0 = inlined_call_operand.vmem [shape: bf16[64,768], index: 0, kind: input, shape index: {}]
  %s1 = inlined_call_operand.hbm [shape: bf16[768,512], index: 1, kind: input, shape index: {}]
  %s2 = inlined_call_operand.vmem [shape: f32[1,512], index: 2, kind: input, shape index: {}]
  %s3 = inlined_call_operand.vmem [shape: bf16[512,256], index: 3, kind: input, shape index: {}]
  %s4 = inlined_call_operand.vmem [shape: f32[1,256], index: 4, kind: input, shape index: {}]
  %s5 = inlined_call_operand.hbm [shape: bf16[256,128], index: 5, kind: input, shape index: {}]
  %s6 = inlined_call_operand.vmem [shape: f32[1,128], index: 6, kind: input, shape index: {}]
  %s7 = inlined_call_operand.hbm [shape: bf16[128,256], index: 7, kind: input, shape index: {}]
  %s8 = inlined_call_operand.vmem [shape: f32[1,256], index: 8, kind: input, shape index: {}]
  %s9 = inlined_call_operand.hbm [shape: bf16[256,512], index: 9, kind: input, shape index: {}]
  %s10 = inlined_call_operand.vmem [shape: f32[1,512], index: 10, kind: input, shape index: {}]
  %s11 = inlined_call_operand.hbm [shape: bf16[512,768], index: 11, kind: input, shape index: {}]
  %s12 = inlined_call_operand.vmem [shape: f32[1,768], index: 12, kind: input, shape index: {}]
  %s13 = inlined_call_operand.hbm [shape: f32[64,128], index: 13, kind: output, shape index: {0}]
  %s14 = inlined_call_operand.hbm [shape: f32[64,768], index: 14, kind: output, shape index: {1}]
  %15 = xla_tuple %s13, %s14
  %s16 = sld [smem:[#allocation0]]
  $region113: #{contrastive_autoencoder_forward.1} parent=0
    _
  %s18 = ssub.s32 1, %s16
  %s19 = scalar_select 0, %s18, %s16
  $region1: #{contrastive_autoencoder_forward.1} parent=0
    #allocation2 [shape = 'u8[786432]{0}', space=vmem, size = 0xc0000, scoped, tag = 'input window, operand 1, single buffered']
    #allocation3 [shape = 's32[2]{0}', space=sflag, size = 0x8, scoped, tag = 'scoped memory for contrastive_autoencoder_forward.1']
    #allocation4 [shape = 's32[2]{0}', space=sflag, size = 0x8, scoped, tag = 'scoped memory for contrastive_autoencoder_forward.1']
    #allocation5 [shape = 'u8[65536]{0}', space=vmem, size = 0x10000, scoped, tag = 'input window, operand 5, single buffered']
    #allocation6 [shape = 's32[1]{0}', space=sflag, size = 0x4, scoped, tag = 'scoped memory for contrastive_autoencoder_forward.1']
    #allocation7 [shape = 'u8[65536]{0}', space=vmem, size = 0x10000, scoped, tag = 'input window, operand 7, single buffered']
    #allocation8 [shape = 'u8[262144]{0}', space=vmem, size = 0x40000, scoped, tag = 'input window, operand 9, single buffered']
    #allocation9 [shape = 's32[1]{0}', space=sflag, size = 0x4, scoped, tag = 'scoped memory for contrastive_autoencoder_forward.1']
    #allocation10 [shape = 'u8[786432]{0}', space=vmem, size = 0xc0000, scoped, tag = 'input window, operand 11, single buffered']
    #allocation11 [shape = 'u8[32768]{0}', space=vmem, size = 0x8000, scoped, tag = 'output window, operand 0']
    #allocation12 [shape = 'u8[196608]{0}', space=vmem, size = 0x30000, scoped, tag = 'output window, operand 1']
    #allocation13 [shape = 's32[2]{0}', space=sflag, size = 0x8, scoped, tag = 'scoped memory for contrastive_autoencoder_forward.1']
    %20 = vsyncpa [#allocation3], 0
    %21 = vsyncpa [#allocation6], 0
    %22 = vsyncpa [#allocation9], 0
    %23 = vsyncpa [#allocation4], 0
    %s24 = scalar_lea.sflag [#allocation4], 1
    %25 = vsyncpa %s24, 0
    %26 = vsyncpa [#allocation13], 0
    %s27 = scalar_lea.sflag [#allocation13], 1
    %28 = vsyncpa %s27, 0
    loop: start=0, step=1, limit=4
    $region2: #{contrastive_autoencoder_forward.1} parent=1 // loop_pre_header
      _
    $region3: #{contrastive_autoencoder_forward.1} parent=1 // loop_header
      %s30 = sphi 0, %s34
      %p31 = scmp.ge.s32.totalorder %s30, 4
      %s40 = sphi 0, %s42
      %s43 = sphi 0, %s40
      %s44 = sphi 0, %s43
      %s60 = sphi 0, %s44
      %s64 = sphi 0, %s64
      %s66 = sphi 0, %s64
      %s67 = sphi 0, %s66
      %s81 = sphi 0, %s67
      %s85 = sphi 0, %s85
      %s87 = sphi 0, %s85
      %s88 = sphi 0, %s87
      %s102 = sphi 0, %s88
      %s106 = sphi 0, %s106
      %s108 = sphi 0, %s106
      %s109 = sphi 0, %s108
      %s123 = sphi 0, %s109
      %s127 = sphi 0, %s127
      %s129 = sphi 0, %s127
      %s130 = sphi 0, %s129
      %s144 = sphi 0, %s130
      %s148 = sphi 0, %s148
      %s150 = sphi 0, %s148
      %s151 = sphi 0, %s150
      %s165 = sphi 0, %s151
      %s169 = sphi 0, %s169
      %s171 = sphi 0, %s169
      %s172 = sphi 0, %s171
      %s186 = sphi 0, %s172
      %s190 = sphi 0, %s190
      %s192 = sphi 0, %s190
      %s193 = sphi 0, %s192
      %s207 = sphi 0, %s193
      %s211 = sphi 0, %s211
      %s213 = sphi 0, %s211
      %s214 = sphi 0, %s213
      %s228 = sphi 0, %s214
      %s232 = sphi 0, %s232
      %s234 = sphi 0, %s232
      %s235 = sphi 0, %s234
      %s249 = sphi 0, %s235
      %s253 = sphi 0, %s253
      %s255 = sphi 0, %s253
      %s256 = sphi 0, %s255
      %s270 = sphi 0, %s256
      %s274 = sphi 0, %s274
      %s276 = sphi 0, %s274
      %s277 = sphi 0, %s276
      %s291 = sphi 0, %s277
      %s295 = sphi 0, %s295
      %s297 = sphi 0, %s295
      %s298 = sphi 0, %s297
      %s312 = sphi 0, %s298
      %s318 = sphi 0, %s320
      %s321 = sphi 0, %s318
      %s322 = sphi 0, %s321
      %s338 = sphi 0, %s322
      %s344 = sphi 0, %s346
      %s347 = sphi 0, %s344
      %s348 = sphi 0, %s347
      %s364 = sphi 0, %s348
    $region4: #{contrastive_autoencoder_forward.1} parent=1 // loop_header_branch
      %33 = sbr.rel (%p31) target = $region8
    $region5: #{contrastive_autoencoder_forward.1} parent=1 // loop_body
      %s35 = ssub.s32 %s30, 1
      %s36 = ssub.s32 %s30, 2
      %s37 = sadd.s32 %s30, 1
      %s38 = ssub.s32 %s30, %s37
      %p39 = scmp.eq.s32.totalorder %s38, 0
      %s41 = sadd.s32 %s40, 1
      %s42 = scalar_select %p39, %s40, %s41
      %p45 = pneg %p39
      %p46 = scmp.eq.s32.totalorder %s30, 1
      %p47 = por %p45, %p46
      %p48 = scmp.ne.s32.totalorder %s40, %s43
      %p49 = scmp.eq.s32.totalorder %s30, 0
      %p50 = por %p48, %p49
      %p51 = scmp.ne.s32.totalorder %s40, %s43
      %p52 = scmp.eq.s32.totalorder %s35, 1
      %p53 = por %p51, %p52
      %p54 = scmp.ne.s32.totalorder %s43, %s44
      %p55 = scmp.eq.s32.totalorder %s35, 0
      %p56 = por %p54, %p55
      %p57 = scmp.ne.s32.totalorder %s43, %s44
      %p58 = scmp.eq.s32.totalorder %s36, 1
      %p59 = por %p57, %p58
      %p61 = scmp.ne.s32.totalorder %s44, %s60
      %p62 = scmp.eq.s32.totalorder %s36, 0
      %p63 = por %p61, %p62
      %s65 = sadd.s32 %s64, 1
      %p68 = scmp.eq.s32.totalorder %s30, 1
      %p69 = scmp.ne.s32.totalorder %s64, %s66
      %p70 = scmp.eq.s32.totalorder %s30, 0
      %p71 = por %p69, %p70
      %p72 = scmp.ne.s32.totalorder %s64, %s66
      %p73 = scmp.eq.s32.totalorder %s35, 1
      %p74 = por %p72, %p73
      %p75 = scmp.ne.s32.totalorder %s66, %s67
      %p76 = scmp.eq.s32.totalorder %s35, 0
      %p77 = por %p75, %p76
      %p78 = scmp.ne.s32.totalorder %s66, %s67
      %p79 = scmp.eq.s32.totalorder %s36, 1
      %p80 = por %p78, %p79
      %p82 = scmp.ne.s32.totalorder %s67, %s81
      %p83 = scmp.eq.s32.totalorder %s36, 0
      %p84 = por %p82, %p83
      %s86 = sadd.s32 %s85, 1
      %p89 = scmp.eq.s32.totalorder %s30, 1
      %p90 = scmp.ne.s32.totalorder %s85, %s87
      %p91 = scmp.eq.s32.totalorder %s30, 0
      %p92 = por %p90, %p91
      %p93 = scmp.ne.s32.totalorder %s85, %s87
      %p94 = scmp.eq.s32.totalorder %s35, 1
      %p95 = por %p93, %p94
      %p96 = scmp.ne.s32.totalorder %s87, %s88
      %p97 = scmp.eq.s32.totalorder %s35, 0
      %p98 = por %p96, %p97
      %p99 = scmp.ne.s32.totalorder %s87, %s88
      %p100 = scmp.eq.s32.totalorder %s36, 1
      %p101 = por %p99, %p100
      %p103 = scmp.ne.s32.totalorder %s88, %s102
      %p104 = scmp.eq.s32.totalorder %s36, 0
      %p105 = por %p103, %p104
      %s107 = sadd.s32 %s106, 1
      %p110 = scmp.eq.s32.totalorder %s30, 1
      %p111 = scmp.ne.s32.totalorder %s106, %s108
      %p112 = scmp.eq.s32.totalorder %s30, 0
      %p113 = por %p111, %p112
      %p114 = scmp.ne.s32.totalorder %s106, %s108
      %p115 = scmp.eq.s32.totalorder %s35, 1
      %p116 = por %p114, %p115
      %p117 = scmp.ne.s32.totalorder %s108, %s109
      %p118 = scmp.eq.s32.totalorder %s35, 0
      %p119 = por %p117, %p118
      %p120 = scmp.ne.s32.totalorder %s108, %s109
      %p121 = scmp.eq.s32.totalorder %s36, 1
      %p122 = por %p120, %p121
      %p124 = scmp.ne.s32.totalorder %s109, %s123
      %p125 = scmp.eq.s32.totalorder %s36, 0
      %p126 = por %p124, %p125
      %s128 = sadd.s32 %s127, 1
      %p131 = scmp.eq.s32.totalorder %s30, 1
      %p132 = scmp.ne.s32.totalorder %s127, %s129
      %p133 = scmp.eq.s32.totalorder %s30, 0
      %p134 = por %p132, %p133
      %p135 = scmp.ne.s32.totalorder %s127, %s129
      %p136 = scmp.eq.s32.totalorder %s35, 1
      %p137 = por %p135, %p136
      %p138 = scmp.ne.s32.totalorder %s129, %s130
      %p139 = scmp.eq.s32.totalorder %s35, 0
      %p140 = por %p138, %p139
      %p141 = scmp.ne.s32.totalorder %s129, %s130
      %p142 = scmp.eq.s32.totalorder %s36, 1
      %p143 = por %p141, %p142
      %p145 = scmp.ne.s32.totalorder %s130, %s144
      %p146 = scmp.eq.s32.totalorder %s36, 0
      %p147 = por %p145, %p146
      %s149 = sadd.s32 %s148, 1
      %p152 = scmp.eq.s32.totalorder %s30, 1
      %p153 = scmp.ne.s32.totalorder %s148, %s150
      %p154 = scmp.eq.s32.totalorder %s30, 0
      %p155 = por %p153, %p154
      %p156 = scmp.ne.s32.totalorder %s148, %s150
      %p157 = scmp.eq.s32.totalorder %s35, 1
      %p158 = por %p156, %p157
      %p159 = scmp.ne.s32.totalorder %s150, %s151
      %p160 = scmp.eq.s32.totalorder %s35, 0
      %p161 = por %p159, %p160
      %p162 = scmp.ne.s32.totalorder %s150, %s151
      %p163 = scmp.eq.s32.totalorder %s36, 1
      %p164 = por %p162, %p163
      %p166 = scmp.ne.s32.totalorder %s151, %s165
      %p167 = scmp.eq.s32.totalorder %s36, 0
      %p168 = por %p166, %p167
      %s170 = sadd.s32 %s169, 1
      %p173 = scmp.eq.s32.totalorder %s30, 1
      %p174 = scmp.ne.s32.totalorder %s169, %s171
      %p175 = scmp.eq.s32.totalorder %s30, 0
      %p176 = por %p174, %p175
      %p177 = scmp.ne.s32.totalorder %s169, %s171
      %p178 = scmp.eq.s32.totalorder %s35, 1
      %p179 = por %p177, %p178
      %p180 = scmp.ne.s32.totalorder %s171, %s172
      %p181 = scmp.eq.s32.totalorder %s35, 0
      %p182 = por %p180, %p181
      %p183 = scmp.ne.s32.totalorder %s171, %s172
      %p184 = scmp.eq.s32.totalorder %s36, 1
      %p185 = por %p183, %p184
      %p187 = scmp.ne.s32.totalorder %s172, %s186
      %p188 = scmp.eq.s32.totalorder %s36, 0
      %p189 = por %p187, %p188
      %s191 = sadd.s32 %s190, 1
      %p194 = scmp.eq.s32.totalorder %s30, 1
      %p195 = scmp.ne.s32.totalorder %s190, %s192
      %p196 = scmp.eq.s32.totalorder %s30, 0
      %p197 = por %p195, %p196
      %p198 = scmp.ne.s32.totalorder %s190, %s192
      %p199 = scmp.eq.s32.totalorder %s35, 1
      %p200 = por %p198, %p199
      %p201 = scmp.ne.s32.totalorder %s192, %s193
      %p202 = scmp.eq.s32.totalorder %s35, 0
      %p203 = por %p201, %p202
      %p204 = scmp.ne.s32.totalorder %s192, %s193
      %p205 = scmp.eq.s32.totalorder %s36, 1
      %p206 = por %p204, %p205
      %p208 = scmp.ne.s32.totalorder %s193, %s207
      %p209 = scmp.eq.s32.totalorder %s36, 0
      %p210 = por %p208, %p209
      %s212 = sadd.s32 %s211, 1
      %p215 = scmp.eq.s32.totalorder %s30, 1
      %p216 = scmp.ne.s32.totalorder %s211, %s213
      %p217 = scmp.eq.s32.totalorder %s30, 0
      %p218 = por %p216, %p217
      %p219 = scmp.ne.s32.totalorder %s211, %s213
      %p220 = scmp.eq.s32.totalorder %s35, 1
      %p221 = por %p219, %p220
      %p222 = scmp.ne.s32.totalorder %s213, %s214
      %p223 = scmp.eq.s32.totalorder %s35, 0
      %p224 = por %p222, %p223
      %p225 = scmp.ne.s32.totalorder %s213, %s214
      %p226 = scmp.eq.s32.totalorder %s36, 1
      %p227 = por %p225, %p226
      %p229 = scmp.ne.s32.totalorder %s214, %s228
      %p230 = scmp.eq.s32.totalorder %s36, 0
      %p231 = por %p229, %p230
      %s233 = sadd.s32 %s232, 1
      %p236 = scmp.eq.s32.totalorder %s30, 1
      %p237 = scmp.ne.s32.totalorder %s232, %s234
      %p238 = scmp.eq.s32.totalorder %s30, 0
      %p239 = por %p237, %p238
      %p240 = scmp.ne.s32.totalorder %s232, %s234
      %p241 = scmp.eq.s32.totalorder %s35, 1
      %p242 = por %p240, %p241
      %p243 = scmp.ne.s32.totalorder %s234, %s235
      %p244 = scmp.eq.s32.totalorder %s35, 0
      %p245 = por %p243, %p244
      %p246 = scmp.ne.s32.totalorder %s234, %s235
      %p247 = scmp.eq.s32.totalorder %s36, 1
      %p248 = por %p246, %p247
      %p250 = scmp.ne.s32.totalorder %s235, %s249
      %p251 = scmp.eq.s32.totalorder %s36, 0
      %p252 = por %p250, %p251
      %s254 = sadd.s32 %s253, 1
      %p257 = scmp.eq.s32.totalorder %s30, 1
      %p258 = scmp.ne.s32.totalorder %s253, %s255
      %p259 = scmp.eq.s32.totalorder %s30, 0
      %p260 = por %p258, %p259
      %p261 = scmp.ne.s32.totalorder %s253, %s255
      %p262 = scmp.eq.s32.totalorder %s35, 1
      %p263 = por %p261, %p262
      %p264 = scmp.ne.s32.totalorder %s255, %s256
      %p265 = scmp.eq.s32.totalorder %s35, 0
      %p266 = por %p264, %p265
      %p267 = scmp.ne.s32.totalorder %s255, %s256
      %p268 = scmp.eq.s32.totalorder %s36, 1
      %p269 = por %p267, %p268
      %p271 = scmp.ne.s32.totalorder %s256, %s270
      %p272 = scmp.eq.s32.totalorder %s36, 0
      %p273 = por %p271, %p272
      %s275 = sadd.s32 %s274, 1
      %p278 = scmp.eq.s32.totalorder %s30, 1
      %p279 = scmp.ne.s32.totalorder %s274, %s276
      %p280 = scmp.eq.s32.totalorder %s30, 0
      %p281 = por %p279, %p280
      %p282 = scmp.ne.s32.totalorder %s274, %s276
      %p283 = scmp.eq.s32.totalorder %s35, 1
      %p284 = por %p282, %p283
      %p285 = scmp.ne.s32.totalorder %s276, %s277
      %p286 = scmp.eq.s32.totalorder %s35, 0
      %p287 = por %p285, %p286
      %p288 = scmp.ne.s32.totalorder %s276, %s277
      %p289 = scmp.eq.s32.totalorder %s36, 1
      %p290 = por %p288, %p289
      %p292 = scmp.ne.s32.totalorder %s277, %s291
      %p293 = scmp.eq.s32.totalorder %s36, 0
      %p294 = por %p292, %p293
      %s296 = sadd.s32 %s295, 1
      %p299 = scmp.eq.s32.totalorder %s30, 1
      %p300 = scmp.ne.s32.totalorder %s295, %s297
      %p301 = scmp.eq.s32.totalorder %s30, 0
      %p302 = por %p300, %p301
      %p303 = scmp.ne.s32.totalorder %s295, %s297
      %p304 = scmp.eq.s32.totalorder %s35, 1
      %p305 = por %p303, %p304
      %p306 = scmp.ne.s32.totalorder %s297, %s298
      %p307 = scmp.eq.s32.totalorder %s35, 0
      %p308 = por %p306, %p307
      %p309 = scmp.ne.s32.totalorder %s297, %s298
      %p310 = scmp.eq.s32.totalorder %s36, 1
      %p311 = por %p309, %p310
      %p313 = scmp.ne.s32.totalorder %s298, %s312
      %p314 = scmp.eq.s32.totalorder %s36, 0
      %p315 = por %p313, %p314
      %s316 = ssub.s32 %s30, %s37
      %p317 = scmp.eq.s32.totalorder %s316, 0
      %s319 = sadd.s32 %s318, 1
      %s320 = scalar_select %p317, %s318, %s319
      %p323 = pneg %p317
      %p324 = scmp.eq.s32.totalorder %s30, 1
      %p325 = por %p323, %p324
      %p326 = scmp.ne.s32.totalorder %s318, %s321
      %p327 = scmp.eq.s32.totalorder %s30, 0
      %p328 = por %p326, %p327
      %p329 = scmp.ne.s32.totalorder %s318, %s321
      %p330 = scmp.eq.s32.totalorder %s35, 1
      %p331 = por %p329, %p330
      %p332 = scmp.ne.s32.totalorder %s321, %s322
      %p333 = scmp.eq.s32.totalorder %s35, 0
      %p334 = por %p332, %p333
      %p335 = scmp.ne.s32.totalorder %s321, %s322
      %p336 = scmp.eq.s32.totalorder %s36, 1
      %p337 = por %p335, %p336
      %p339 = scmp.ne.s32.totalorder %s322, %s338
      %p340 = scmp.eq.s32.totalorder %s36, 0
      %p341 = por %p339, %p340
      %s342 = ssub.s32 %s30, %s37
      %p343 = scmp.eq.s32.totalorder %s342, 0
      %s345 = sadd.s32 %s344, 1
      %s346 = scalar_select %p343, %s344, %s345
      %p349 = pneg %p343
      %p350 = scmp.eq.s32.totalorder %s30, 1
      %p351 = por %p349, %p350
      %p352 = scmp.ne.s32.totalorder %s344, %s347
      %p353 = scmp.eq.s32.totalorder %s30, 0
      %p354 = por %p352, %p353
      %p355 = scmp.ne.s32.totalorder %s344, %s347
      %p356 = scmp.eq.s32.totalorder %s35, 1
      %p357 = por %p355, %p356
      %p358 = scmp.ne.s32.totalorder %s347, %s348
      %p359 = scmp.eq.s32.totalorder %s35, 0
      %p360 = por %p358, %p359
      %p361 = scmp.ne.s32.totalorder %s347, %s348
      %p362 = scmp.eq.s32.totalorder %s36, 1
      %p363 = por %p361, %p362
      %p365 = scmp.ne.s32.totalorder %s348, %s364
      %p366 = scmp.eq.s32.totalorder %s36, 0
      %p367 = por %p365, %p366
      %p368 = scmp.le.s32.totalorder 1, %s30
      %p369 = scmp.lt.s32.totalorder %s30, 3
      %p370 = pnand %p368, %p369
      %p371 = pneg %p370
      // Predicated region
      $region9: #{contrastive_autoencoder_forward.1} parent=5 // pred_check
        _
      $region10: #{contrastive_autoencoder_forward.1} parent=5 // pred_check_branch
        %373 = sbr.rel (%p370) target = $region12
      $region11: #{contrastive_autoencoder_forward.1} parent=5 // pred_region
        %s374 = ssub.s32 %s30, 1
        // Predicated region
        $region13: #{contrastive_autoencoder_forward.1} parent=11 // pred_check
          %p375 = pneg %p77
        $region14: #{contrastive_autoencoder_forward.1} parent=11 // pred_check_branch
          %377 = sbr.rel (%p375) target = $region16
        $region15: #{contrastive_autoencoder_forward.1} parent=11 // pred_region
          %s379 = ssub.s32 24576, 24576
          %380 = vsyncadd [#allocation3], %s379
          %s381 = sshll.u32 [#allocation2], 4
          %s382 = int_to_ptr.vmem [resolvable:$true] %s381
          %387 = dma.hbm_to_vmem [thread:$0]  %s1, 24576, %s382, [#allocation3], 256, 256, 16
        $region16: #{contrastive_autoencoder_forward.1} parent=11 // pred_fallthru
          _
        // Predicated region
        $region17: #{contrastive_autoencoder_forward.1} parent=11 // pred_check
          %p388 = pneg %p98
        $region18: #{contrastive_autoencoder_forward.1} parent=11 // pred_check_branch
          %390 = sbr.rel (%p388) target = $region20
        $region19: #{contrastive_autoencoder_forward.1} parent=11 // pred_region
          _
        $region20: #{contrastive_autoencoder_forward.1} parent=11 // pred_fallthru
          _
        // Predicated region
        $region21: #{contrastive_autoencoder_forward.1} parent=11 // pred_check
          %p391 = pneg %p119
        $region22: #{contrastive_autoencoder_forward.1} parent=11 // pred_check_branch
          %393 = sbr.rel (%p391) target = $region24
        $region23: #{contrastive_autoencoder_forward.1} parent=11 // pred_region
          _
        $region24: #{contrastive_autoencoder_forward.1} parent=11 // pred_fallthru
          _
        // Predicated region
        $region25: #{contrastive_autoencoder_forward.1} parent=11 // pred_check
          %p394 = pneg %p140
        $region26: #{contrastive_autoencoder_forward.1} parent=11 // pred_check_branch
          %396 = sbr.rel (%p394) target = $region28
        $region27: #{contrastive_autoencoder_forward.1} parent=11 // pred_region
          _
        $region28: #{contrastive_autoencoder_forward.1} parent=11 // pred_fallthru
          _
        // Predicated region
        $region29: #{contrastive_autoencoder_forward.1} parent=11 // pred_check
          %p397 = pneg %p161
        $region30: #{contrastive_autoencoder_forward.1} parent=11 // pred_check_branch
          %399 = sbr.rel (%p397) target = $region32
        $region31: #{contrastive_autoencoder_forward.1} parent=11 // pred_region
          %s401 = ssub.s32 2048, 2048
          %402 = vsyncadd [#allocation6], %s401
          %s403 = sshll.u32 [#allocation5], 4
          %s404 = int_to_ptr.vmem [resolvable:$true] %s403
          %409 = dma.hbm_to_vmem [thread:$0]  %s5, 2048, %s404, [#allocation6], 64, 64, 4
        $region32: #{contrastive_autoencoder_forward.1} parent=11 // pred_fallthru
          _
        // Predicated region
        $region33: #{contrastive_autoencoder_forward.1} parent=11 // pred_check
          %p410 = pneg %p182
        $region34: #{contrastive_autoencoder_forward.1} parent=11 // pred_check_branch
          %412 = sbr.rel (%p410) target = $region36
        $region35: #{contrastive_autoencoder_forward.1} parent=11 // pred_region
          _
        $region36: #{contrastive_autoencoder_forward.1} parent=11 // pred_fallthru
          _
        // Predicated region
        $region37: #{contrastive_autoencoder_forward.1} parent=11 // pred_check
          %p413 = pneg %p203
        $region38: #{contrastive_autoencoder_forward.1} parent=11 // pred_check_branch
          %415 = sbr.rel (%p413) target = $region40
        $region39: #{contrastive_autoencoder_forward.1} parent=11 // pred_region
          %s417 = ssub.s32 2048, 2048
          %418 = vsyncadd [#allocation6], %s417
          %s419 = sshll.u32 [#allocation7], 4
          %s420 = int_to_ptr.vmem [resolvable:$true] %s419
          %425 = dma.hbm_to_vmem [thread:$0]  %s7, 2048, %s420, [#allocation6], 128, 128, 8
        $region40: #{contrastive_autoencoder_forward.1} parent=11 // pred_fallthru
          _
        // Predicated region
        $region41: #{contrastive_autoencoder_forward.1} parent=11 // pred_check
          %p426 = pneg %p224
        $region42: #{contrastive_autoencoder_forward.1} parent=11 // pred_check_branch
          %428 = sbr.rel (%p426) target = $region44
        $region43: #{contrastive_autoencoder_forward.1} parent=11 // pred_region
          _
        $region44: #{contrastive_autoencoder_forward.1} parent=11 // pred_fallthru
          _
        // Predicated region
        $region45: #{contrastive_autoencoder_forward.1} parent=11 // pred_check
          %p429 = pneg %p245
        $region46: #{contrastive_autoencoder_forward.1} parent=11 // pred_check_branch
          %431 = sbr.rel (%p429) target = $region48
        $region47: #{contrastive_autoencoder_forward.1} parent=11 // pred_region
          %s433 = ssub.s32 8192, 8192
          %434 = vsyncadd [#allocation9], %s433
          %s435 = sshll.u32 [#allocation8], 4
          %s436 = int_to_ptr.vmem [resolvable:$true] %s435
          %441 = dma.hbm_to_vmem [thread:$0]  %s9, 8192, %s436, [#allocation9], 256, 256, 16
        $region48: #{contrastive_autoencoder_forward.1} parent=11 // pred_fallthru
          _
        // Predicated region
        $region49: #{contrastive_autoencoder_forward.1} parent=11 // pred_check
          %p442 = pneg %p266
        $region50: #{contrastive_autoencoder_forward.1} parent=11 // pred_check_branch
          %444 = sbr.rel (%p442) target = $region52
        $region51: #{contrastive_autoencoder_forward.1} parent=11 // pred_region
          _
        $region52: #{contrastive_autoencoder_forward.1} parent=11 // pred_fallthru
          _
        // Predicated region
        $region53: #{contrastive_autoencoder_forward.1} parent=11 // pred_check
          %p445 = pneg %p287
        $region54: #{contrastive_autoencoder_forward.1} parent=11 // pred_check_branch
          %447 = sbr.rel (%p445) target = $region56
        $region55: #{contrastive_autoencoder_forward.1} parent=11 // pred_region
          %s449 = ssub.s32 24576, 24576
          %450 = vsyncadd [#allocation9], %s449
          %s451 = sshll.u32 [#allocation10], 4
          %s452 = int_to_ptr.vmem [resolvable:$true] %s451
          %457 = dma.hbm_to_vmem [thread:$0]  %s11, 24576, %s452, [#allocation9], 384, 384, 24
        $region56: #{contrastive_autoencoder_forward.1} parent=11 // pred_fallthru
          _
        // Predicated region
        $region57: #{contrastive_autoencoder_forward.1} parent=11 // pred_check
          %p458 = pneg %p308
        $region58: #{contrastive_autoencoder_forward.1} parent=11 // pred_check_branch
          %460 = sbr.rel (%p458) target = $region60
        $region59: #{contrastive_autoencoder_forward.1} parent=11 // pred_region
          _
        $region60: #{contrastive_autoencoder_forward.1} parent=11 // pred_fallthru
          _
      $region12: #{contrastive_autoencoder_forward.1} parent=5 // pred_fallthru
        _
      %p461 = scmp.lt.s32.totalorder %s30, 2
      // Predicated region
      $region61: #{contrastive_autoencoder_forward.1} parent=5 // pred_check
        %p462 = pneg %p461
      $region62: #{contrastive_autoencoder_forward.1} parent=5 // pred_check_branch
        %464 = sbr.rel (%p462) target = $region64
      $region63: #{contrastive_autoencoder_forward.1} parent=5 // pred_region
        // Predicated region
        $region65: #{contrastive_autoencoder_forward.1} parent=63 // pred_check
          %p465 = pneg %p50
        $region66: #{contrastive_autoencoder_forward.1} parent=63 // pred_check_branch
          %467 = sbr.rel (%p465) target = $region68
        $region67: #{contrastive_autoencoder_forward.1} parent=63 // pred_region
          %s468 = smul.u32 4, %s30
          %p469 = scmp.lt.s32.totalorder %s468, 7
          %s470 = scalar_select %p469, %s468, 7
          %s471 = smul.addr %s470, 6
          %s472 = smul.addr %s471, 4
          %s473 = scalar_lea.vmem %s0, %s472
          %s474 = smul.u32 4, %s30
        $region68: #{contrastive_autoencoder_forward.1} parent=63 // pred_fallthru
          _
      $region64: #{contrastive_autoencoder_forward.1} parent=5 // pred_fallthru
        _
      %p475 = scmp.le.s32.totalorder 1, %s30
      %p476 = scmp.lt.s32.totalorder %s30, 3
      %p477 = pnand %p475, %p476
      %p478 = pneg %p477
      // Predicated region
      $region69: #{contrastive_autoencoder_forward.1} parent=5 // pred_check
        _
      $region70: #{contrastive_autoencoder_forward.1} parent=5 // pred_check_branch
        %480 = sbr.rel (%p477) target = $region72
      $region71: #{contrastive_autoencoder_forward.1} parent=5 // pred_region
        %s481 = ssub.s32 %s30, 1
        // Predicated region
        $region73: #{contrastive_autoencoder_forward.1} parent=71 // pred_check
          %p482 = pneg %p77
        $region74: #{contrastive_autoencoder_forward.1} parent=71 // pred_check_branch
          %484 = sbr.rel (%p482) target = $region76
        $region75: #{contrastive_autoencoder_forward.1} parent=71 // pred_region
          %485 = dma.done [#allocation3], 24576
        $region76: #{contrastive_autoencoder_forward.1} parent=71 // pred_fallthru
          _
        // Predicated region
        $region77: #{contrastive_autoencoder_forward.1} parent=71 // pred_check
          %p486 = pneg %p161
        $region78: #{contrastive_autoencoder_forward.1} parent=71 // pred_check_branch
          %488 = sbr.rel (%p486) target = $region80
        $region79: #{contrastive_autoencoder_forward.1} parent=71 // pred_region
          %489 = dma.done [#allocation6], 2048
        $region80: #{contrastive_autoencoder_forward.1} parent=71 // pred_fallthru
          _
        // Predicated region
        $region81: #{contrastive_autoencoder_forward.1} parent=71 // pred_check
          %p490 = pneg %p203
        $region82: #{contrastive_autoencoder_forward.1} parent=71 // pred_check_branch
          %492 = sbr.rel (%p490) target = $region84
        $region83: #{contrastive_autoencoder_forward.1} parent=71 // pred_region
          %493 = dma.done [#allocation6], 2048
        $region84: #{contrastive_autoencoder_forward.1} parent=71 // pred_fallthru
          _
        // Predicated region
        $region85: #{contrastive_autoencoder_forward.1} parent=71 // pred_check
          %p494 = pneg %p245
        $region86: #{contrastive_autoencoder_forward.1} parent=71 // pred_check_branch
          %496 = sbr.rel (%p494) target = $region88
        $region87: #{contrastive_autoencoder_forward.1} parent=71 // pred_region
          %497 = dma.done [#allocation9], 8192
        $region88: #{contrastive_autoencoder_forward.1} parent=71 // pred_fallthru
          _
        // Predicated region
        $region89: #{contrastive_autoencoder_forward.1} parent=71 // pred_check
          %p498 = pneg %p287
        $region90: #{contrastive_autoencoder_forward.1} parent=71 // pred_check_branch
          %500 = sbr.rel (%p498) target = $region92
        $region91: #{contrastive_autoencoder_forward.1} parent=71 // pred_region
          %501 = dma.done [#allocation9], 24576
        $region92: #{contrastive_autoencoder_forward.1} parent=71 // pred_fallthru
          _
        %s502 = smul.u32 4, %s35
        %p503 = scmp.lt.s32.totalorder %s502, 7
        %s504 = scalar_select %p503, %s502, 7
        %s505 = smul.addr %s504, 6
        %s506 = smul.addr %s505, 4
        %s507 = scalar_lea.vmem %s0, %s506
        %p508 = pneg %p56
        %p509 = pneg %p53
        %p510 = pneg %p77
        %p511 = pneg %p74
        %p512 = pneg %p98
        %p513 = pneg %p95
        %p514 = pneg %p119
        %p515 = pneg %p116
        %p516 = pneg %p140
        %p517 = pneg %p137
        %p518 = pneg %p161
        %p519 = pneg %p158
        %p520 = pneg %p182
        %p521 = pneg %p179
        %p522 = pneg %p203
        %p523 = pneg %p200
        %p524 = pneg %p224
        %p525 = pneg %p221
        %p526 = pneg %p245
        %p527 = pneg %p242
        %p528 = pneg %p266
        %p529 = pneg %p263
        %p530 = pneg %p287
        %p531 = pneg %p284
        %p532 = pneg %p308
        %p533 = pneg %p305
        %p534 = pneg %p334
        %p535 = pneg %p331
        %s536 = sand.u32 %s321, 1
        %s537 = scalar_lea.sflag [#allocation4], %s536
        %s538 = sand.u32 %s321, 1
        %s539 = smul.addr %s538, 32
        %s540 = scalar_lea.vmem [#allocation11], %s539
        %p541 = pneg %p360
        %p542 = pneg %p357
        %s543 = sand.u32 %s347, 1
        %s544 = scalar_lea.sflag [#allocation13], %s543
        %s545 = sand.u32 %s347, 1
        %s546 = smul.addr %s545, 192
        %s547 = scalar_lea.vmem [#allocation12], %s546
        %s548 = smul.u32 4, %s35
        %p549 = scmp.lt.s32.totalorder %s548, 7
        %s550 = scalar_select %p549, %s548, 7
        %s551 = smul.addr %s550, 6
        %s552 = smul.addr %s551, 4
        %s553 = scalar_lea.vmem %s0, %s552
        %s554 = smul.u32 4, %s35
        %s555 = smul.u32 4, %s35
        %s556 = smul.u32 4, %s35
        %v558 = vld [vmem:[%s553] sm:$0xff]
        %v559 = vld [vmem:[%s553 + $0x8] sm:$0xff]
        %v560 = vld [vmem:[%s553 + $0x10] sm:$0xff]
        %v561 = vld [vmem:[%s553 + $0x18] sm:$0xff]
        %v562 = vld [vmem:[%s553 + $0x20] sm:$0xff]
        %v563 = vld [vmem:[%s553 + $0x28] sm:$0xff]
        %v564 = vld [vmem:[%s553 + $0x30] sm:$0xff]
        %v565 = vld [vmem:[%s553 + $0x38] sm:$0xff]
        %v566 = vld [vmem:[%s553 + $0x40] sm:$0xff]
        %v567 = vld [vmem:[%s553 + $0x48] sm:$0xff]
        %v568 = vld [vmem:[%s553 + $0x50] sm:$0xff]
        %v569 = vld [vmem:[%s553 + $0x58] sm:$0xff]
        %v570 = vld [vmem:[#allocation2] sm:$0xff]
        %v571 = vld [vmem:[#allocation2 + $0x8] sm:$0xff]
        %v572 = vld [vmem:[#allocation2 + $0x10] sm:$0xff]
        %v573 = vld [vmem:[#allocation2 + $0x18] sm:$0xff]
        %v574 = vld [vmem:[#allocation2 + $0x20] sm:$0xff]
        %v575 = vld [vmem:[#allocation2 + $0x28] sm:$0xff]
        %v576 = vld [vmem:[#allocation2 + $0x30] sm:$0xff]
        %v577 = vld [vmem:[#allocation2 + $0x38] sm:$0xff]
        %v578 = vld [vmem:[#allocation2 + $0x40] sm:$0xff]
        %v579 = vld [vmem:[#allocation2 + $0x48] sm:$0xff]
        %v580 = vld [vmem:[#allocation2 + $0x50] sm:$0xff]
        %v581 = vld [vmem:[#allocation2 + $0x58] sm:$0xff]
        %v582 = vld [vmem:[#allocation2 + $0x60] sm:$0xff]
        %v583 = vld [vmem:[#allocation2 + $0x68] sm:$0xff]
        %v584 = vld [vmem:[#allocation2 + $0x70] sm:$0xff]
        %v585 = vld [vmem:[#allocation2 + $0x78] sm:$0xff]
        %v586 = vld [vmem:[#allocation2 + $0x80] sm:$0xff]
        %v587 = vld [vmem:[#allocation2 + $0x88] sm:$0xff]
        %v588 = vld [vmem:[#allocation2 + $0x90] sm:$0xff]
        %v589 = vld [vmem:[#allocation2 + $0x98] sm:$0xff]
        %v590 = vld [vmem:[#allocation2 + $0xa0] sm:$0xff]
        %v591 = vld [vmem:[#allocation2 + $0xa8] sm:$0xff]
        %v592 = vld [vmem:[#allocation2 + $0xb0] sm:$0xff]
        %v593 = vld [vmem:[#allocation2 + $0xb8] sm:$0xff]
        %v594 = vld [vmem:[#allocation2 + $0xc0] sm:$0xff]
        %v595 = vld [vmem:[#allocation2 + $0xc8] sm:$0xff]
        %v596 = vld [vmem:[#allocation2 + $0xd0] sm:$0xff]
        %v597 = vld [vmem:[#allocation2 + $0xd8] sm:$0xff]
        %v598 = vld [vmem:[#allocation2 + $0xe0] sm:$0xff]
        %v599 = vld [vmem:[#allocation2 + $0xe8] sm:$0xff]
        %v600 = vld [vmem:[#allocation2 + $0xf0] sm:$0xff]
        %v601 = vld [vmem:[#allocation2 + $0xf8] sm:$0xff]
        %v602 = vld [vmem:[#allocation2 + $0x100] sm:$0xff]
        %v603 = vld [vmem:[#allocation2 + $0x108] sm:$0xff]
        %v604 = vld [vmem:[#allocation2 + $0x110] sm:$0xff]
        %v605 = vld [vmem:[#allocation2 + $0x118] sm:$0xff]
        %v606 = vld [vmem:[#allocation2 + $0x120] sm:$0xff]
        %v607 = vld [vmem:[#allocation2 + $0x128] sm:$0xff]
        %v608 = vld [vmem:[#allocation2 + $0x130] sm:$0xff]
        %v609 = vld [vmem:[#allocation2 + $0x138] sm:$0xff]
        %v610 = vld [vmem:[#allocation2 + $0x140] sm:$0xff]
        %v611 = vld [vmem:[#allocation2 + $0x148] sm:$0xff]
        %v612 = vld [vmem:[#allocation2 + $0x150] sm:$0xff]
        %v613 = vld [vmem:[#allocation2 + $0x158] sm:$0xff]
        %v614 = vld [vmem:[#allocation2 + $0x160] sm:$0xff]
        %v615 = vld [vmem:[#allocation2 + $0x168] sm:$0xff]
        %v616 = vld [vmem:[#allocation2 + $0x170] sm:$0xff]
        %v617 = vld [vmem:[#allocation2 + $0x178] sm:$0xff]
        %v618 = vld [vmem:[#allocation2 + $0x180] sm:$0xff]
        %v619 = vld [vmem:[#allocation2 + $0x188] sm:$0xff]
        %v620 = vld [vmem:[#allocation2 + $0x190] sm:$0xff]
        %v621 = vld [vmem:[#allocation2 + $0x198] sm:$0xff]
        %v622 = vld [vmem:[#allocation2 + $0x1a0] sm:$0xff]
        %v623 = vld [vmem:[#allocation2 + $0x1a8] sm:$0xff]
        %v624 = vld [vmem:[#allocation2 + $0x1b0] sm:$0xff]
        %v625 = vld [vmem:[#allocation2 + $0x1b8] sm:$0xff]
        %v626 = vld [vmem:[#allocation2 + $0x1c0] sm:$0xff]
        %v627 = vld [vmem:[#allocation2 + $0x1c8] sm:$0xff]
        %v628 = vld [vmem:[#allocation2 + $0x1d0] sm:$0xff]
        %v629 = vld [vmem:[#allocation2 + $0x1d8] sm:$0xff]
        %v630 = vld [vmem:[#allocation2 + $0x1e0] sm:$0xff]
        %v631 = vld [vmem:[#allocation2 + $0x1e8] sm:$0xff]
        %v632 = vld [vmem:[#allocation2 + $0x1f0] sm:$0xff]
        %v633 = vld [vmem:[#allocation2 + $0x1f8] sm:$0xff]
        %v634 = vld [vmem:[#allocation2 + $0x200] sm:$0xff]
        %v635 = vld [vmem:[#allocation2 + $0x208] sm:$0xff]
        %v636 = vld [vmem:[#allocation2 + $0x210] sm:$0xff]
        %v637 = vld [vmem:[#allocation2 + $0x218] sm:$0xff]
        %v638 = vld [vmem:[#allocation2 + $0x220] sm:$0xff]
        %v639 = vld [vmem:[#allocation2 + $0x228] sm:$0xff]
        %v640 = vld [vmem:[#allocation2 + $0x230] sm:$0xff]
        %v641 = vld [vmem:[#allocation2 + $0x238] sm:$0xff]
        %v642 = vld [vmem:[#allocation2 + $0x240] sm:$0xff]
        %v643 = vld [vmem:[#allocation2 + $0x248] sm:$0xff]
        %v644 = vld [vmem:[#allocation2 + $0x250] sm:$0xff]
        %v645 = vld [vmem:[#allocation2 + $0x258] sm:$0xff]
        %v646 = vld [vmem:[#allocation2 + $0x260] sm:$0xff]
        %v647 = vld [vmem:[#allocation2 + $0x268] sm:$0xff]
        %v648 = vld [vmem:[#allocation2 + $0x270] sm:$0xff]
        %v649 = vld [vmem:[#allocation2 + $0x278] sm:$0xff]
        %v650 = vld [vmem:[#allocation2 + $0x280] sm:$0xff]
        %v651 = vld [vmem:[#allocation2 + $0x288] sm:$0xff]
        %v652 = vld [vmem:[#allocation2 + $0x290] sm:$0xff]
        %v653 = vld [vmem:[#allocation2 + $0x298] sm:$0xff]
        %v654 = vld [vmem:[#allocation2 + $0x2a0] sm:$0xff]
        %v655 = vld [vmem:[#allocation2 + $0x2a8] sm:$0xff]
        %v656 = vld [vmem:[#allocation2 + $0x2b0] sm:$0xff]
        %v657 = vld [vmem:[#allocation2 + $0x2b8] sm:$0xff]
        %v658 = vld [vmem:[#allocation2 + $0x2c0] sm:$0xff]
        %v659 = vld [vmem:[#allocation2 + $0x2c8] sm:$0xff]
        %v660 = vld [vmem:[#allocation2 + $0x2d0] sm:$0xff]
        %v661 = vld [vmem:[#allocation2 + $0x2d8] sm:$0xff]
        %v662 = vld [vmem:[#allocation2 + $0x2e0] sm:$0xff]
        %v663 = vld [vmem:[#allocation2 + $0x2e8] sm:$0xff]
        %v664 = vld [vmem:[#allocation2 + $0x2f0] sm:$0xff]
        %v665 = vld [vmem:[#allocation2 + $0x2f8] sm:$0xff]
        %v666 = vld [vmem:[#allocation2 + $0x300] sm:$0xff]
        %v667 = vld [vmem:[#allocation2 + $0x308] sm:$0xff]
        %v668 = vld [vmem:[#allocation2 + $0x310] sm:$0xff]
        %v669 = vld [vmem:[#allocation2 + $0x318] sm:$0xff]
        %v670 = vld [vmem:[#allocation2 + $0x320] sm:$0xff]
        %v671 = vld [vmem:[#allocation2 + $0x328] sm:$0xff]
        %v672 = vld [vmem:[#allocation2 + $0x330] sm:$0xff]
        %v673 = vld [vmem:[#allocation2 + $0x338] sm:$0xff]
        %v674 = vld [vmem:[#allocation2 + $0x340] sm:$0xff]
        %v675 = vld [vmem:[#allocation2 + $0x348] sm:$0xff]
        %v676 = vld [vmem:[#allocation2 + $0x350] sm:$0xff]
        %v677 = vld [vmem:[#allocation2 + $0x358] sm:$0xff]
        %v678 = vld [vmem:[#allocation2 + $0x360] sm:$0xff]
        %v679 = vld [vmem:[#allocation2 + $0x368] sm:$0xff]
        %v680 = vld [vmem:[#allocation2 + $0x370] sm:$0xff]
        %v681 = vld [vmem:[#allocation2 + $0x378] sm:$0xff]
        %v682 = vld [vmem:[#allocation2 + $0x380] sm:$0xff]
        %v683 = vld [vmem:[#allocation2 + $0x388] sm:$0xff]
        %v684 = vld [vmem:[#allocation2 + $0x390] sm:$0xff]
        %v685 = vld [vmem:[#allocation2 + $0x398] sm:$0xff]
        %v686 = vld [vmem:[#allocation2 + $0x3a0] sm:$0xff]
        %v687 = vld [vmem:[#allocation2 + $0x3a8] sm:$0xff]
        %v688 = vld [vmem:[#allocation2 + $0x3b0] sm:$0xff]
        %v689 = vld [vmem:[#allocation2 + $0x3b8] sm:$0xff]
        %v690 = vld [vmem:[#allocation2 + $0x3c0] sm:$0xff]
        %v691 = vld [vmem:[#allocation2 + $0x3c8] sm:$0xff]
        %v692 = vld [vmem:[#allocation2 + $0x3d0] sm:$0xff]
        %v693 = vld [vmem:[#allocation2 + $0x3d8] sm:$0xff]
        %v694 = vld [vmem:[#allocation2 + $0x3e0] sm:$0xff]
        %v695 = vld [vmem:[#allocation2 + $0x3e8] sm:$0xff]
        %v696 = vld [vmem:[#allocation2 + $0x3f0] sm:$0xff]
        %v697 = vld [vmem:[#allocation2 + $0x3f8] sm:$0xff]
        %v698 = vld [vmem:[#allocation2 + $0x400] sm:$0xff]
        %v699 = vld [vmem:[#allocation2 + $0x408] sm:$0xff]
        %v700 = vld [vmem:[#allocation2 + $0x410] sm:$0xff]
        %v701 = vld [vmem:[#allocation2 + $0x418] sm:$0xff]
        %v702 = vld [vmem:[#allocation2 + $0x420] sm:$0xff]
        %v703 = vld [vmem:[#allocation2 + $0x428] sm:$0xff]
        %v704 = vld [vmem:[#allocation2 + $0x430] sm:$0xff]
        %v705 = vld [vmem:[#allocation2 + $0x438] sm:$0xff]
        %v706 = vld [vmem:[#allocation2 + $0x440] sm:$0xff]
        %v707 = vld [vmem:[#allocation2 + $0x448] sm:$0xff]
        %v708 = vld [vmem:[#allocation2 + $0x450] sm:$0xff]
        %v709 = vld [vmem:[#allocation2 + $0x458] sm:$0xff]
        %v710 = vld [vmem:[#allocation2 + $0x460] sm:$0xff]
        %v711 = vld [vmem:[#allocation2 + $0x468] sm:$0xff]
        %v712 = vld [vmem:[#allocation2 + $0x470] sm:$0xff]
        %v713 = vld [vmem:[#allocation2 + $0x478] sm:$0xff]
        %v714 = vld [vmem:[#allocation2 + $0x480] sm:$0xff]
        %v715 = vld [vmem:[#allocation2 + $0x488] sm:$0xff]
        %v716 = vld [vmem:[#allocation2 + $0x490] sm:$0xff]
        %v717 = vld [vmem:[#allocation2 + $0x498] sm:$0xff]
        %v718 = vld [vmem:[#allocation2 + $0x4a0] sm:$0xff]
        %v719 = vld [vmem:[#allocation2 + $0x4a8] sm:$0xff]
        %v720 = vld [vmem:[#allocation2 + $0x4b0] sm:$0xff]
        %v721 = vld [vmem:[#allocation2 + $0x4b8] sm:$0xff]
        %v722 = vld [vmem:[#allocation2 + $0x4c0] sm:$0xff]
        %v723 = vld [vmem:[#allocation2 + $0x4c8] sm:$0xff]
        %v724 = vld [vmem:[#allocation2 + $0x4d0] sm:$0xff]
        %v725 = vld [vmem:[#allocation2 + $0x4d8] sm:$0xff]
        %v726 = vld [vmem:[#allocation2 + $0x4e0] sm:$0xff]
        %v727 = vld [vmem:[#allocation2 + $0x4e8] sm:$0xff]
        %v728 = vld [vmem:[#allocation2 + $0x4f0] sm:$0xff]
        %v729 = vld [vmem:[#allocation2 + $0x4f8] sm:$0xff]
        %v730 = vld [vmem:[#allocation2 + $0x500] sm:$0xff]
        %v731 = vld [vmem:[#allocation2 + $0x508] sm:$0xff]
        %v732 = vld [vmem:[#allocation2 + $0x510] sm:$0xff]
        %v733 = vld [vmem:[#allocation2 + $0x518] sm:$0xff]
        %v734 = vld [vmem:[#allocation2 + $0x520] sm:$0xff]
        %v735 = vld [vmem:[#allocation2 + $0x528] sm:$0xff]
        %v736 = vld [vmem:[#allocation2 + $0x530] sm:$0xff]
        %v737 = vld [vmem:[#allocation2 + $0x538] sm:$0xff]
        %v738 = vld [vmem:[#allocation2 + $0x540] sm:$0xff]
        %v739 = vld [vmem:[#allocation2 + $0x548] sm:$0xff]
        %v740 = vld [vmem:[#allocation2 + $0x550] sm:$0xff]
        %v741 = vld [vmem:[#allocation2 + $0x558] sm:$0xff]
        %v742 = vld [vmem:[#allocation2 + $0x560] sm:$0xff]
        %v743 = vld [vmem:[#allocation2 + $0x568] sm:$0xff]
        %v744 = vld [vmem:[#allocation2 + $0x570] sm:$0xff]
        %v745 = vld [vmem:[#allocation2 + $0x578] sm:$0xff]
        %v746 = vld [vmem:[#allocation2 + $0x580] sm:$0xff]
        %v747 = vld [vmem:[#allocation2 + $0x588] sm:$0xff]
        %v748 = vld [vmem:[#allocation2 + $0x590] sm:$0xff]
        %v749 = vld [vmem:[#allocation2 + $0x598] sm:$0xff]
        %v750 = vld [vmem:[#allocation2 + $0x5a0] sm:$0xff]
        %v751 = vld [vmem:[#allocation2 + $0x5a8] sm:$0xff]
        %v752 = vld [vmem:[#allocation2 + $0x5b0] sm:$0xff]
        %v753 = vld [vmem:[#allocation2 + $0x5b8] sm:$0xff]
        %v754 = vld [vmem:[#allocation2 + $0x5c0] sm:$0xff]
        %v755 = vld [vmem:[#allocation2 + $0x5c8] sm:$0xff]
        %v756 = vld [vmem:[#allocation2 + $0x5d0] sm:$0xff]
        %v757 = vld [vmem:[#allocation2 + $0x5d8] sm:$0xff]
        %v758 = vld [vmem:[#allocation2 + $0x5e0] sm:$0xff]
        %v759 = vld [vmem:[#allocation2 + $0x5e8] sm:$0xff]
        %v760 = vld [vmem:[#allocation2 + $0x5f0] sm:$0xff]
        %v761 = vld [vmem:[#allocation2 + $0x5f8] sm:$0xff]
        %v762 = vld [vmem:[%s2] sm:$0xf]
        %v764 = vlaneseq
        %v765 = vshrl.u32 %v764, 7
        %v766 = vsub.s32 0, %v765
        %v767 = vrot.slane %v762, %v766
        %v768 = vlaneseq
        %v769 = vshrl.u32 %v768, 7
        %v770 = vsub.s32 1, %v769
        %v771 = vrot.slane %v762, %v770
        %v772 = vlaneseq
        %v773 = vshrl.u32 %v772, 7
        %v774 = vsub.s32 2, %v773
        %v775 = vrot.slane %v762, %v774
        %v776 = vlaneseq
        %v777 = vshrl.u32 %v776, 7
        %v778 = vsub.s32 3, %v777
        %v779 = vrot.slane %v762, %v778
        %v796 = vunpack.c.l.b16 %v558
        %v797 = vunpack.c.h.b16 %v558
        %v798 = vunpack.c.l.b16 %v559
        %v799 = vunpack.c.h.b16 %v559
        %v800 = vunpack.c.l.b16 %v560
        %v801 = vunpack.c.h.b16 %v560
        %v802 = vunpack.c.l.b16 %v561
        %v803 = vunpack.c.h.b16 %v561
        %v804 = vunpack.c.l.b16 %v562
        %v805 = vunpack.c.h.b16 %v562
        %v806 = vunpack.c.l.b16 %v563
        %v807 = vunpack.c.h.b16 %v563
        %v808 = vunpack.c.l.b16 %v564
        %v809 = vunpack.c.h.b16 %v564
        %v810 = vunpack.c.l.b16 %v565
        %v811 = vunpack.c.h.b16 %v565
        %v812 = vunpack.c.l.b16 %v566
        %v813 = vunpack.c.h.b16 %v566
        %v814 = vunpack.c.l.b16 %v567
        %v815 = vunpack.c.h.b16 %v567
        %v816 = vunpack.c.l.b16 %v568
        %v817 = vunpack.c.h.b16 %v568
        %v818 = vunpack.c.l.b16 %v569
        %v819 = vunpack.c.h.b16 %v569
        %v820 = vpack.c.b16 %v802, %v796
        %v821 = vpack.c.b16 %v803, %v797
        %v822 = vpack.c.b16 %v804, %v798
        %v823 = vpack.c.b16 %v805, %v799
        %v824 = vpack.c.b16 %v806, %v800
        %v825 = vpack.c.b16 %v807, %v801
        %v826 = vpack.c.b16 %v814, %v808
        %v827 = vpack.c.b16 %v815, %v809
        %v828 = vpack.c.b16 %v816, %v810
        %v829 = vpack.c.b16 %v817, %v811
        %v830 = vpack.c.b16 %v818, %v812
        %v831 = vpack.c.b16 %v819, %v813
        %v1036 = vunpack.c.l.b16 %v570
        %v1037 = vunpack.c.h.b16 %v570
        %v1038 = vunpack.c.l.b16 %v571
        %v1039 = vunpack.c.h.b16 %v571
        %v1040 = vunpack.c.l.b16 %v572
        %v1041 = vunpack.c.h.b16 %v572
        %v1042 = vunpack.c.l.b16 %v573
        %v1043 = vunpack.c.h.b16 %v573
        %v1044 = vunpack.c.l.b16 %v574
        %v1045 = vunpack.c.h.b16 %v574
        %v1046 = vunpack.c.l.b16 %v575
        %v1047 = vunpack.c.h.b16 %v575
        %v1048 = vunpack.c.l.b16 %v576
        %v1049 = vunpack.c.h.b16 %v576
        %v1050 = vunpack.c.l.b16 %v577
        %v1051 = vunpack.c.h.b16 %v577
        %v1052 = vunpack.c.l.b16 %v578
        %v1053 = vunpack.c.h.b16 %v578
        %v1054 = vunpack.c.l.b16 %v579
        %v1055 = vunpack.c.h.b16 %v579
        %v1056 = vunpack.c.l.b16 %v580
        %v1057 = vunpack.c.h.b16 %v580
        %v1058 = vunpack.c.l.b16 %v581
        %v1059 = vunpack.c.h.b16 %v581
        %v1060 = vunpack.c.l.b16 %v582
        %v1061 = vunpack.c.h.b16 %v582
        %v1062 = vunpack.c.l.b16 %v583
        %v1063 = vunpack.c.h.b16 %v583
        %v1064 = vunpack.c.l.b16 %v584
        %v1065 = vunpack.c.h.b16 %v584
        %v1066 = vunpack.c.l.b16 %v585
        %v1067 = vunpack.c.h.b16 %v585
        %v1068 = vunpack.c.l.b16 %v586
        %v1069 = vunpack.c.h.b16 %v586
        %v1070 = vunpack.c.l.b16 %v587
        %v1071 = vunpack.c.h.b16 %v587
        %v1072 = vunpack.c.l.b16 %v588
        %v1073 = vunpack.c.h.b16 %v588
        %v1074 = vunpack.c.l.b16 %v589
        %v1075 = vunpack.c.h.b16 %v589
        %v1076 = vunpack.c.l.b16 %v590
        %v1077 = vunpack.c.h.b16 %v590
        %v1078 = vunpack.c.l.b16 %v591
        %v1079 = vunpack.c.h.b16 %v591
        %v1080 = vunpack.c.l.b16 %v592
        %v1081 = vunpack.c.h.b16 %v592
        %v1082 = vunpack.c.l.b16 %v593
        %v1083 = vunpack.c.h.b16 %v593
        %v1084 = vunpack.c.l.b16 %v594
        %v1085 = vunpack.c.h.b16 %v594
        %v1086 = vunpack.c.l.b16 %v595
        %v1087 = vunpack.c.h.b16 %v595
        %v1088 = vunpack.c.l.b16 %v596
        %v1089 = vunpack.c.h.b16 %v596
        %v1090 = vunpack.c.l.b16 %v597
        %v1091 = vunpack.c.h.b16 %v597
        %v1092 = vunpack.c.l.b16 %v598
        %v1093 = vunpack.c.h.b16 %v598
        %v1094 = vunpack.c.l.b16 %v599
        %v1095 = vunpack.c.h.b16 %v599
        %v1096 = vunpack.c.l.b16 %v600
        %v1097 = vunpack.c.h.b16 %v600
        %v1098 = vunpack.c.l.b16 %v601
        %v1099 = vunpack.c.h.b16 %v601
        %v1100 = vunpack.c.l.b16 %v602
        %v1101 = vunpack.c.h.b16 %v602
        %v1102 = vunpack.c.l.b16 %v603
        %v1103 = vunpack.c.h.b16 %v603
        %v1104 = vunpack.c.l.b16 %v604
        %v1105 = vunpack.c.h.b16 %v604
        %v1106 = vunpack.c.l.b16 %v605
        %v1107 = vunpack.c.h.b16 %v605
        %v1108 = vunpack.c.l.b16 %v606
        %v1109 = vunpack.c.h.b16 %v606
        %v1110 = vunpack.c.l.b16 %v607
        %v1111 = vunpack.c.h.b16 %v607
        %v1112 = vunpack.c.l.b16 %v608
        %v1113 = vunpack.c.h.b16 %v608
        %v1114 = vunpack.c.l.b16 %v609
        %v1115 = vunpack.c.h.b16 %v609
        %v1116 = vunpack.c.l.b16 %v610
        %v1117 = vunpack.c.h.b16 %v610
        %v1118 = vunpack.c.l.b16 %v611
        %v1119 = vunpack.c.h.b16 %v611
        %v1120 = vunpack.c.l.b16 %v612
        %v1121 = vunpack.c.h.b16 %v612
        %v1122 = vunpack.c.l.b16 %v613
        %v1123 = vunpack.c.h.b16 %v613
        %v1124 = vunpack.c.l.b16 %v614
        %v1125 = vunpack.c.h.b16 %v614
        %v1126 = vunpack.c.l.b16 %v615
        %v1127 = vunpack.c.h.b16 %v615
        %v1128 = vunpack.c.l.b16 %v616
        %v1129 = vunpack.c.h.b16 %v616
        %v1130 = vunpack.c.l.b16 %v617
        %v1131 = vunpack.c.h.b16 %v617
        %v1132 = vunpack.c.l.b16 %v618
        %v1133 = vunpack.c.h.b16 %v618
        %v1134 = vunpack.c.l.b16 %v619
        %v1135 = vunpack.c.h.b16 %v619
        %v1136 = vunpack.c.l.b16 %v620
        %v1137 = vunpack.c.h.b16 %v620
        %v1138 = vunpack.c.l.b16 %v621
        %v1139 = vunpack.c.h.b16 %v621
        %v1140 = vunpack.c.l.b16 %v622
        %v1141 = vunpack.c.h.b16 %v622
        %v1142 = vunpack.c.l.b16 %v623
        %v1143 = vunpack.c.h.b16 %v623
        %v1144 = vunpack.c.l.b16 %v624
        %v1145 = vunpack.c.h.b16 %v624
        %v1146 = vunpack.c.l.b16 %v625
        %v1147 = vunpack.c.h.b16 %v625
        %v1148 = vunpack.c.l.b16 %v626
        %v1149 = vunpack.c.h.b16 %v626
        %v1150 = vunpack.c.l.b16 %v627
        %v1151 = vunpack.c.h.b16 %v627
        %v1152 = vunpack.c.l.b16 %v628
        %v1153 = vunpack.c.h.b16 %v628
        %v1154 = vunpack.c.l.b16 %v629
        %v1155 = vunpack.c.h.b16 %v629
        %v1156 = vunpack.c.l.b16 %v630
        %v1157 = vunpack.c.h.b16 %v630
        %v1158 = vunpack.c.l.b16 %v631
        %v1159 = vunpack.c.h.b16 %v631
        %v1160 = vunpack.c.l.b16 %v632
        %v1161 = vunpack.c.h.b16 %v632
        %v1162 = vunpack.c.l.b16 %v633
        %v1163 = vunpack.c.h.b16 %v633
        %v1164 = vunpack.c.l.b16 %v634
        %v1165 = vunpack.c.h.b16 %v634
        %v1166 = vunpack.c.l.b16 %v635
        %v1167 = vunpack.c.h.b16 %v635
        %v1168 = vunpack.c.l.b16 %v636
        %v1169 = vunpack.c.h.b16 %v636
        %v1170 = vunpack.c.l.b16 %v637
        %v1171 = vunpack.c.h.b16 %v637
        %v1172 = vunpack.c.l.b16 %v638
        %v1173 = vunpack.c.h.b16 %v638
        %v1174 = vunpack.c.l.b16 %v639
        %v1175 = vunpack.c.h.b16 %v639
        %v1176 = vunpack.c.l.b16 %v640
        %v1177 = vunpack.c.h.b16 %v640
        %v1178 = vunpack.c.l.b16 %v641
        %v1179 = vunpack.c.h.b16 %v641
        %v1180 = vunpack.c.l.b16 %v642
        %v1181 = vunpack.c.h.b16 %v642
        %v1182 = vunpack.c.l.b16 %v643
        %v1183 = vunpack.c.h.b16 %v643
        %v1184 = vunpack.c.l.b16 %v644
        %v1185 = vunpack.c.h.b16 %v644
        %v1186 = vunpack.c.l.b16 %v645
        %v1187 = vunpack.c.h.b16 %v645
        %v1188 = vunpack.c.l.b16 %v646
        %v1189 = vunpack.c.h.b16 %v646
        %v1190 = vunpack.c.l.b16 %v647
        %v1191 = vunpack.c.h.b16 %v647
        %v1192 = vunpack.c.l.b16 %v648
        %v1193 = vunpack.c.h.b16 %v648
        %v1194 = vunpack.c.l.b16 %v649
        %v1195 = vunpack.c.h.b16 %v649
        %v1196 = vunpack.c.l.b16 %v650
        %v1197 = vunpack.c.h.b16 %v650
        %v1198 = vunpack.c.l.b16 %v651
        %v1199 = vunpack.c.h.b16 %v651
        %v1200 = vunpack.c.l.b16 %v652
        %v1201 = vunpack.c.h.b16 %v652
        %v1202 = vunpack.c.l.b16 %v653
        %v1203 = vunpack.c.h.b16 %v653
        %v1204 = vunpack.c.l.b16 %v654
        %v1205 = vunpack.c.h.b16 %v654
        %v1206 = vunpack.c.l.b16 %v655
        %v1207 = vunpack.c.h.b16 %v655
        %v1208 = vunpack.c.l.b16 %v656
        %v1209 = vunpack.c.h.b16 %v656
        %v1210 = vunpack.c.l.b16 %v657
        %v1211 = vunpack.c.h.b16 %v657
        %v1212 = vunpack.c.l.b16 %v658
        %v1213 = vunpack.c.h.b16 %v658
        %v1214 = vunpack.c.l.b16 %v659
        %v1215 = vunpack.c.h.b16 %v659
        %v1216 = vunpack.c.l.b16 %v660
        %v1217 = vunpack.c.h.b16 %v660
        %v1218 = vunpack.c.l.b16 %v661
        %v1219 = vunpack.c.h.b16 %v661
        %v1220 = vunpack.c.l.b16 %v662
        %v1221 = vunpack.c.h.b16 %v662
        %v1222 = vunpack.c.l.b16 %v663
        %v1223 = vunpack.c.h.b16 %v663
        %v1224 = vunpack.c.l.b16 %v664
        %v1225 = vunpack.c.h.b16 %v664
        %v1226 = vunpack.c.l.b16 %v665
        %v1227 = vunpack.c.h.b16 %v665
        %v1228 = vunpack.c.l.b16 %v666
        %v1229 = vunpack.c.h.b16 %v666
        %v1230 = vunpack.c.l.b16 %v667
        %v1231 = vunpack.c.h.b16 %v667
        %v1232 = vunpack.c.l.b16 %v668
        %v1233 = vunpack.c.h.b16 %v668
        %v1234 = vunpack.c.l.b16 %v669
        %v1235 = vunpack.c.h.b16 %v669
        %v1236 = vunpack.c.l.b16 %v670
        %v1237 = vunpack.c.h.b16 %v670
        %v1238 = vunpack.c.l.b16 %v671
        %v1239 = vunpack.c.h.b16 %v671
        %v1240 = vunpack.c.l.b16 %v672
        %v1241 = vunpack.c.h.b16 %v672
        %v1242 = vunpack.c.l.b16 %v673
        %v1243 = vunpack.c.h.b16 %v673
        %v1244 = vunpack.c.l.b16 %v674
        %v1245 = vunpack.c.h.b16 %v674
        %v1246 = vunpack.c.l.b16 %v675
        %v1247 = vunpack.c.h.b16 %v675
        %v1248 = vunpack.c.l.b16 %v676
        %v1249 = vunpack.c.h.b16 %v676
        %v1250 = vunpack.c.l.b16 %v677
        %v1251 = vunpack.c.h.b16 %v677
        %v1252 = vunpack.c.l.b16 %v678
        %v1253 = vunpack.c.h.b16 %v678
        %v1254 = vunpack.c.l.b16 %v679
        %v1255 = vunpack.c.h.b16 %v679
        %v1256 = vunpack.c.l.b16 %v680
        %v1257 = vunpack.c.h.b16 %v680
        %v1258 = vunpack.c.l.b16 %v681
        %v1259 = vunpack.c.h.b16 %v681
        %v1260 = vunpack.c.l.b16 %v682
        %v1261 = vunpack.c.h.b16 %v682
        %v1262 = vunpack.c.l.b16 %v683
        %v1263 = vunpack.c.h.b16 %v683
        %v1264 = vunpack.c.l.b16 %v684
        %v1265 = vunpack.c.h.b16 %v684
        %v1266 = vunpack.c.l.b16 %v685
        %v1267 = vunpack.c.h.b16 %v685
        %v1268 = vunpack.c.l.b16 %v686
        %v1269 = vunpack.c.h.b16 %v686
        %v1270 = vunpack.c.l.b16 %v687
        %v1271 = vunpack.c.h.b16 %v687
        %v1272 = vunpack.c.l.b16 %v688
        %v1273 = vunpack.c.h.b16 %v688
        %v1274 = vunpack.c.l.b16 %v689
        %v1275 = vunpack.c.h.b16 %v689
        %v1276 = vunpack.c.l.b16 %v690
        %v1277 = vunpack.c.h.b16 %v690
        %v1278 = vunpack.c.l.b16 %v691
        %v1279 = vunpack.c.h.b16 %v691
        %v1280 = vunpack.c.l.b16 %v692
        %v1281 = vunpack.c.h.b16 %v692
        %v1282 = vunpack.c.l.b16 %v693
        %v1283 = vunpack.c.h.b16 %v693
        %v1284 = vunpack.c.l.b16 %v694
        %v1285 = vunpack.c.h.b16 %v694
        %v1286 = vunpack.c.l.b16 %v695
        %v1287 = vunpack.c.h.b16 %v695
        %v1288 = vunpack.c.l.b16 %v696
        %v1289 = vunpack.c.h.b16 %v696
        %v1290 = vunpack.c.l.b16 %v697
        %v1291 = vunpack.c.h.b16 %v697
        %v1292 = vunpack.c.l.b16 %v698
        %v1293 = vunpack.c.h.b16 %v698
        %v1294 = vunpack.c.l.b16 %v699
        %v1295 = vunpack.c.h.b16 %v699
        %v1296 = vunpack.c.l.b16 %v700
        %v1297 = vunpack.c.h.b16 %v700
        %v1298 = vunpack.c.l.b16 %v701
        %v1299 = vunpack.c.h.b16 %v701
        %v1300 = vunpack.c.l.b16 %v702
        %v1301 = vunpack.c.h.b16 %v702
        %v1302 = vunpack.c.l.b16 %v703
        %v1303 = vunpack.c.h.b16 %v703
        %v1304 = vunpack.c.l.b16 %v704
        %v1305 = vunpack.c.h.b16 %v704
        %v1306 = vunpack.c.l.b16 %v705
        %v1307 = vunpack.c.h.b16 %v705
        %v1308 = vunpack.c.l.b16 %v706
        %v1309 = vunpack.c.h.b16 %v706
        %v1310 = vunpack.c.l.b16 %v707
        %v1311 = vunpack.c.h.b16 %v707
        %v1312 = vunpack.c.l.b16 %v708
        %v1313 = vunpack.c.h.b16 %v708
        %v1314 = vunpack.c.l.b16 %v709
        %v1315 = vunpack.c.h.b16 %v709
        %v1316 = vunpack.c.l.b16 %v710
        %v1317 = vunpack.c.h.b16 %v710
        %v1318 = vunpack.c.l.b16 %v711
        %v1319 = vunpack.c.h.b16 %v711
        %v1320 = vunpack.c.l.b16 %v712
        %v1321 = vunpack.c.h.b16 %v712
        %v1322 = vunpack.c.l.b16 %v713
        %v1323 = vunpack.c.h.b16 %v713
        %v1324 = vunpack.c.l.b16 %v714
        %v1325 = vunpack.c.h.b16 %v714
        %v1326 = vunpack.c.l.b16 %v715
        %v1327 = vunpack.c.h.b16 %v715
        %v1328 = vunpack.c.l.b16 %v716
        %v1329 = vunpack.c.h.b16 %v716
        %v1330 = vunpack.c.l.b16 %v717
        %v1331 = vunpack.c.h.b16 %v717
        %v1332 = vunpack.c.l.b16 %v718
        %v1333 = vunpack.c.h.b16 %v718
        %v1334 = vunpack.c.l.b16 %v719
        %v1335 = vunpack.c.h.b16 %v719
        %v1336 = vunpack.c.l.b16 %v720
        %v1337 = vunpack.c.h.b16 %v720
        %v1338 = vunpack.c.l.b16 %v721
        %v1339 = vunpack.c.h.b16 %v721
        %v1340 = vunpack.c.l.b16 %v722
        %v1341 = vunpack.c.h.b16 %v722
        %v1342 = vunpack.c.l.b16 %v723
        %v1343 = vunpack.c.h.b16 %v723
        %v1344 = vunpack.c.l.b16 %v724
        %v1345 = vunpack.c.h.b16 %v724
        %v1346 = vunpack.c.l.b16 %v725
        %v1347 = vunpack.c.h.b16 %v725
        %v1348 = vunpack.c.l.b16 %v726
        %v1349 = vunpack.c.h.b16 %v726
        %v1350 = vunpack.c.l.b16 %v727
        %v1351 = vunpack.c.h.b16 %v727
        %v1352 = vunpack.c.l.b16 %v728
        %v1353 = vunpack.c.h.b16 %v728
        %v1354 = vunpack.c.l.b16 %v729
        %v1355 = vunpack.c.h.b16 %v729
        %v1356 = vunpack.c.l.b16 %v730
        %v1357 = vunpack.c.h.b16 %v730
        %v1358 = vunpack.c.l.b16 %v731
        %v1359 = vunpack.c.h.b16 %v731
        %v1360 = vunpack.c.l.b16 %v732
        %v1361 = vunpack.c.h.b16 %v732
        %v1362 = vunpack.c.l.b16 %v733
        %v1363 = vunpack.c.h.b16 %v733
        %v1364 = vunpack.c.l.b16 %v734
        %v1365 = vunpack.c.h.b16 %v734
        %v1366 = vunpack.c.l.b16 %v735
        %v1367 = vunpack.c.h.b16 %v735
        %v1368 = vunpack.c.l.b16 %v736
        %v1369 = vunpack.c.h.b16 %v736
        %v1370 = vunpack.c.l.b16 %v737
        %v1371 = vunpack.c.h.b16 %v737
        %v1372 = vunpack.c.l.b16 %v738
        %v1373 = vunpack.c.h.b16 %v738
        %v1374 = vunpack.c.l.b16 %v739
        %v1375 = vunpack.c.h.b16 %v739
        %v1376 = vunpack.c.l.b16 %v740
        %v1377 = vunpack.c.h.b16 %v740
        %v1378 = vunpack.c.l.b16 %v741
        %v1379 = vunpack.c.h.b16 %v741
        %v1380 = vunpack.c.l.b16 %v742
        %v1381 = vunpack.c.h.b16 %v742
        %v1382 = vunpack.c.l.b16 %v743
        %v1383 = vunpack.c.h.b16 %v743
        %v1384 = vunpack.c.l.b16 %v744
        %v1385 = vunpack.c.h.b16 %v744
        %v1386 = vunpack.c.l.b16 %v745
        %v1387 = vunpack.c.h.b16 %v745
        %v1388 = vunpack.c.l.b16 %v746
        %v1389 = vunpack.c.h.b16 %v746
        %v1390 = vunpack.c.l.b16 %v747
        %v1391 = vunpack.c.h.b16 %v747
        %v1392 = vunpack.c.l.b16 %v748
        %v1393 = vunpack.c.h.b16 %v748
        %v1394 = vunpack.c.l.b16 %v749
        %v1395 = vunpack.c.h.b16 %v749
        %v1396 = vunpack.c.l.b16 %v750
        %v1397 = vunpack.c.h.b16 %v750
        %v1398 = vunpack.c.l.b16 %v751
        %v1399 = vunpack.c.h.b16 %v751
        %v1400 = vunpack.c.l.b16 %v752
        %v1401 = vunpack.c.h.b16 %v752
        %v1402 = vunpack.c.l.b16 %v753
        %v1403 = vunpack.c.h.b16 %v753
        %v1404 = vunpack.c.l.b16 %v754
        %v1405 = vunpack.c.h.b16 %v754
        %v1406 = vunpack.c.l.b16 %v755
        %v1407 = vunpack.c.h.b16 %v755
        %v1408 = vunpack.c.l.b16 %v756
        %v1409 = vunpack.c.h.b16 %v756
        %v1410 = vunpack.c.l.b16 %v757
        %v1411 = vunpack.c.h.b16 %v757
        %v1412 = vunpack.c.l.b16 %v758
        %v1413 = vunpack.c.h.b16 %v758
        %v1414 = vunpack.c.l.b16 %v759
        %v1415 = vunpack.c.h.b16 %v759
        %v1416 = vunpack.c.l.b16 %v760
        %v1417 = vunpack.c.h.b16 %v760
        %v1418 = vunpack.c.l.b16 %v761
        %v1419 = vunpack.c.h.b16 %v761
        %v1420 = vpack.c.b16 %v1040, %v1036
        %v1421 = vpack.c.b16 %v1041, %v1037
        %v1422 = vpack.c.b16 %v1042, %v1038
        %v1423 = vpack.c.b16 %v1043, %v1039
        %v1424 = vpack.c.b16 %v1048, %v1044
        %v1425 = vpack.c.b16 %v1049, %v1045
        %v1426 = vpack.c.b16 %v1050, %v1046
        %v1427 = vpack.c.b16 %v1051, %v1047
        %v1428 = vpack.c.b16 %v1056, %v1052
        %v1429 = vpack.c.b16 %v1057, %v1053
        %v1430 = vpack.c.b16 %v1058, %v1054
        %v1431 = vpack.c.b16 %v1059, %v1055
        %v1432 = vpack.c.b16 %v1064, %v1060
        %v1433 = vpack.c.b16 %v1065, %v1061
        %v1434 = vpack.c.b16 %v1066, %v1062
        %v1435 = vpack.c.b16 %v1067, %v1063
        %v1436 = vpack.c.b16 %v1072, %v1068
        %v1437 = vpack.c.b16 %v1073, %v1069
        %v1438 = vpack.c.b16 %v1074, %v1070
        %v1439 = vpack.c.b16 %v1075, %v1071
        %v1440 = vpack.c.b16 %v1080, %v1076
        %v1441 = vpack.c.b16 %v1081, %v1077
        %v1442 = vpack.c.b16 %v1082, %v1078
        %v1443 = vpack.c.b16 %v1083, %v1079
        %v1444 = vpack.c.b16 %v1088, %v1084
        %v1445 = vpack.c.b16 %v1089, %v1085
        %v1446 = vpack.c.b16 %v1090, %v1086
        %v1447 = vpack.c.b16 %v1091, %v1087
        %v1448 = vpack.c.b16 %v1096, %v1092
        %v1449 = vpack.c.b16 %v1097, %v1093
        %v1450 = vpack.c.b16 %v1098, %v1094
        %v1451 = vpack.c.b16 %v1099, %v1095
        %v1452 = vpack.c.b16 %v1104, %v1100
        %v1453 = vpack.c.b16 %v1105, %v1101
        %v1454 = vpack.c.b16 %v1106, %v1102
        %v1455 = vpack.c.b16 %v1107, %v1103
        %v1456 = vpack.c.b16 %v1112, %v1108
        %v1457 = vpack.c.b16 %v1113, %v1109
        %v1458 = vpack.c.b16 %v1114, %v1110
        %v1459 = vpack.c.b16 %v1115, %v1111
        %v1460 = vpack.c.b16 %v1120, %v1116
        %v1461 = vpack.c.b16 %v1121, %v1117
        %v1462 = vpack.c.b16 %v1122, %v1118
        %v1463 = vpack.c.b16 %v1123, %v1119
        %v1464 = vpack.c.b16 %v1128, %v1124
        %v1465 = vpack.c.b16 %v1129, %v1125
        %v1466 = vpack.c.b16 %v1130, %v1126
        %v1467 = vpack.c.b16 %v1131, %v1127
        %v1468 = vpack.c.b16 %v1136, %v1132
        %v1469 = vpack.c.b16 %v1137, %v1133
        %v1470 = vpack.c.b16 %v1138, %v1134
        %v1471 = vpack.c.b16 %v1139, %v1135
        %v1472 = vpack.c.b16 %v1144, %v1140
        %v1473 = vpack.c.b16 %v1145, %v1141
        %v1474 = vpack.c.b16 %v1146, %v1142
        %v1475 = vpack.c.b16 %v1147, %v1143
        %v1476 = vpack.c.b16 %v1152, %v1148
        %v1477 = vpack.c.b16 %v1153, %v1149
        %v1478 = vpack.c.b16 %v1154, %v1150
        %v1479 = vpack.c.b16 %v1155, %v1151
        %v1480 = vpack.c.b16 %v1160, %v1156
        %v1481 = vpack.c.b16 %v1161, %v1157
        %v1482 = vpack.c.b16 %v1162, %v1158
        %v1483 = vpack.c.b16 %v1163, %v1159
        %v1484 = vpack.c.b16 %v1168, %v1164
        %v1485 = vpack.c.b16 %v1169, %v1165
        %v1486 = vpack.c.b16 %v1170, %v1166
        %v1487 = vpack.c.b16 %v1171, %v1167
        %v1488 = vpack.c.b16 %v1176, %v1172
        %v1489 = vpack.c.b16 %v1177, %v1173
        %v1490 = vpack.c.b16 %v1178, %v1174
        %v1491 = vpack.c.b16 %v1179, %v1175
        %v1492 = vpack.c.b16 %v1184, %v1180
        %v1493 = vpack.c.b16 %v1185, %v1181
        %v1494 = vpack.c.b16 %v1186, %v1182
        %v1495 = vpack.c.b16 %v1187, %v1183
        %v1496 = vpack.c.b16 %v1192, %v1188
        %v1497 = vpack.c.b16 %v1193, %v1189
        %v1498 = vpack.c.b16 %v1194, %v1190
        %v1499 = vpack.c.b16 %v1195, %v1191
        %v1500 = vpack.c.b16 %v1200, %v1196
        %v1501 = vpack.c.b16 %v1201, %v1197
        %v1502 = vpack.c.b16 %v1202, %v1198
        %v1503 = vpack.c.b16 %v1203, %v1199
        %v1504 = vpack.c.b16 %v1208, %v1204
        %v1505 = vpack.c.b16 %v1209, %v1205
        %v1506 = vpack.c.b16 %v1210, %v1206
        %v1507 = vpack.c.b16 %v1211, %v1207
        %v1508 = vpack.c.b16 %v1216, %v1212
        %v1509 = vpack.c.b16 %v1217, %v1213
        %v1510 = vpack.c.b16 %v1218, %v1214
        %v1511 = vpack.c.b16 %v1219, %v1215
        %v1512 = vpack.c.b16 %v1224, %v1220
        %v1513 = vpack.c.b16 %v1225, %v1221
        %v1514 = vpack.c.b16 %v1226, %v1222
        %v1515 = vpack.c.b16 %v1227, %v1223
        %v1516 = vpack.c.b16 %v1232, %v1228
        %v1517 = vpack.c.b16 %v1233, %v1229
        %v1518 = vpack.c.b16 %v1234, %v1230
        %v1519 = vpack.c.b16 %v1235, %v1231
        %v1520 = vpack.c.b16 %v1240, %v1236
        %v1521 = vpack.c.b16 %v1241, %v1237
        %v1522 = vpack.c.b16 %v1242, %v1238
        %v1523 = vpack.c.b16 %v1243, %v1239
        %v1524 = vpack.c.b16 %v1248, %v1244
        %v1525 = vpack.c.b16 %v1249, %v1245
        %v1526 = vpack.c.b16 %v1250, %v1246
        %v1527 = vpack.c.b16 %v1251, %v1247
        %v1528 = vpack.c.b16 %v1256, %v1252
        %v1529 = vpack.c.b16 %v1257, %v1253
        %v1530 = vpack.c.b16 %v1258, %v1254
        %v1531 = vpack.c.b16 %v1259, %v1255
        %v1532 = vpack.c.b16 %v1264, %v1260
        %v1533 = vpack.c.b16 %v1265, %v1261
        %v1534 = vpack.c.b16 %v1266, %v1262
        %v1535 = vpack.c.b16 %v1267, %v1263
        %v1536 = vpack.c.b16 %v1272, %v1268
        %v1537 = vpack.c.b16 %v1273, %v1269
        %v1538 = vpack.c.b16 %v1274, %v1270
        %v1539 = vpack.c.b16 %v1275, %v1271
        %v1540 = vpack.c.b16 %v1280, %v1276
        %v1541 = vpack.c.b16 %v1281, %v1277
        %v1542 = vpack.c.b16 %v1282, %v1278
        %v1543 = vpack.c.b16 %v1283, %v1279
        %v1544 = vpack.c.b16 %v1288, %v1284
        %v1545 = vpack.c.b16 %v1289, %v1285
        %v1546 = vpack.c.b16 %v1290, %v1286
        %v1547 = vpack.c.b16 %v1291, %v1287
        %v1548 = vpack.c.b16 %v1296, %v1292
        %v1549 = vpack.c.b16 %v1297, %v1293
        %v1550 = vpack.c.b16 %v1298, %v1294
        %v1551 = vpack.c.b16 %v1299, %v1295
        %v1552 = vpack.c.b16 %v1304, %v1300
        %v1553 = vpack.c.b16 %v1305, %v1301
        %v1554 = vpack.c.b16 %v1306, %v1302
        %v1555 = vpack.c.b16 %v1307, %v1303
        %v1556 = vpack.c.b16 %v1312, %v1308
        %v1557 = vpack.c.b16 %v1313, %v1309
        %v1558 = vpack.c.b16 %v1314, %v1310
        %v1559 = vpack.c.b16 %v1315, %v1311
        %v1560 = vpack.c.b16 %v1320, %v1316
        %v1561 = vpack.c.b16 %v1321, %v1317
        %v1562 = vpack.c.b16 %v1322, %v1318
        %v1563 = vpack.c.b16 %v1323, %v1319
        %v1564 = vpack.c.b16 %v1328, %v1324
        %v1565 = vpack.c.b16 %v1329, %v1325
        %v1566 = vpack.c.b16 %v1330, %v1326
        %v1567 = vpack.c.b16 %v1331, %v1327
        %v1568 = vpack.c.b16 %v1336, %v1332
        %v1569 = vpack.c.b16 %v1337, %v1333
        %v1570 = vpack.c.b16 %v1338, %v1334
        %v1571 = vpack.c.b16 %v1339, %v1335
        %v1572 = vpack.c.b16 %v1344, %v1340
        %v1573 = vpack.c.b16 %v1345, %v1341
        %v1574 = vpack.c.b16 %v1346, %v1342
        %v1575 = vpack.c.b16 %v1347, %v1343
        %v1576 = vpack.c.b16 %v1352, %v1348
        %v1577 = vpack.c.b16 %v1353, %v1349
        %v1578 = vpack.c.b16 %v1354, %v1350
        %v1579 = vpack.c.b16 %v1355, %v1351
        %v1580 = vpack.c.b16 %v1360, %v1356
        %v1581 = vpack.c.b16 %v1361, %v1357
        %v1582 = vpack.c.b16 %v1362, %v1358
        %v1583 = vpack.c.b16 %v1363, %v1359
        %v1584 = vpack.c.b16 %v1368, %v1364
        %v1585 = vpack.c.b16 %v1369, %v1365
        %v1586 = vpack.c.b16 %v1370, %v1366
        %v1587 = vpack.c.b16 %v1371, %v1367
        %v1588 = vpack.c.b16 %v1376, %v1372
        %v1589 = vpack.c.b16 %v1377, %v1373
        %v1590 = vpack.c.b16 %v1378, %v1374
        %v1591 = vpack.c.b16 %v1379, %v1375
        %v1592 = vpack.c.b16 %v1384, %v1380
        %v1593 = vpack.c.b16 %v1385, %v1381
        %v1594 = vpack.c.b16 %v1386, %v1382
        %v1595 = vpack.c.b16 %v1387, %v1383
        %v1596 = vpack.c.b16 %v1392, %v1388
        %v1597 = vpack.c.b16 %v1393, %v1389
        %v1598 = vpack.c.b16 %v1394, %v1390
        %v1599 = vpack.c.b16 %v1395, %v1391
        %v1600 = vpack.c.b16 %v1400, %v1396
        %v1601 = vpack.c.b16 %v1401, %v1397
        %v1602 = vpack.c.b16 %v1402, %v1398
        %v1603 = vpack.c.b16 %v1403, %v1399
        %v1604 = vpack.c.b16 %v1408, %v1404
        %v1605 = vpack.c.b16 %v1409, %v1405
        %v1606 = vpack.c.b16 %v1410, %v1406
        %v1607 = vpack.c.b16 %v1411, %v1407
        %v1608 = vpack.c.b16 %v1416, %v1412
        %v1609 = vpack.c.b16 %v1417, %v1413
        %v1610 = vpack.c.b16 %v1418, %v1414
        %v1611 = vpack.c.b16 %v1419, %v1415
        %1804 = vmatprep.subr.bf16.mxu0 %v1449
        %1805 = vmatpush1.bf16.msra.mxu0 %v1448
        %1806 = vmatprep.subr.bf16.mxu0 %v1445
        %1807 = vmatpush1.bf16.msra.mxu0 %v1444
        %1808 = vmatprep.subr.bf16.mxu0 %v1441
        %1809 = vmatpush1.bf16.msra.mxu0 %v1440
        %1810 = vmatprep.subr.bf16.mxu0 %v1437
        %1811 = vmatpush1.bf16.msra.mxu0 %v1436
        %1812 = vmatprep.subr.bf16.mxu0 %v1433
        %1813 = vmatpush1.bf16.msra.mxu0 %v1432
        %1814 = vmatprep.subr.bf16.mxu0 %v1429
        %1815 = vmatpush1.bf16.msra.mxu0 %v1428
        %1816 = vmatprep.subr.bf16.mxu0 %v1425
        %1817 = vmatpush1.bf16.msra.mxu0 %v1424
        %1818 = vmatprep.subr.bf16.mxu0 %v1421
        %1819 = vmatpush1.bf16.msra.mxu0 %v1420
        %1820 = vmatprep.subr.bf16.mxu0 %v1481
        %1821 = vmatpush2.bf16.msra.mxu0 %v1480
        %1822 = vmatprep.subr.bf16.mxu0 %v1477
        %1823 = vmatpush2.bf16.msra.mxu0 %v1476
        %1824 = vmatprep.subr.bf16.mxu0 %v1473
        %1825 = vmatpush2.bf16.msra.mxu0 %v1472
        %1826 = vmatprep.subr.bf16.mxu0 %v1469
        %1827 = vmatpush2.bf16.msra.mxu0 %v1468
        %1828 = vmatprep.subr.bf16.mxu0 %v1465
        %1829 = vmatpush2.bf16.msra.mxu0 %v1464
        %1830 = vmatprep.subr.bf16.mxu0 %v1461
        %1831 = vmatpush2.bf16.msra.mxu0 %v1460
        %1832 = vmatprep.subr.bf16.mxu0 %v1457
        %1833 = vmatpush2.bf16.msra.mxu0 %v1456
        %1834 = vmatprep.subr.bf16.mxu0 %v1453
        %1835 = vmatpush2.bf16.msra.mxu0 %v1452
        %1836 = vmatprep.mubr.bf16.mxu0 %v821
        %1837 = vmatmul.mubr.bf16.gmra.mxu0 %v820
        %v1838 = vpop.f32.mrf.mxu0
        %v1839 = vadd.f32 %v767, %v1838
        %v1840 = vpop.f32.mrf.mxu0
        %v1841 = vadd.f32 %v771, %v1840
        %v1842 = vpop.f32.mrf.mxu0
        %v1843 = vadd.f32 %v767, %v1842
        %v1844 = vpop.f32.mrf.mxu0
        %v1845 = vadd.f32 %v771, %v1844
        %1846 = vmatprep.mubr.bf16.mxu0 %v827
        %1847 = vmatmul.mubr.bf16.gmra.mxu0 %v826
        %v1848 = vpop.f32.mrf.mxu0
        %v1849 = vadd.f32 %v767, %v1848
        %v1850 = vpop.f32.mrf.mxu0
        %v1851 = vadd.f32 %v771, %v1850
        %v1852 = vpop.f32.mrf.mxu0
        %v1853 = vadd.f32 %v767, %v1852
        %v1854 = vpop.f32.mrf.mxu0
        %v1855 = vadd.f32 %v771, %v1854
        %1856 = vdwg.mxu0
        %1857 = vmatprep.subr.bf16.mxu0 %v1513
        %1858 = vmatpush1.bf16.msra.mxu0 %v1512
        %1859 = vmatprep.subr.bf16.mxu0 %v1509
        %1860 = vmatpush1.bf16.msra.mxu0 %v1508
        %1861 = vmatprep.subr.bf16.mxu0 %v1505
        %1862 = vmatpush1.bf16.msra.mxu0 %v1504
        %1863 = vmatprep.subr.bf16.mxu0 %v1501
        %1864 = vmatpush1.bf16.msra.mxu0 %v1500
        %1865 = vmatprep.subr.bf16.mxu0 %v1497
        %1866 = vmatpush1.bf16.msra.mxu0 %v1496
        %1867 = vmatprep.subr.bf16.mxu0 %v1493
        %1868 = vmatpush1.bf16.msra.mxu0 %v1492
        %1869 = vmatprep.subr.bf16.mxu0 %v1489
        %1870 = vmatpush1.bf16.msra.mxu0 %v1488
        %1871 = vmatprep.subr.bf16.mxu0 %v1485
        %1872 = vmatpush1.bf16.msra.mxu0 %v1484
        %1873 = vmatprep.subr.bf16.mxu0 %v1545
        %1874 = vmatpush2.bf16.msra.mxu0 %v1544
        %1875 = vmatprep.subr.bf16.mxu0 %v1541
        %1876 = vmatpush2.bf16.msra.mxu0 %v1540
        %1877 = vmatprep.subr.bf16.mxu0 %v1537
        %1878 = vmatpush2.bf16.msra.mxu0 %v1536
        %1879 = vmatprep.subr.bf16.mxu0 %v1533
        %1880 = vmatpush2.bf16.msra.mxu0 %v1532
        %1881 = vmatprep.subr.bf16.mxu0 %v1529
        %1882 = vmatpush2.bf16.msra.mxu0 %v1528
        %1883 = vmatprep.subr.bf16.mxu0 %v1525
        %1884 = vmatpush2.bf16.msra.mxu0 %v1524
        %1885 = vmatprep.subr.bf16.mxu0 %v1521
        %1886 = vmatpush2.bf16.msra.mxu0 %v1520
        %1887 = vmatprep.subr.bf16.mxu0 %v1517
        %1888 = vmatpush2.bf16.msra.mxu0 %v1516
        %1889 = vmatprep.mubr.bf16.mxu0 %v823
        %1890 = vmatmul.mubr.bf16.gmra.mxu0 %v822
        %v1891 = vpop.f32.mrf.mxu0
        %v1892 = vadd.f32 %v1839, %v1891
        %v1893 = vpop.f32.mrf.mxu0
        %v1894 = vadd.f32 %v1841, %v1893
        %v1895 = vpop.f32.mrf.mxu0
        %v1896 = vadd.f32 %v1843, %v1895
        %v1897 = vpop.f32.mrf.mxu0
        %v1898 = vadd.f32 %v1845, %v1897
        %1899 = vmatprep.mubr.bf16.mxu0 %v829
        %1900 = vmatmul.mubr.bf16.gmra.mxu0 %v828
        %v1901 = vpop.f32.mrf.mxu0
        %v1902 = vadd.f32 %v1849, %v1901
        %v1903 = vpop.f32.mrf.mxu0
        %v1904 = vadd.f32 %v1851, %v1903
        %v1905 = vpop.f32.mrf.mxu0
        %v1906 = vadd.f32 %v1853, %v1905
        %v1907 = vpop.f32.mrf.mxu0
        %v1908 = vadd.f32 %v1855, %v1907
        %1909 = vdwg.mxu0
        %1910 = vmatprep.subr.bf16.mxu0 %v1577
        %1911 = vmatpush1.bf16.msra.mxu0 %v1576
        %1912 = vmatprep.subr.bf16.mxu0 %v1573
        %1913 = vmatpush1.bf16.msra.mxu0 %v1572
        %1914 = vmatprep.subr.bf16.mxu0 %v1569
        %1915 = vmatpush1.bf16.msra.mxu0 %v1568
        %1916 = vmatprep.subr.bf16.mxu0 %v1565
        %1917 = vmatpush1.bf16.msra.mxu0 %v1564
        %1918 = vmatprep.subr.bf16.mxu0 %v1561
        %1919 = vmatpush1.bf16.msra.mxu0 %v1560
        %1920 = vmatprep.subr.bf16.mxu0 %v1557
        %1921 = vmatpush1.bf16.msra.mxu0 %v1556
        %1922 = vmatprep.subr.bf16.mxu0 %v1553
        %1923 = vmatpush1.bf16.msra.mxu0 %v1552
        %1924 = vmatprep.subr.bf16.mxu0 %v1549
        %1925 = vmatpush1.bf16.msra.mxu0 %v1548
        %1926 = vmatprep.subr.bf16.mxu0 %v1609
        %1927 = vmatpush2.bf16.msra.mxu0 %v1608
        %1928 = vmatprep.subr.bf16.mxu0 %v1605
        %1929 = vmatpush2.bf16.msra.mxu0 %v1604
        %1930 = vmatprep.subr.bf16.mxu0 %v1601
        %1931 = vmatpush2.bf16.msra.mxu0 %v1600
        %1932 = vmatprep.subr.bf16.mxu0 %v1597
        %1933 = vmatpush2.bf16.msra.mxu0 %v1596
        %1934 = vmatprep.subr.bf16.mxu0 %v1593
        %1935 = vmatpush2.bf16.msra.mxu0 %v1592
        %1936 = vmatprep.subr.bf16.mxu0 %v1589
        %1937 = vmatpush2.bf16.msra.mxu0 %v1588
        %1938 = vmatprep.subr.bf16.mxu0 %v1585
        %1939 = vmatpush2.bf16.msra.mxu0 %v1584
        %1940 = vmatprep.subr.bf16.mxu0 %v1581
        %1941 = vmatpush2.bf16.msra.mxu0 %v1580
        %1942 = vmatprep.mubr.bf16.mxu0 %v825
        %1943 = vmatmul.mubr.bf16.gmra.mxu0 %v824
        %v1944 = vpop.f32.mrf.mxu0
        %v1945 = vadd.f32 %v1892, %v1944
        %v1946 = vpop.f32.mrf.mxu0
        %v1947 = vadd.f32 %v1894, %v1946
        %v1948 = vpop.f32.mrf.mxu0
        %v1949 = vadd.f32 %v1896, %v1948
        %v1950 = vpop.f32.mrf.mxu0
        %v1951 = vadd.f32 %v1898, %v1950
        %1952 = vmatprep.mubr.bf16.mxu0 %v831
        %1953 = vmatmul.mubr.bf16.gmra.mxu0 %v830
        %v1954 = vpop.f32.mrf.mxu0
        %v1955 = vadd.f32 %v1902, %v1954
        %v1956 = vpop.f32.mrf.mxu0
        %v1957 = vadd.f32 %v1904, %v1956
        %v1958 = vpop.f32.mrf.mxu0
        %v1959 = vadd.f32 %v1906, %v1958
        %v1960 = vpop.f32.mrf.mxu0
        %v1961 = vadd.f32 %v1908, %v1960
        %1962 = vdwg.mxu0
        %1963 = vmatprep.subr.bf16.mxu0 %v1451
        %1964 = vmatpush1.bf16.msra.mxu0 %v1450
        %1965 = vmatprep.subr.bf16.mxu0 %v1447
        %1966 = vmatpush1.bf16.msra.mxu0 %v1446
        %1967 = vmatprep.subr.bf16.mxu0 %v1443
        %1968 = vmatpush1.bf16.msra.mxu0 %v1442
        %1969 = vmatprep.subr.bf16.mxu0 %v1439
        %1970 = vmatpush1.bf16.msra.mxu0 %v1438
        %1971 = vmatprep.subr.bf16.mxu0 %v1435
        %1972 = vmatpush1.bf16.msra.mxu0 %v1434
        %1973 = vmatprep.subr.bf16.mxu0 %v1431
        %1974 = vmatpush1.bf16.msra.mxu0 %v1430
        %1975 = vmatprep.subr.bf16.mxu0 %v1427
        %1976 = vmatpush1.bf16.msra.mxu0 %v1426
        %1977 = vmatprep.subr.bf16.mxu0 %v1423
        %1978 = vmatpush1.bf16.msra.mxu0 %v1422
        %1979 = vmatprep.subr.bf16.mxu0 %v1483
        %1980 = vmatpush2.bf16.msra.mxu0 %v1482
        %1981 = vmatprep.subr.bf16.mxu0 %v1479
        %1982 = vmatpush2.bf16.msra.mxu0 %v1478
        %1983 = vmatprep.subr.bf16.mxu0 %v1475
        %1984 = vmatpush2.bf16.msra.mxu0 %v1474
        %1985 = vmatprep.subr.bf16.mxu0 %v1471
        %1986 = vmatpush2.bf16.msra.mxu0 %v1470
        %1987 = vmatprep.subr.bf16.mxu0 %v1467
        %1988 = vmatpush2.bf16.msra.mxu0 %v1466
        %1989 = vmatprep.subr.bf16.mxu0 %v1463
        %1990 = vmatpush2.bf16.msra.mxu0 %v1462
        %1991 = vmatprep.subr.bf16.mxu0 %v1459
        %1992 = vmatpush2.bf16.msra.mxu0 %v1458
        %1993 = vmatprep.subr.bf16.mxu0 %v1455
        %1994 = vmatpush2.bf16.msra.mxu0 %v1454
        %1995 = vmatprep.mubr.bf16.mxu0 %v821
        %1996 = vmatmul.mubr.bf16.gmra.mxu0 %v820
        %v1997 = vpop.f32.mrf.mxu0
        %v1998 = vadd.f32 %v775, %v1997
        %v1999 = vpop.f32.mrf.mxu0
        %v2000 = vadd.f32 %v779, %v1999
        %v2001 = vpop.f32.mrf.mxu0
        %v2002 = vadd.f32 %v775, %v2001
        %v2003 = vpop.f32.mrf.mxu0
        %v2004 = vadd.f32 %v779, %v2003
        %2005 = vmatprep.mubr.bf16.mxu0 %v827
        %2006 = vmatmul.mubr.bf16.gmra.mxu0 %v826
        %v2007 = vpop.f32.mrf.mxu0
        %v2008 = vadd.f32 %v775, %v2007
        %v2009 = vpop.f32.mrf.mxu0
        %v2010 = vadd.f32 %v779, %v2009
        %v2011 = vpop.f32.mrf.mxu0
        %v2012 = vadd.f32 %v775, %v2011
        %v2013 = vpop.f32.mrf.mxu0
        %v2014 = vadd.f32 %v779, %v2013
        %2015 = vdwg.mxu0
        %2016 = vmatprep.subr.bf16.mxu0 %v1515
        %2017 = vmatpush1.bf16.msra.mxu0 %v1514
        %2018 = vmatprep.subr.bf16.mxu0 %v1511
        %2019 = vmatpush1.bf16.msra.mxu0 %v1510
        %2020 = vmatprep.subr.bf16.mxu0 %v1507
        %2021 = vmatpush1.bf16.msra.mxu0 %v1506
        %2022 = vmatprep.subr.bf16.mxu0 %v1503
        %2023 = vmatpush1.bf16.msra.mxu0 %v1502
        %2024 = vmatprep.subr.bf16.mxu0 %v1499
        %2025 = vmatpush1.bf16.msra.mxu0 %v1498
        %2026 = vmatprep.subr.bf16.mxu0 %v1495
        %2027 = vmatpush1.bf16.msra.mxu0 %v1494
        %2028 = vmatprep.subr.bf16.mxu0 %v1491
        %2029 = vmatpush1.bf16.msra.mxu0 %v1490
        %2030 = vmatprep.subr.bf16.mxu0 %v1487
        %2031 = vmatpush1.bf16.msra.mxu0 %v1486
        %2032 = vmatprep.subr.bf16.mxu0 %v1547
        %2033 = vmatpush2.bf16.msra.mxu0 %v1546
        %2034 = vmatprep.subr.bf16.mxu0 %v1543
        %2035 = vmatpush2.bf16.msra.mxu0 %v1542
        %2036 = vmatprep.subr.bf16.mxu0 %v1539
        %2037 = vmatpush2.bf16.msra.mxu0 %v1538
        %2038 = vmatprep.subr.bf16.mxu0 %v1535
        %2039 = vmatpush2.bf16.msra.mxu0 %v1534
        %2040 = vmatprep.subr.bf16.mxu0 %v1531
        %2041 = vmatpush2.bf16.msra.mxu0 %v1530
        %2042 = vmatprep.subr.bf16.mxu0 %v1527
        %2043 = vmatpush2.bf16.msra.mxu0 %v1526
        %2044 = vmatprep.subr.bf16.mxu0 %v1523
        %2045 = vmatpush2.bf16.msra.mxu0 %v1522
        %2046 = vmatprep.subr.bf16.mxu0 %v1519
        %2047 = vmatpush2.bf16.msra.mxu0 %v1518
        %2048 = vmatprep.mubr.bf16.mxu0 %v823
        %2049 = vmatmul.mubr.bf16.gmra.mxu0 %v822
        %v2050 = vpop.f32.mrf.mxu0
        %v2051 = vadd.f32 %v1998, %v2050
        %v2052 = vpop.f32.mrf.mxu0
        %v2053 = vadd.f32 %v2000, %v2052
        %v2054 = vpop.f32.mrf.mxu0
        %v2055 = vadd.f32 %v2002, %v2054
        %v2056 = vpop.f32.mrf.mxu0
        %v2057 = vadd.f32 %v2004, %v2056
        %2058 = vmatprep.mubr.bf16.mxu0 %v829
        %2059 = vmatmul.mubr.bf16.gmra.mxu0 %v828
        %v2060 = vpop.f32.mrf.mxu0
        %v2061 = vadd.f32 %v2008, %v2060
        %v2062 = vpop.f32.mrf.mxu0
        %v2063 = vadd.f32 %v2010, %v2062
        %v2064 = vpop.f32.mrf.mxu0
        %v2065 = vadd.f32 %v2012, %v2064
        %v2066 = vpop.f32.mrf.mxu0
        %v2067 = vadd.f32 %v2014, %v2066
        %2068 = vdwg.mxu0
        %2069 = vmatprep.subr.bf16.mxu0 %v1579
        %2070 = vmatpush1.bf16.msra.mxu0 %v1578
        %2071 = vmatprep.subr.bf16.mxu0 %v1575
        %2072 = vmatpush1.bf16.msra.mxu0 %v1574
        %2073 = vmatprep.subr.bf16.mxu0 %v1571
        %2074 = vmatpush1.bf16.msra.mxu0 %v1570
        %2075 = vmatprep.subr.bf16.mxu0 %v1567
        %2076 = vmatpush1.bf16.msra.mxu0 %v1566
        %2077 = vmatprep.subr.bf16.mxu0 %v1563
        %2078 = vmatpush1.bf16.msra.mxu0 %v1562
        %2079 = vmatprep.subr.bf16.mxu0 %v1559
        %2080 = vmatpush1.bf16.msra.mxu0 %v1558
        %2081 = vmatprep.subr.bf16.mxu0 %v1555
        %2082 = vmatpush1.bf16.msra.mxu0 %v1554
        %2083 = vmatprep.subr.bf16.mxu0 %v1551
        %2084 = vmatpush1.bf16.msra.mxu0 %v1550
        %2085 = vmatprep.subr.bf16.mxu0 %v1611
        %2086 = vmatpush2.bf16.msra.mxu0 %v1610
        %2087 = vmatprep.subr.bf16.mxu0 %v1607
        %2088 = vmatpush2.bf16.msra.mxu0 %v1606
        %2089 = vmatprep.subr.bf16.mxu0 %v1603
        %2090 = vmatpush2.bf16.msra.mxu0 %v1602
        %2091 = vmatprep.subr.bf16.mxu0 %v1599
        %2092 = vmatpush2.bf16.msra.mxu0 %v1598
        %2093 = vmatprep.subr.bf16.mxu0 %v1595
        %2094 = vmatpush2.bf16.msra.mxu0 %v1594
        %2095 = vmatprep.subr.bf16.mxu0 %v1591
        %2096 = vmatpush2.bf16.msra.mxu0 %v1590
        %2097 = vmatprep.subr.bf16.mxu0 %v1587
        %2098 = vmatpush2.bf16.msra.mxu0 %v1586
        %2099 = vmatprep.subr.bf16.mxu0 %v1583
        %2100 = vmatpush2.bf16.msra.mxu0 %v1582
        %2101 = vmatprep.mubr.bf16.mxu0 %v825
        %2102 = vmatmul.mubr.bf16.gmra.mxu0 %v824
        %v2103 = vpop.f32.mrf.mxu0
        %v2104 = vadd.f32 %v2051, %v2103
        %v2105 = vpop.f32.mrf.mxu0
        %v2106 = vadd.f32 %v2053, %v2105
        %v2107 = vpop.f32.mrf.mxu0
        %v2108 = vadd.f32 %v2055, %v2107
        %v2109 = vpop.f32.mrf.mxu0
        %v2110 = vadd.f32 %v2057, %v2109
        %2111 = vmatprep.mubr.bf16.mxu0 %v831
        %2112 = vmatmul.mubr.bf16.gmra.mxu0 %v830
        %v2113 = vpop.f32.mrf.mxu0
        %v2114 = vadd.f32 %v2061, %v2113
        %v2115 = vpop.f32.mrf.mxu0
        %v2116 = vadd.f32 %v2063, %v2115
        %v2117 = vpop.f32.mrf.mxu0
        %v2118 = vadd.f32 %v2065, %v2117
        %v2119 = vpop.f32.mrf.mxu0
        %v2120 = vadd.f32 %v2067, %v2119
        %2121 = vdwg.mxu0
        %v2122 = vmax.f32 %v1945, 0.0
        %v2123 = vmax.f32 %v1947, 0.0
        %v2124 = vmax.f32 %v2104, 0.0
        %v2125 = vmax.f32 %v2106, 0.0
        %v2126 = vmax.f32 %v1949, 0.0
        %v2127 = vmax.f32 %v1951, 0.0
        %v2128 = vmax.f32 %v2108, 0.0
        %v2129 = vmax.f32 %v2110, 0.0
        %v2130 = vmax.f32 %v1955, 0.0
        %v2131 = vmax.f32 %v1957, 0.0
        %v2132 = vmax.f32 %v2114, 0.0
        %v2133 = vmax.f32 %v2116, 0.0
        %v2134 = vmax.f32 %v1959, 0.0
        %v2135 = vmax.f32 %v1961, 0.0
        %v2136 = vmax.f32 %v2118, 0.0
        %v2137 = vmax.f32 %v2120, 0.0
        %v2138 = vpack.c.bf16 %v2126, %v2122
        %v2139 = vpack.c.bf16 %v2127, %v2123
        %v2140 = vpack.c.bf16 %v2128, %v2124
        %v2141 = vpack.c.bf16 %v2129, %v2125
        %v2142 = vpack.c.bf16 %v2134, %v2130
        %v2143 = vpack.c.bf16 %v2135, %v2131
        %v2144 = vpack.c.bf16 %v2136, %v2132
        %v2145 = vpack.c.bf16 %v2137, %v2133
        %v2146 = vld [vmem:[%s3] sm:$0xff]
        %v2147 = vld [vmem:[%s3 + $0x8] sm:$0xff]
        %v2148 = vld [vmem:[%s3 + $0x10] sm:$0xff]
        %v2149 = vld [vmem:[%s3 + $0x18] sm:$0xff]
        %v2150 = vld [vmem:[%s3 + $0x20] sm:$0xff]
        %v2151 = vld [vmem:[%s3 + $0x28] sm:$0xff]
        %v2152 = vld [vmem:[%s3 + $0x30] sm:$0xff]
        %v2153 = vld [vmem:[%s3 + $0x38] sm:$0xff]
        %v2154 = vld [vmem:[%s3 + $0x40] sm:$0xff]
        %v2155 = vld [vmem:[%s3 + $0x48] sm:$0xff]
        %v2156 = vld [vmem:[%s3 + $0x50] sm:$0xff]
        %v2157 = vld [vmem:[%s3 + $0x58] sm:$0xff]
        %v2158 = vld [vmem:[%s3 + $0x60] sm:$0xff]
        %v2159 = vld [vmem:[%s3 + $0x68] sm:$0xff]
        %v2160 = vld [vmem:[%s3 + $0x70] sm:$0xff]
        %v2161 = vld [vmem:[%s3 + $0x78] sm:$0xff]
        %v2162 = vld [vmem:[%s3 + $0x80] sm:$0xff]
        %v2163 = vld [vmem:[%s3 + $0x88] sm:$0xff]
        %v2164 = vld [vmem:[%s3 + $0x90] sm:$0xff]
        %v2165 = vld [vmem:[%s3 + $0x98] sm:$0xff]
        %v2166 = vld [vmem:[%s3 + $0xa0] sm:$0xff]
        %v2167 = vld [vmem:[%s3 + $0xa8] sm:$0xff]
        %v2168 = vld [vmem:[%s3 + $0xb0] sm:$0xff]
        %v2169 = vld [vmem:[%s3 + $0xb8] sm:$0xff]
        %v2170 = vld [vmem:[%s3 + $0xc0] sm:$0xff]
        %v2171 = vld [vmem:[%s3 + $0xc8] sm:$0xff]
        %v2172 = vld [vmem:[%s3 + $0xd0] sm:$0xff]
        %v2173 = vld [vmem:[%s3 + $0xd8] sm:$0xff]
        %v2174 = vld [vmem:[%s3 + $0xe0] sm:$0xff]
        %v2175 = vld [vmem:[%s3 + $0xe8] sm:$0xff]
        %v2176 = vld [vmem:[%s3 + $0xf0] sm:$0xff]
        %v2177 = vld [vmem:[%s3 + $0xf8] sm:$0xff]
        %v2178 = vld [vmem:[%s3 + $0x100] sm:$0xff]
        %v2179 = vld [vmem:[%s3 + $0x108] sm:$0xff]
        %v2180 = vld [vmem:[%s3 + $0x110] sm:$0xff]
        %v2181 = vld [vmem:[%s3 + $0x118] sm:$0xff]
        %v2182 = vld [vmem:[%s3 + $0x120] sm:$0xff]
        %v2183 = vld [vmem:[%s3 + $0x128] sm:$0xff]
        %v2184 = vld [vmem:[%s3 + $0x130] sm:$0xff]
        %v2185 = vld [vmem:[%s3 + $0x138] sm:$0xff]
        %v2186 = vld [vmem:[%s3 + $0x140] sm:$0xff]
        %v2187 = vld [vmem:[%s3 + $0x148] sm:$0xff]
        %v2188 = vld [vmem:[%s3 + $0x150] sm:$0xff]
        %v2189 = vld [vmem:[%s3 + $0x158] sm:$0xff]
        %v2190 = vld [vmem:[%s3 + $0x160] sm:$0xff]
        %v2191 = vld [vmem:[%s3 + $0x168] sm:$0xff]
        %v2192 = vld [vmem:[%s3 + $0x170] sm:$0xff]
        %v2193 = vld [vmem:[%s3 + $0x178] sm:$0xff]
        %v2194 = vld [vmem:[%s3 + $0x180] sm:$0xff]
        %v2195 = vld [vmem:[%s3 + $0x188] sm:$0xff]
        %v2196 = vld [vmem:[%s3 + $0x190] sm:$0xff]
        %v2197 = vld [vmem:[%s3 + $0x198] sm:$0xff]
        %v2198 = vld [vmem:[%s3 + $0x1a0] sm:$0xff]
        %v2199 = vld [vmem:[%s3 + $0x1a8] sm:$0xff]
        %v2200 = vld [vmem:[%s3 + $0x1b0] sm:$0xff]
        %v2201 = vld [vmem:[%s3 + $0x1b8] sm:$0xff]
        %v2202 = vld [vmem:[%s3 + $0x1c0] sm:$0xff]
        %v2203 = vld [vmem:[%s3 + $0x1c8] sm:$0xff]
        %v2204 = vld [vmem:[%s3 + $0x1d0] sm:$0xff]
        %v2205 = vld [vmem:[%s3 + $0x1d8] sm:$0xff]
        %v2206 = vld [vmem:[%s3 + $0x1e0] sm:$0xff]
        %v2207 = vld [vmem:[%s3 + $0x1e8] sm:$0xff]
        %v2208 = vld [vmem:[%s3 + $0x1f0] sm:$0xff]
        %v2209 = vld [vmem:[%s3 + $0x1f8] sm:$0xff]
        %v2210 = vld [vmem:[%s4] sm:$0x3]
        %v2212 = vlaneseq
        %v2213 = vshrl.u32 %v2212, 7
        %v2214 = vsub.s32 0, %v2213
        %v2215 = vrot.slane %v2210, %v2214
        %v2216 = vlaneseq
        %v2217 = vshrl.u32 %v2216, 7
        %v2218 = vsub.s32 1, %v2217
        %v2219 = vrot.slane %v2210, %v2218
        %v2286 = vunpack.c.l.b16 %v2146
        %v2287 = vunpack.c.h.b16 %v2146
        %v2288 = vunpack.c.l.b16 %v2147
        %v2289 = vunpack.c.h.b16 %v2147
        %v2290 = vunpack.c.l.b16 %v2148
        %v2291 = vunpack.c.h.b16 %v2148
        %v2292 = vunpack.c.l.b16 %v2149
        %v2293 = vunpack.c.h.b16 %v2149
        %v2294 = vunpack.c.l.b16 %v2150
        %v2295 = vunpack.c.h.b16 %v2150
        %v2296 = vunpack.c.l.b16 %v2151
        %v2297 = vunpack.c.h.b16 %v2151
        %v2298 = vunpack.c.l.b16 %v2152
        %v2299 = vunpack.c.h.b16 %v2152
        %v2300 = vunpack.c.l.b16 %v2153
        %v2301 = vunpack.c.h.b16 %v2153
        %v2302 = vunpack.c.l.b16 %v2154
        %v2303 = vunpack.c.h.b16 %v2154
        %v2304 = vunpack.c.l.b16 %v2155
        %v2305 = vunpack.c.h.b16 %v2155
        %v2306 = vunpack.c.l.b16 %v2156
        %v2307 = vunpack.c.h.b16 %v2156
        %v2308 = vunpack.c.l.b16 %v2157
        %v2309 = vunpack.c.h.b16 %v2157
        %v2310 = vunpack.c.l.b16 %v2158
        %v2311 = vunpack.c.h.b16 %v2158
        %v2312 = vunpack.c.l.b16 %v2159
        %v2313 = vunpack.c.h.b16 %v2159
        %v2314 = vunpack.c.l.b16 %v2160
        %v2315 = vunpack.c.h.b16 %v2160
        %v2316 = vunpack.c.l.b16 %v2161
        %v2317 = vunpack.c.h.b16 %v2161
        %v2318 = vunpack.c.l.b16 %v2162
        %v2319 = vunpack.c.h.b16 %v2162
        %v2320 = vunpack.c.l.b16 %v2163
        %v2321 = vunpack.c.h.b16 %v2163
        %v2322 = vunpack.c.l.b16 %v2164
        %v2323 = vunpack.c.h.b16 %v2164
        %v2324 = vunpack.c.l.b16 %v2165
        %v2325 = vunpack.c.h.b16 %v2165
        %v2326 = vunpack.c.l.b16 %v2166
        %v2327 = vunpack.c.h.b16 %v2166
        %v2328 = vunpack.c.l.b16 %v2167
        %v2329 = vunpack.c.h.b16 %v2167
        %v2330 = vunpack.c.l.b16 %v2168
        %v2331 = vunpack.c.h.b16 %v2168
        %v2332 = vunpack.c.l.b16 %v2169
        %v2333 = vunpack.c.h.b16 %v2169
        %v2334 = vunpack.c.l.b16 %v2170
        %v2335 = vunpack.c.h.b16 %v2170
        %v2336 = vunpack.c.l.b16 %v2171
        %v2337 = vunpack.c.h.b16 %v2171
        %v2338 = vunpack.c.l.b16 %v2172
        %v2339 = vunpack.c.h.b16 %v2172
        %v2340 = vunpack.c.l.b16 %v2173
        %v2341 = vunpack.c.h.b16 %v2173
        %v2342 = vunpack.c.l.b16 %v2174
        %v2343 = vunpack.c.h.b16 %v2174
        %v2344 = vunpack.c.l.b16 %v2175
        %v2345 = vunpack.c.h.b16 %v2175
        %v2346 = vunpack.c.l.b16 %v2176
        %v2347 = vunpack.c.h.b16 %v2176
        %v2348 = vunpack.c.l.b16 %v2177
        %v2349 = vunpack.c.h.b16 %v2177
        %v2350 = vunpack.c.l.b16 %v2178
        %v2351 = vunpack.c.h.b16 %v2178
        %v2352 = vunpack.c.l.b16 %v2179
        %v2353 = vunpack.c.h.b16 %v2179
        %v2354 = vunpack.c.l.b16 %v2180
        %v2355 = vunpack.c.h.b16 %v2180
        %v2356 = vunpack.c.l.b16 %v2181
        %v2357 = vunpack.c.h.b16 %v2181
        %v2358 = vunpack.c.l.b16 %v2182
        %v2359 = vunpack.c.h.b16 %v2182
        %v2360 = vunpack.c.l.b16 %v2183
        %v2361 = vunpack.c.h.b16 %v2183
        %v2362 = vunpack.c.l.b16 %v2184
        %v2363 = vunpack.c.h.b16 %v2184
        %v2364 = vunpack.c.l.b16 %v2185
        %v2365 = vunpack.c.h.b16 %v2185
        %v2366 = vunpack.c.l.b16 %v2186
        %v2367 = vunpack.c.h.b16 %v2186
        %v2368 = vunpack.c.l.b16 %v2187
        %v2369 = vunpack.c.h.b16 %v2187
        %v2370 = vunpack.c.l.b16 %v2188
        %v2371 = vunpack.c.h.b16 %v2188
        %v2372 = vunpack.c.l.b16 %v2189
        %v2373 = vunpack.c.h.b16 %v2189
        %v2374 = vunpack.c.l.b16 %v2190
        %v2375 = vunpack.c.h.b16 %v2190
        %v2376 = vunpack.c.l.b16 %v2191
        %v2377 = vunpack.c.h.b16 %v2191
        %v2378 = vunpack.c.l.b16 %v2192
        %v2379 = vunpack.c.h.b16 %v2192
        %v2380 = vunpack.c.l.b16 %v2193
        %v2381 = vunpack.c.h.b16 %v2193
        %v2382 = vunpack.c.l.b16 %v2194
        %v2383 = vunpack.c.h.b16 %v2194
        %v2384 = vunpack.c.l.b16 %v2195
        %v2385 = vunpack.c.h.b16 %v2195
        %v2386 = vunpack.c.l.b16 %v2196
        %v2387 = vunpack.c.h.b16 %v2196
        %v2388 = vunpack.c.l.b16 %v2197
        %v2389 = vunpack.c.h.b16 %v2197
        %v2390 = vunpack.c.l.b16 %v2198
        %v2391 = vunpack.c.h.b16 %v2198
        %v2392 = vunpack.c.l.b16 %v2199
        %v2393 = vunpack.c.h.b16 %v2199
        %v2394 = vunpack.c.l.b16 %v2200
        %v2395 = vunpack.c.h.b16 %v2200
        %v2396 = vunpack.c.l.b16 %v2201
        %v2397 = vunpack.c.h.b16 %v2201
        %v2398 = vunpack.c.l.b16 %v2202
        %v2399 = vunpack.c.h.b16 %v2202
        %v2400 = vunpack.c.l.b16 %v2203
        %v2401 = vunpack.c.h.b16 %v2203
        %v2402 = vunpack.c.l.b16 %v2204
        %v2403 = vunpack.c.h.b16 %v2204
        %v2404 = vunpack.c.l.b16 %v2205
        %v2405 = vunpack.c.h.b16 %v2205
        %v2406 = vunpack.c.l.b16 %v2206
        %v2407 = vunpack.c.h.b16 %v2206
        %v2408 = vunpack.c.l.b16 %v2207
        %v2409 = vunpack.c.h.b16 %v2207
        %v2410 = vunpack.c.l.b16 %v2208
        %v2411 = vunpack.c.h.b16 %v2208
        %v2412 = vunpack.c.l.b16 %v2209
        %v2413 = vunpack.c.h.b16 %v2209
        %v2414 = vpack.c.b16 %v2288, %v2286
        %v2415 = vpack.c.b16 %v2289, %v2287
        %v2416 = vpack.c.b16 %v2292, %v2290
        %v2417 = vpack.c.b16 %v2293, %v2291
        %v2418 = vpack.c.b16 %v2296, %v2294
        %v2419 = vpack.c.b16 %v2297, %v2295
        %v2420 = vpack.c.b16 %v2300, %v2298
        %v2421 = vpack.c.b16 %v2301, %v2299
        %v2422 = vpack.c.b16 %v2304, %v2302
        %v2423 = vpack.c.b16 %v2305, %v2303
        %v2424 = vpack.c.b16 %v2308, %v2306
        %v2425 = vpack.c.b16 %v2309, %v2307
        %v2426 = vpack.c.b16 %v2312, %v2310
        %v2427 = vpack.c.b16 %v2313, %v2311
        %v2428 = vpack.c.b16 %v2316, %v2314
        %v2429 = vpack.c.b16 %v2317, %v2315
        %v2430 = vpack.c.b16 %v2320, %v2318
        %v2431 = vpack.c.b16 %v2321, %v2319
        %v2432 = vpack.c.b16 %v2324, %v2322
        %v2433 = vpack.c.b16 %v2325, %v2323
        %v2434 = vpack.c.b16 %v2328, %v2326
        %v2435 = vpack.c.b16 %v2329, %v2327
        %v2436 = vpack.c.b16 %v2332, %v2330
        %v2437 = vpack.c.b16 %v2333, %v2331
        %v2438 = vpack.c.b16 %v2336, %v2334
        %v2439 = vpack.c.b16 %v2337, %v2335
        %v2440 = vpack.c.b16 %v2340, %v2338
        %v2441 = vpack.c.b16 %v2341, %v2339
        %v2442 = vpack.c.b16 %v2344, %v2342
        %v2443 = vpack.c.b16 %v2345, %v2343
        %v2444 = vpack.c.b16 %v2348, %v2346
        %v2445 = vpack.c.b16 %v2349, %v2347
        %v2446 = vpack.c.b16 %v2352, %v2350
        %v2447 = vpack.c.b16 %v2353, %v2351
        %v2448 = vpack.c.b16 %v2356, %v2354
        %v2449 = vpack.c.b16 %v2357, %v2355
        %v2450 = vpack.c.b16 %v2360, %v2358
        %v2451 = vpack.c.b16 %v2361, %v2359
        %v2452 = vpack.c.b16 %v2364, %v2362
        %v2453 = vpack.c.b16 %v2365, %v2363
        %v2454 = vpack.c.b16 %v2368, %v2366
        %v2455 = vpack.c.b16 %v2369, %v2367
        %v2456 = vpack.c.b16 %v2372, %v2370
        %v2457 = vpack.c.b16 %v2373, %v2371
        %v2458 = vpack.c.b16 %v2376, %v2374
        %v2459 = vpack.c.b16 %v2377, %v2375
        %v2460 = vpack.c.b16 %v2380, %v2378
        %v2461 = vpack.c.b16 %v2381, %v2379
        %v2462 = vpack.c.b16 %v2384, %v2382
        %v2463 = vpack.c.b16 %v2385, %v2383
        %v2464 = vpack.c.b16 %v2388, %v2386
        %v2465 = vpack.c.b16 %v2389, %v2387
        %v2466 = vpack.c.b16 %v2392, %v2390
        %v2467 = vpack.c.b16 %v2393, %v2391
        %v2468 = vpack.c.b16 %v2396, %v2394
        %v2469 = vpack.c.b16 %v2397, %v2395
        %v2470 = vpack.c.b16 %v2400, %v2398
        %v2471 = vpack.c.b16 %v2401, %v2399
        %v2472 = vpack.c.b16 %v2404, %v2402
        %v2473 = vpack.c.b16 %v2405, %v2403
        %v2474 = vpack.c.b16 %v2408, %v2406
        %v2475 = vpack.c.b16 %v2409, %v2407
        %v2476 = vpack.c.b16 %v2412, %v2410
        %v2477 = vpack.c.b16 %v2413, %v2411
        %2542 = vmatprep.subr.bf16.mxu0 %v2429
        %2543 = vmatpush1.bf16.msra.mxu0 %v2428
        %2544 = vmatprep.subr.bf16.mxu0 %v2427
        %2545 = vmatpush1.bf16.msra.mxu0 %v2426
        %2546 = vmatprep.subr.bf16.mxu0 %v2425
        %2547 = vmatpush1.bf16.msra.mxu0 %v2424
        %2548 = vmatprep.subr.bf16.mxu0 %v2423
        %2549 = vmatpush1.bf16.msra.mxu0 %v2422
        %2550 = vmatprep.subr.bf16.mxu0 %v2421
        %2551 = vmatpush1.bf16.msra.mxu0 %v2420
        %2552 = vmatprep.subr.bf16.mxu0 %v2419
        %2553 = vmatpush1.bf16.msra.mxu0 %v2418
        %2554 = vmatprep.subr.bf16.mxu0 %v2417
        %2555 = vmatpush1.bf16.msra.mxu0 %v2416
        %2556 = vmatprep.subr.bf16.mxu0 %v2415
        %2557 = vmatpush1.bf16.msra.mxu0 %v2414
        %2558 = vmatprep.subr.bf16.mxu0 %v2445
        %2559 = vmatpush2.bf16.msra.mxu0 %v2444
        %2560 = vmatprep.subr.bf16.mxu0 %v2443
        %2561 = vmatpush2.bf16.msra.mxu0 %v2442
        %2562 = vmatprep.subr.bf16.mxu0 %v2441
        %2563 = vmatpush2.bf16.msra.mxu0 %v2440
        %2564 = vmatprep.subr.bf16.mxu0 %v2439
        %2565 = vmatpush2.bf16.msra.mxu0 %v2438
        %2566 = vmatprep.subr.bf16.mxu0 %v2437
        %2567 = vmatpush2.bf16.msra.mxu0 %v2436
        %2568 = vmatprep.subr.bf16.mxu0 %v2435
        %2569 = vmatpush2.bf16.msra.mxu0 %v2434
        %2570 = vmatprep.subr.bf16.mxu0 %v2433
        %2571 = vmatpush2.bf16.msra.mxu0 %v2432
        %2572 = vmatprep.subr.bf16.mxu0 %v2431
        %2573 = vmatpush2.bf16.msra.mxu0 %v2430
        %2574 = vmatprep.mubr.bf16.mxu0 %v2139
        %2575 = vmatmul.mubr.bf16.gmra.mxu0 %v2138
        %v2576 = vpop.f32.mrf.mxu0
        %v2577 = vadd.f32 %v2215, %v2576
        %v2578 = vpop.f32.mrf.mxu0
        %v2579 = vadd.f32 %v2219, %v2578
        %v2580 = vpop.f32.mrf.mxu0
        %v2581 = vadd.f32 %v2215, %v2580
        %v2582 = vpop.f32.mrf.mxu0
        %v2583 = vadd.f32 %v2219, %v2582
        %2584 = vmatprep.mubr.bf16.mxu0 %v2143
        %2585 = vmatmul.mubr.bf16.gmra.mxu0 %v2142
        %v2586 = vpop.f32.mrf.mxu0
        %v2587 = vadd.f32 %v2215, %v2586
        %v2588 = vpop.f32.mrf.mxu0
        %v2589 = vadd.f32 %v2219, %v2588
        %v2590 = vpop.f32.mrf.mxu0
        %v2591 = vadd.f32 %v2215, %v2590
        %v2592 = vpop.f32.mrf.mxu0
        %v2593 = vadd.f32 %v2219, %v2592
        %2594 = vdwg.mxu0
        %2595 = vmatprep.subr.bf16.mxu0 %v2461
        %2596 = vmatpush1.bf16.msra.mxu0 %v2460
        %2597 = vmatprep.subr.bf16.mxu0 %v2459
        %2598 = vmatpush1.bf16.msra.mxu0 %v2458
        %2599 = vmatprep.subr.bf16.mxu0 %v2457
        %2600 = vmatpush1.bf16.msra.mxu0 %v2456
        %2601 = vmatprep.subr.bf16.mxu0 %v2455
        %2602 = vmatpush1.bf16.msra.mxu0 %v2454
        %2603 = vmatprep.subr.bf16.mxu0 %v2453
        %2604 = vmatpush1.bf16.msra.mxu0 %v2452
        %2605 = vmatprep.subr.bf16.mxu0 %v2451
        %2606 = vmatpush1.bf16.msra.mxu0 %v2450
        %2607 = vmatprep.subr.bf16.mxu0 %v2449
        %2608 = vmatpush1.bf16.msra.mxu0 %v2448
        %2609 = vmatprep.subr.bf16.mxu0 %v2447
        %2610 = vmatpush1.bf16.msra.mxu0 %v2446
        %2611 = vmatprep.subr.bf16.mxu0 %v2477
        %2612 = vmatpush2.bf16.msra.mxu0 %v2476
        %2613 = vmatprep.subr.bf16.mxu0 %v2475
        %2614 = vmatpush2.bf16.msra.mxu0 %v2474
        %2615 = vmatprep.subr.bf16.mxu0 %v2473
        %2616 = vmatpush2.bf16.msra.mxu0 %v2472
        %2617 = vmatprep.subr.bf16.mxu0 %v2471
        %2618 = vmatpush2.bf16.msra.mxu0 %v2470
        %2619 = vmatprep.subr.bf16.mxu0 %v2469
        %2620 = vmatpush2.bf16.msra.mxu0 %v2468
        %2621 = vmatprep.subr.bf16.mxu0 %v2467
        %2622 = vmatpush2.bf16.msra.mxu0 %v2466
        %2623 = vmatprep.subr.bf16.mxu0 %v2465
        %2624 = vmatpush2.bf16.msra.mxu0 %v2464
        %2625 = vmatprep.subr.bf16.mxu0 %v2463
        %2626 = vmatpush2.bf16.msra.mxu0 %v2462
        %2627 = vmatprep.mubr.bf16.mxu0 %v2141
        %2628 = vmatmul.mubr.bf16.gmra.mxu0 %v2140
        %v2629 = vpop.f32.mrf.mxu0
        %v2630 = vadd.f32 %v2577, %v2629
        %v2631 = vpop.f32.mrf.mxu0
        %v2632 = vadd.f32 %v2579, %v2631
        %v2633 = vpop.f32.mrf.mxu0
        %v2634 = vadd.f32 %v2581, %v2633
        %v2635 = vpop.f32.mrf.mxu0
        %v2636 = vadd.f32 %v2583, %v2635
        %2637 = vmatprep.mubr.bf16.mxu0 %v2145
        %2638 = vmatmul.mubr.bf16.gmra.mxu0 %v2144
        %v2639 = vpop.f32.mrf.mxu0
        %v2640 = vadd.f32 %v2587, %v2639
        %v2641 = vpop.f32.mrf.mxu0
        %v2642 = vadd.f32 %v2589, %v2641
        %v2643 = vpop.f32.mrf.mxu0
        %v2644 = vadd.f32 %v2591, %v2643
        %v2645 = vpop.f32.mrf.mxu0
        %v2646 = vadd.f32 %v2593, %v2645
        %2647 = vdwg.mxu0
        %v2648 = vmax.f32 %v2630, 0.0
        %v2649 = vmax.f32 %v2632, 0.0
        %v2650 = vmax.f32 %v2634, 0.0
        %v2651 = vmax.f32 %v2636, 0.0
        %v2652 = vmax.f32 %v2640, 0.0
        %v2653 = vmax.f32 %v2642, 0.0
        %v2654 = vmax.f32 %v2644, 0.0
        %v2655 = vmax.f32 %v2646, 0.0
        %v2656 = vpack.c.bf16 %v2650, %v2648
        %v2657 = vpack.c.bf16 %v2651, %v2649
        %v2658 = vpack.c.bf16 %v2654, %v2652
        %v2659 = vpack.c.bf16 %v2655, %v2653
        %v2660 = vld [vmem:[#allocation5] sm:$0xf]
        %v2661 = vld [vmem:[#allocation5 + $0x4] sm:$0xf]
        %v2662 = vld [vmem:[#allocation5 + $0x8] sm:$0xf]
        %v2663 = vld [vmem:[#allocation5 + $0xc] sm:$0xf]
        %v2664 = vld [vmem:[#allocation5 + $0x10] sm:$0xf]
        %v2665 = vld [vmem:[#allocation5 + $0x14] sm:$0xf]
        %v2666 = vld [vmem:[#allocation5 + $0x18] sm:$0xf]
        %v2667 = vld [vmem:[#allocation5 + $0x1c] sm:$0xf]
        %v2668 = vld [vmem:[#allocation5 + $0x20] sm:$0xf]
        %v2669 = vld [vmem:[#allocation5 + $0x24] sm:$0xf]
        %v2670 = vld [vmem:[#allocation5 + $0x28] sm:$0xf]
        %v2671 = vld [vmem:[#allocation5 + $0x2c] sm:$0xf]
        %v2672 = vld [vmem:[#allocation5 + $0x30] sm:$0xf]
        %v2673 = vld [vmem:[#allocation5 + $0x34] sm:$0xf]
        %v2674 = vld [vmem:[#allocation5 + $0x38] sm:$0xf]
        %v2675 = vld [vmem:[#allocation5 + $0x3c] sm:$0xf]
        %v2676 = vld [vmem:[#allocation5 + $0x40] sm:$0xf]
        %v2677 = vld [vmem:[#allocation5 + $0x44] sm:$0xf]
        %v2678 = vld [vmem:[#allocation5 + $0x48] sm:$0xf]
        %v2679 = vld [vmem:[#allocation5 + $0x4c] sm:$0xf]
        %v2680 = vld [vmem:[#allocation5 + $0x50] sm:$0xf]
        %v2681 = vld [vmem:[#allocation5 + $0x54] sm:$0xf]
        %v2682 = vld [vmem:[#allocation5 + $0x58] sm:$0xf]
        %v2683 = vld [vmem:[#allocation5 + $0x5c] sm:$0xf]
        %v2684 = vld [vmem:[#allocation5 + $0x60] sm:$0xf]
        %v2685 = vld [vmem:[#allocation5 + $0x64] sm:$0xf]
        %v2686 = vld [vmem:[#allocation5 + $0x68] sm:$0xf]
        %v2687 = vld [vmem:[#allocation5 + $0x6c] sm:$0xf]
        %v2688 = vld [vmem:[#allocation5 + $0x70] sm:$0xf]
        %v2689 = vld [vmem:[#allocation5 + $0x74] sm:$0xf]
        %v2690 = vld [vmem:[#allocation5 + $0x78] sm:$0xf]
        %v2691 = vld [vmem:[#allocation5 + $0x7c] sm:$0xf]
        %v2692 = vld [vmem:[%s6] sm:$0x1]
        %v2694 = vlaneseq
        %v2695 = vshrl.u32 %v2694, 7
        %v2696 = vsub.s32 0, %v2695
        %v2697 = vrot.slane %v2692, %v2696
        %v2731 = vunpack.c.l.b16 %v2660
        %v2732 = vunpack.c.l.b16 %v2661
        %v2733 = vunpack.c.l.b16 %v2662
        %v2734 = vunpack.c.l.b16 %v2663
        %v2735 = vunpack.c.l.b16 %v2664
        %v2736 = vunpack.c.l.b16 %v2665
        %v2737 = vunpack.c.l.b16 %v2666
        %v2738 = vunpack.c.l.b16 %v2667
        %v2739 = vunpack.c.l.b16 %v2668
        %v2740 = vunpack.c.l.b16 %v2669
        %v2741 = vunpack.c.l.b16 %v2670
        %v2742 = vunpack.c.l.b16 %v2671
        %v2743 = vunpack.c.l.b16 %v2672
        %v2744 = vunpack.c.l.b16 %v2673
        %v2745 = vunpack.c.l.b16 %v2674
        %v2746 = vunpack.c.l.b16 %v2675
        %v2747 = vunpack.c.l.b16 %v2676
        %v2748 = vunpack.c.l.b16 %v2677
        %v2749 = vunpack.c.l.b16 %v2678
        %v2750 = vunpack.c.l.b16 %v2679
        %v2751 = vunpack.c.l.b16 %v2680
        %v2752 = vunpack.c.l.b16 %v2681
        %v2753 = vunpack.c.l.b16 %v2682
        %v2754 = vunpack.c.l.b16 %v2683
        %v2755 = vunpack.c.l.b16 %v2684
        %v2756 = vunpack.c.l.b16 %v2685
        %v2757 = vunpack.c.l.b16 %v2686
        %v2758 = vunpack.c.l.b16 %v2687
        %v2759 = vunpack.c.l.b16 %v2688
        %v2760 = vunpack.c.l.b16 %v2689
        %v2761 = vunpack.c.l.b16 %v2690
        %v2762 = vunpack.c.l.b16 %v2691
        %v2763 = vpack.c.b16 %v2732, %v2731
        %v2764 = vpack.c.b16 %v2734, %v2733
        %v2765 = vpack.c.b16 %v2736, %v2735
        %v2766 = vpack.c.b16 %v2738, %v2737
        %v2767 = vpack.c.b16 %v2740, %v2739
        %v2768 = vpack.c.b16 %v2742, %v2741
        %v2769 = vpack.c.b16 %v2744, %v2743
        %v2770 = vpack.c.b16 %v2746, %v2745
        %v2771 = vpack.c.b16 %v2748, %v2747
        %v2772 = vpack.c.b16 %v2750, %v2749
        %v2773 = vpack.c.b16 %v2752, %v2751
        %v2774 = vpack.c.b16 %v2754, %v2753
        %v2775 = vpack.c.b16 %v2756, %v2755
        %v2776 = vpack.c.b16 %v2758, %v2757
        %v2777 = vpack.c.b16 %v2760, %v2759
        %v2778 = vpack.c.b16 %v2762, %v2761
        %2795 = vmatprep.subr.bf16.mxu0 0
        %2796 = vmatpush1.bf16.msra.mxu0 %v2770
        %2797 = vmatprep.subr.bf16.mxu0 0
        %2798 = vmatpush1.bf16.msra.mxu0 %v2769
        %2799 = vmatprep.subr.bf16.mxu0 0
        %2800 = vmatpush1.bf16.msra.mxu0 %v2768
        %2801 = vmatprep.subr.bf16.mxu0 0
        %2802 = vmatpush1.bf16.msra.mxu0 %v2767
        %2803 = vmatprep.subr.bf16.mxu0 0
        %2804 = vmatpush1.bf16.msra.mxu0 %v2766
        %2805 = vmatprep.subr.bf16.mxu0 0
        %2806 = vmatpush1.bf16.msra.mxu0 %v2765
        %2807 = vmatprep.subr.bf16.mxu0 0
        %2808 = vmatpush1.bf16.msra.mxu0 %v2764
        %2809 = vmatprep.subr.bf16.mxu0 0
        %2810 = vmatpush1.bf16.msra.mxu0 %v2763
        %2811 = vmatprep.subr.bf16.mxu0 0
        %2812 = vmatpush2.bf16.msra.mxu0 %v2778
        %2813 = vmatprep.subr.bf16.mxu0 0
        %2814 = vmatpush2.bf16.msra.mxu0 %v2777
        %2815 = vmatprep.subr.bf16.mxu0 0
        %2816 = vmatpush2.bf16.msra.mxu0 %v2776
        %2817 = vmatprep.subr.bf16.mxu0 0
        %2818 = vmatpush2.bf16.msra.mxu0 %v2775
        %2819 = vmatprep.subr.bf16.mxu0 0
        %2820 = vmatpush2.bf16.msra.mxu0 %v2774
        %2821 = vmatprep.subr.bf16.mxu0 0
        %2822 = vmatpush2.bf16.msra.mxu0 %v2773
        %2823 = vmatprep.subr.bf16.mxu0 0
        %2824 = vmatpush2.bf16.msra.mxu0 %v2772
        %2825 = vmatprep.subr.bf16.mxu0 0
        %2826 = vmatpush2.bf16.msra.mxu0 %v2771
        %2827 = vmatprep.mubr.bf16.mxu0 %v2657
        %2828 = vmatmul.mubr.bf16.gmra.mxu0 %v2656
        %v2829 = vpop.f32.mrf.mxu0
        %v2830 = vadd.f32 %v2697, %v2829
        %v2831 = vpop.f32.mrf.mxu0
        %v2832 = vpop.f32.mrf.mxu0
        %v2833 = vadd.f32 %v2697, %v2832
        %v2834 = vpop.f32.mrf.mxu0
        %2835 = vmatprep.mubr.bf16.mxu0 %v2659
        %2836 = vmatmul.mubr.bf16.gmra.mxu0 %v2658
        %v2837 = vpop.f32.mrf.mxu0
        %v2838 = vadd.f32 %v2697, %v2837
        %v2839 = vpop.f32.mrf.mxu0
        %v2840 = vpop.f32.mrf.mxu0
        %v2841 = vadd.f32 %v2697, %v2840
        %v2842 = vpop.f32.mrf.mxu0
        %2843 = vdwg.mxu0
        %2844 = vst [vmem:[%s540] sm:$0xff] %v2830
        %2845 = vst [vmem:[%s540 + $0x8] sm:$0xff] %v2833
        %2846 = vst [vmem:[%s540 + $0x10] sm:$0xff] %v2838
        %2847 = vst [vmem:[%s540 + $0x18] sm:$0xff] %v2841
        %v2848 = vpack.c.bf16 %v2833, %v2830
        %v2849 = vpack.c.bf16 %v2841, %v2838
        %v2850 = vld [vmem:[#allocation7] sm:$0xff]
        %v2851 = vld [vmem:[#allocation7 + $0x8] sm:$0xff]
        %v2852 = vld [vmem:[#allocation7 + $0x10] sm:$0xff]
        %v2853 = vld [vmem:[#allocation7 + $0x18] sm:$0xff]
        %v2854 = vld [vmem:[#allocation7 + $0x20] sm:$0xff]
        %v2855 = vld [vmem:[#allocation7 + $0x28] sm:$0xff]
        %v2856 = vld [vmem:[#allocation7 + $0x30] sm:$0xff]
        %v2857 = vld [vmem:[#allocation7 + $0x38] sm:$0xff]
        %v2858 = vld [vmem:[#allocation7 + $0x40] sm:$0xff]
        %v2859 = vld [vmem:[#allocation7 + $0x48] sm:$0xff]
        %v2860 = vld [vmem:[#allocation7 + $0x50] sm:$0xff]
        %v2861 = vld [vmem:[#allocation7 + $0x58] sm:$0xff]
        %v2862 = vld [vmem:[#allocation7 + $0x60] sm:$0xff]
        %v2863 = vld [vmem:[#allocation7 + $0x68] sm:$0xff]
        %v2864 = vld [vmem:[#allocation7 + $0x70] sm:$0xff]
        %v2865 = vld [vmem:[#allocation7 + $0x78] sm:$0xff]
        %v2866 = vld [vmem:[%s8] sm:$0x3]
        %v2868 = vlaneseq
        %v2869 = vshrl.u32 %v2868, 7
        %v2870 = vsub.s32 0, %v2869
        %v2871 = vrot.slane %v2866, %v2870
        %v2872 = vlaneseq
        %v2873 = vshrl.u32 %v2872, 7
        %v2874 = vsub.s32 1, %v2873
        %v2875 = vrot.slane %v2866, %v2874
        %v2894 = vunpack.c.l.b16 %v2850
        %v2895 = vunpack.c.h.b16 %v2850
        %v2896 = vunpack.c.l.b16 %v2851
        %v2897 = vunpack.c.h.b16 %v2851
        %v2898 = vunpack.c.l.b16 %v2852
        %v2899 = vunpack.c.h.b16 %v2852
        %v2900 = vunpack.c.l.b16 %v2853
        %v2901 = vunpack.c.h.b16 %v2853
        %v2902 = vunpack.c.l.b16 %v2854
        %v2903 = vunpack.c.h.b16 %v2854
        %v2904 = vunpack.c.l.b16 %v2855
        %v2905 = vunpack.c.h.b16 %v2855
        %v2906 = vunpack.c.l.b16 %v2856
        %v2907 = vunpack.c.h.b16 %v2856
        %v2908 = vunpack.c.l.b16 %v2857
        %v2909 = vunpack.c.h.b16 %v2857
        %v2910 = vunpack.c.l.b16 %v2858
        %v2911 = vunpack.c.h.b16 %v2858
        %v2912 = vunpack.c.l.b16 %v2859
        %v2913 = vunpack.c.h.b16 %v2859
        %v2914 = vunpack.c.l.b16 %v2860
        %v2915 = vunpack.c.h.b16 %v2860
        %v2916 = vunpack.c.l.b16 %v2861
        %v2917 = vunpack.c.h.b16 %v2861
        %v2918 = vunpack.c.l.b16 %v2862
        %v2919 = vunpack.c.h.b16 %v2862
        %v2920 = vunpack.c.l.b16 %v2863
        %v2921 = vunpack.c.h.b16 %v2863
        %v2922 = vunpack.c.l.b16 %v2864
        %v2923 = vunpack.c.h.b16 %v2864
        %v2924 = vunpack.c.l.b16 %v2865
        %v2925 = vunpack.c.h.b16 %v2865
        %v2926 = vpack.c.b16 %v2896, %v2894
        %v2927 = vpack.c.b16 %v2897, %v2895
        %v2928 = vpack.c.b16 %v2900, %v2898
        %v2929 = vpack.c.b16 %v2901, %v2899
        %v2930 = vpack.c.b16 %v2904, %v2902
        %v2931 = vpack.c.b16 %v2905, %v2903
        %v2932 = vpack.c.b16 %v2908, %v2906
        %v2933 = vpack.c.b16 %v2909, %v2907
        %v2934 = vpack.c.b16 %v2912, %v2910
        %v2935 = vpack.c.b16 %v2913, %v2911
        %v2936 = vpack.c.b16 %v2916, %v2914
        %v2937 = vpack.c.b16 %v2917, %v2915
        %v2938 = vpack.c.b16 %v2920, %v2918
        %v2939 = vpack.c.b16 %v2921, %v2919
        %v2940 = vpack.c.b16 %v2924, %v2922
        %v2941 = vpack.c.b16 %v2925, %v2923
        %2958 = vmatprep.subr.bf16.mxu0 %v2941
        %2959 = vmatpush1.bf16.msra.mxu0 %v2940
        %2960 = vmatprep.subr.bf16.mxu0 %v2939
        %2961 = vmatpush1.bf16.msra.mxu0 %v2938
        %2962 = vmatprep.subr.bf16.mxu0 %v2937
        %2963 = vmatpush1.bf16.msra.mxu0 %v2936
        %2964 = vmatprep.subr.bf16.mxu0 %v2935
        %2965 = vmatpush1.bf16.msra.mxu0 %v2934
        %2966 = vmatprep.subr.bf16.mxu0 %v2933
        %2967 = vmatpush1.bf16.msra.mxu0 %v2932
        %2968 = vmatprep.subr.bf16.mxu0 %v2931
        %2969 = vmatpush1.bf16.msra.mxu0 %v2930
        %2970 = vmatprep.subr.bf16.mxu0 %v2929
        %2971 = vmatpush1.bf16.msra.mxu0 %v2928
        %2972 = vmatprep.subr.bf16.mxu0 %v2927
        %2973 = vmatpush1.bf16.msra.mxu0 %v2926
        %2974 = vmatprep.subr.bf16.mxu0 0
        %2975 = vmatpush2.bf16.msra.mxu0 0
        %2976 = vmatprep.subr.bf16.mxu0 0
        %2977 = vmatpush2.bf16.msra.mxu0 0
        %2978 = vmatprep.subr.bf16.mxu0 0
        %2979 = vmatpush2.bf16.msra.mxu0 0
        %2980 = vmatprep.subr.bf16.mxu0 0
        %2981 = vmatpush2.bf16.msra.mxu0 0
        %2982 = vmatprep.subr.bf16.mxu0 0
        %2983 = vmatpush2.bf16.msra.mxu0 0
        %2984 = vmatprep.subr.bf16.mxu0 0
        %2985 = vmatpush2.bf16.msra.mxu0 0
        %2986 = vmatprep.subr.bf16.mxu0 0
        %2987 = vmatpush2.bf16.msra.mxu0 0
        %2988 = vmatprep.subr.bf16.mxu0 0
        %2989 = vmatpush2.bf16.msra.mxu0 0
        %2990 = vmatprep.mubr.bf16.mxu0 0
        %2991 = vmatmul.mubr.bf16.gmra.mxu0 %v2848
        %v2992 = vpop.f32.mrf.mxu0
        %v2993 = vadd.f32 %v2871, %v2992
        %v2994 = vpop.f32.mrf.mxu0
        %v2995 = vadd.f32 %v2875, %v2994
        %v2996 = vpop.f32.mrf.mxu0
        %v2997 = vadd.f32 %v2871, %v2996
        %v2998 = vpop.f32.mrf.mxu0
        %v2999 = vadd.f32 %v2875, %v2998
        %3000 = vmatprep.mubr.bf16.mxu0 0
        %3001 = vmatmul.mubr.bf16.gmra.mxu0 %v2849
        %v3002 = vpop.f32.mrf.mxu0
        %v3003 = vadd.f32 %v2871, %v3002
        %v3004 = vpop.f32.mrf.mxu0
        %v3005 = vadd.f32 %v2875, %v3004
        %v3006 = vpop.f32.mrf.mxu0
        %v3007 = vadd.f32 %v2871, %v3006
        %v3008 = vpop.f32.mrf.mxu0
        %v3009 = vadd.f32 %v2875, %v3008
        %3010 = vdwg.mxu0
        %v3011 = vmax.f32 %v2993, 0.0
        %v3012 = vmax.f32 %v2995, 0.0
        %v3013 = vmax.f32 %v2997, 0.0
        %v3014 = vmax.f32 %v2999, 0.0
        %v3015 = vmax.f32 %v3003, 0.0
        %v3016 = vmax.f32 %v3005, 0.0
        %v3017 = vmax.f32 %v3007, 0.0
        %v3018 = vmax.f32 %v3009, 0.0
        %v3019 = vpack.c.bf16 %v3013, %v3011
        %v3020 = vpack.c.bf16 %v3014, %v3012
        %v3021 = vpack.c.bf16 %v3017, %v3015
        %v3022 = vpack.c.bf16 %v3018, %v3016
        %v3023 = vld [vmem:[#allocation8] sm:$0xff]
        %v3024 = vld [vmem:[#allocation8 + $0x8] sm:$0xff]
        %v3025 = vld [vmem:[#allocation8 + $0x10] sm:$0xff]
        %v3026 = vld [vmem:[#allocation8 + $0x18] sm:$0xff]
        %v3027 = vld [vmem:[#allocation8 + $0x20] sm:$0xff]
        %v3028 = vld [vmem:[#allocation8 + $0x28] sm:$0xff]
        %v3029 = vld [vmem:[#allocation8 + $0x30] sm:$0xff]
        %v3030 = vld [vmem:[#allocation8 + $0x38] sm:$0xff]
        %v3031 = vld [vmem:[#allocation8 + $0x40] sm:$0xff]
        %v3032 = vld [vmem:[#allocation8 + $0x48] sm:$0xff]
        %v3033 = vld [vmem:[#allocation8 + $0x50] sm:$0xff]
        %v3034 = vld [vmem:[#allocation8 + $0x58] sm:$0xff]
        %v3035 = vld [vmem:[#allocation8 + $0x60] sm:$0xff]
        %v3036 = vld [vmem:[#allocation8 + $0x68] sm:$0xff]
        %v3037 = vld [vmem:[#allocation8 + $0x70] sm:$0xff]
        %v3038 = vld [vmem:[#allocation8 + $0x78] sm:$0xff]
        %v3039 = vld [vmem:[#allocation8 + $0x80] sm:$0xff]
        %v3040 = vld [vmem:[#allocation8 + $0x88] sm:$0xff]
        %v3041 = vld [vmem:[#allocation8 + $0x90] sm:$0xff]
        %v3042 = vld [vmem:[#allocation8 + $0x98] sm:$0xff]
        %v3043 = vld [vmem:[#allocation8 + $0xa0] sm:$0xff]
        %v3044 = vld [vmem:[#allocation8 + $0xa8] sm:$0xff]
        %v3045 = vld [vmem:[#allocation8 + $0xb0] sm:$0xff]
        %v3046 = vld [vmem:[#allocation8 + $0xb8] sm:$0xff]
        %v3047 = vld [vmem:[#allocation8 + $0xc0] sm:$0xff]
        %v3048 = vld [vmem:[#allocation8 + $0xc8] sm:$0xff]
        %v3049 = vld [vmem:[#allocation8 + $0xd0] sm:$0xff]
        %v3050 = vld [vmem:[#allocation8 + $0xd8] sm:$0xff]
        %v3051 = vld [vmem:[#allocation8 + $0xe0] sm:$0xff]
        %v3052 = vld [vmem:[#allocation8 + $0xe8] sm:$0xff]
        %v3053 = vld [vmem:[#allocation8 + $0xf0] sm:$0xff]
        %v3054 = vld [vmem:[#allocation8 + $0xf8] sm:$0xff]
        %v3055 = vld [vmem:[#allocation8 + $0x100] sm:$0xff]
        %v3056 = vld [vmem:[#allocation8 + $0x108] sm:$0xff]
        %v3057 = vld [vmem:[#allocation8 + $0x110] sm:$0xff]
        %v3058 = vld [vmem:[#allocation8 + $0x118] sm:$0xff]
        %v3059 = vld [vmem:[#allocation8 + $0x120] sm:$0xff]
        %v3060 = vld [vmem:[#allocation8 + $0x128] sm:$0xff]
        %v3061 = vld [vmem:[#allocation8 + $0x130] sm:$0xff]
        %v3062 = vld [vmem:[#allocation8 + $0x138] sm:$0xff]
        %v3063 = vld [vmem:[#allocation8 + $0x140] sm:$0xff]
        %v3064 = vld [vmem:[#allocation8 + $0x148] sm:$0xff]
        %v3065 = vld [vmem:[#allocation8 + $0x150] sm:$0xff]
        %v3066 = vld [vmem:[#allocation8 + $0x158] sm:$0xff]
        %v3067 = vld [vmem:[#allocation8 + $0x160] sm:$0xff]
        %v3068 = vld [vmem:[#allocation8 + $0x168] sm:$0xff]
        %v3069 = vld [vmem:[#allocation8 + $0x170] sm:$0xff]
        %v3070 = vld [vmem:[#allocation8 + $0x178] sm:$0xff]
        %v3071 = vld [vmem:[#allocation8 + $0x180] sm:$0xff]
        %v3072 = vld [vmem:[#allocation8 + $0x188] sm:$0xff]
        %v3073 = vld [vmem:[#allocation8 + $0x190] sm:$0xff]
        %v3074 = vld [vmem:[#allocation8 + $0x198] sm:$0xff]
        %v3075 = vld [vmem:[#allocation8 + $0x1a0] sm:$0xff]
        %v3076 = vld [vmem:[#allocation8 + $0x1a8] sm:$0xff]
        %v3077 = vld [vmem:[#allocation8 + $0x1b0] sm:$0xff]
        %v3078 = vld [vmem:[#allocation8 + $0x1b8] sm:$0xff]
        %v3079 = vld [vmem:[#allocation8 + $0x1c0] sm:$0xff]
        %v3080 = vld [vmem:[#allocation8 + $0x1c8] sm:$0xff]
        %v3081 = vld [vmem:[#allocation8 + $0x1d0] sm:$0xff]
        %v3082 = vld [vmem:[#allocation8 + $0x1d8] sm:$0xff]
        %v3083 = vld [vmem:[#allocation8 + $0x1e0] sm:$0xff]
        %v3084 = vld [vmem:[#allocation8 + $0x1e8] sm:$0xff]
        %v3085 = vld [vmem:[#allocation8 + $0x1f0] sm:$0xff]
        %v3086 = vld [vmem:[#allocation8 + $0x1f8] sm:$0xff]
        %v3087 = vld [vmem:[%s10] sm:$0xf]
        %v3089 = vlaneseq
        %v3090 = vshrl.u32 %v3089, 7
        %v3091 = vsub.s32 0, %v3090
        %v3092 = vrot.slane %v3087, %v3091
        %v3093 = vlaneseq
        %v3094 = vshrl.u32 %v3093, 7
        %v3095 = vsub.s32 1, %v3094
        %v3096 = vrot.slane %v3087, %v3095
        %v3097 = vlaneseq
        %v3098 = vshrl.u32 %v3097, 7
        %v3099 = vsub.s32 2, %v3098
        %v3100 = vrot.slane %v3087, %v3099
        %v3101 = vlaneseq
        %v3102 = vshrl.u32 %v3101, 7
        %v3103 = vsub.s32 3, %v3102
        %v3104 = vrot.slane %v3087, %v3103
        %v3173 = vunpack.c.l.b16 %v3023
        %v3174 = vunpack.c.h.b16 %v3023
        %v3175 = vunpack.c.l.b16 %v3024
        %v3176 = vunpack.c.h.b16 %v3024
        %v3177 = vunpack.c.l.b16 %v3025
        %v3178 = vunpack.c.h.b16 %v3025
        %v3179 = vunpack.c.l.b16 %v3026
        %v3180 = vunpack.c.h.b16 %v3026
        %v3181 = vunpack.c.l.b16 %v3027
        %v3182 = vunpack.c.h.b16 %v3027
        %v3183 = vunpack.c.l.b16 %v3028
        %v3184 = vunpack.c.h.b16 %v3028
        %v3185 = vunpack.c.l.b16 %v3029
        %v3186 = vunpack.c.h.b16 %v3029
        %v3187 = vunpack.c.l.b16 %v3030
        %v3188 = vunpack.c.h.b16 %v3030
        %v3189 = vunpack.c.l.b16 %v3031
        %v3190 = vunpack.c.h.b16 %v3031
        %v3191 = vunpack.c.l.b16 %v3032
        %v3192 = vunpack.c.h.b16 %v3032
        %v3193 = vunpack.c.l.b16 %v3033
        %v3194 = vunpack.c.h.b16 %v3033
        %v3195 = vunpack.c.l.b16 %v3034
        %v3196 = vunpack.c.h.b16 %v3034
        %v3197 = vunpack.c.l.b16 %v3035
        %v3198 = vunpack.c.h.b16 %v3035
        %v3199 = vunpack.c.l.b16 %v3036
        %v3200 = vunpack.c.h.b16 %v3036
        %v3201 = vunpack.c.l.b16 %v3037
        %v3202 = vunpack.c.h.b16 %v3037
        %v3203 = vunpack.c.l.b16 %v3038
        %v3204 = vunpack.c.h.b16 %v3038
        %v3205 = vunpack.c.l.b16 %v3039
        %v3206 = vunpack.c.h.b16 %v3039
        %v3207 = vunpack.c.l.b16 %v3040
        %v3208 = vunpack.c.h.b16 %v3040
        %v3209 = vunpack.c.l.b16 %v3041
        %v3210 = vunpack.c.h.b16 %v3041
        %v3211 = vunpack.c.l.b16 %v3042
        %v3212 = vunpack.c.h.b16 %v3042
        %v3213 = vunpack.c.l.b16 %v3043
        %v3214 = vunpack.c.h.b16 %v3043
        %v3215 = vunpack.c.l.b16 %v3044
        %v3216 = vunpack.c.h.b16 %v3044
        %v3217 = vunpack.c.l.b16 %v3045
        %v3218 = vunpack.c.h.b16 %v3045
        %v3219 = vunpack.c.l.b16 %v3046
        %v3220 = vunpack.c.h.b16 %v3046
        %v3221 = vunpack.c.l.b16 %v3047
        %v3222 = vunpack.c.h.b16 %v3047
        %v3223 = vunpack.c.l.b16 %v3048
        %v3224 = vunpack.c.h.b16 %v3048
        %v3225 = vunpack.c.l.b16 %v3049
        %v3226 = vunpack.c.h.b16 %v3049
        %v3227 = vunpack.c.l.b16 %v3050
        %v3228 = vunpack.c.h.b16 %v3050
        %v3229 = vunpack.c.l.b16 %v3051
        %v3230 = vunpack.c.h.b16 %v3051
        %v3231 = vunpack.c.l.b16 %v3052
        %v3232 = vunpack.c.h.b16 %v3052
        %v3233 = vunpack.c.l.b16 %v3053
        %v3234 = vunpack.c.h.b16 %v3053
        %v3235 = vunpack.c.l.b16 %v3054
        %v3236 = vunpack.c.h.b16 %v3054
        %v3237 = vunpack.c.l.b16 %v3055
        %v3238 = vunpack.c.h.b16 %v3055
        %v3239 = vunpack.c.l.b16 %v3056
        %v3240 = vunpack.c.h.b16 %v3056
        %v3241 = vunpack.c.l.b16 %v3057
        %v3242 = vunpack.c.h.b16 %v3057
        %v3243 = vunpack.c.l.b16 %v3058
        %v3244 = vunpack.c.h.b16 %v3058
        %v3245 = vunpack.c.l.b16 %v3059
        %v3246 = vunpack.c.h.b16 %v3059
        %v3247 = vunpack.c.l.b16 %v3060
        %v3248 = vunpack.c.h.b16 %v3060
        %v3249 = vunpack.c.l.b16 %v3061
        %v3250 = vunpack.c.h.b16 %v3061
        %v3251 = vunpack.c.l.b16 %v3062
        %v3252 = vunpack.c.h.b16 %v3062
        %v3253 = vunpack.c.l.b16 %v3063
        %v3254 = vunpack.c.h.b16 %v3063
        %v3255 = vunpack.c.l.b16 %v3064
        %v3256 = vunpack.c.h.b16 %v3064
        %v3257 = vunpack.c.l.b16 %v3065
        %v3258 = vunpack.c.h.b16 %v3065
        %v3259 = vunpack.c.l.b16 %v3066
        %v3260 = vunpack.c.h.b16 %v3066
        %v3261 = vunpack.c.l.b16 %v3067
        %v3262 = vunpack.c.h.b16 %v3067
        %v3263 = vunpack.c.l.b16 %v3068
        %v3264 = vunpack.c.h.b16 %v3068
        %v3265 = vunpack.c.l.b16 %v3069
        %v3266 = vunpack.c.h.b16 %v3069
        %v3267 = vunpack.c.l.b16 %v3070
        %v3268 = vunpack.c.h.b16 %v3070
        %v3269 = vunpack.c.l.b16 %v3071
        %v3270 = vunpack.c.h.b16 %v3071
        %v3271 = vunpack.c.l.b16 %v3072
        %v3272 = vunpack.c.h.b16 %v3072
        %v3273 = vunpack.c.l.b16 %v3073
        %v3274 = vunpack.c.h.b16 %v3073
        %v3275 = vunpack.c.l.b16 %v3074
        %v3276 = vunpack.c.h.b16 %v3074
        %v3277 = vunpack.c.l.b16 %v3075
        %v3278 = vunpack.c.h.b16 %v3075
        %v3279 = vunpack.c.l.b16 %v3076
        %v3280 = vunpack.c.h.b16 %v3076
        %v3281 = vunpack.c.l.b16 %v3077
        %v3282 = vunpack.c.h.b16 %v3077
        %v3283 = vunpack.c.l.b16 %v3078
        %v3284 = vunpack.c.h.b16 %v3078
        %v3285 = vunpack.c.l.b16 %v3079
        %v3286 = vunpack.c.h.b16 %v3079
        %v3287 = vunpack.c.l.b16 %v3080
        %v3288 = vunpack.c.h.b16 %v3080
        %v3289 = vunpack.c.l.b16 %v3081
        %v3290 = vunpack.c.h.b16 %v3081
        %v3291 = vunpack.c.l.b16 %v3082
        %v3292 = vunpack.c.h.b16 %v3082
        %v3293 = vunpack.c.l.b16 %v3083
        %v3294 = vunpack.c.h.b16 %v3083
        %v3295 = vunpack.c.l.b16 %v3084
        %v3296 = vunpack.c.h.b16 %v3084
        %v3297 = vunpack.c.l.b16 %v3085
        %v3298 = vunpack.c.h.b16 %v3085
        %v3299 = vunpack.c.l.b16 %v3086
        %v3300 = vunpack.c.h.b16 %v3086
        %v3301 = vpack.c.b16 %v3177, %v3173
        %v3302 = vpack.c.b16 %v3178, %v3174
        %v3303 = vpack.c.b16 %v3179, %v3175
        %v3304 = vpack.c.b16 %v3180, %v3176
        %v3305 = vpack.c.b16 %v3185, %v3181
        %v3306 = vpack.c.b16 %v3186, %v3182
        %v3307 = vpack.c.b16 %v3187, %v3183
        %v3308 = vpack.c.b16 %v3188, %v3184
        %v3309 = vpack.c.b16 %v3193, %v3189
        %v3310 = vpack.c.b16 %v3194, %v3190
        %v3311 = vpack.c.b16 %v3195, %v3191
        %v3312 = vpack.c.b16 %v3196, %v3192
        %v3313 = vpack.c.b16 %v3201, %v3197
        %v3314 = vpack.c.b16 %v3202, %v3198
        %v3315 = vpack.c.b16 %v3203, %v3199
        %v3316 = vpack.c.b16 %v3204, %v3200
        %v3317 = vpack.c.b16 %v3209, %v3205
        %v3318 = vpack.c.b16 %v3210, %v3206
        %v3319 = vpack.c.b16 %v3211, %v3207
        %v3320 = vpack.c.b16 %v3212, %v3208
        %v3321 = vpack.c.b16 %v3217, %v3213
        %v3322 = vpack.c.b16 %v3218, %v3214
        %v3323 = vpack.c.b16 %v3219, %v3215
        %v3324 = vpack.c.b16 %v3220, %v3216
        %v3325 = vpack.c.b16 %v3225, %v3221
        %v3326 = vpack.c.b16 %v3226, %v3222
        %v3327 = vpack.c.b16 %v3227, %v3223
        %v3328 = vpack.c.b16 %v3228, %v3224
        %v3329 = vpack.c.b16 %v3233, %v3229
        %v3330 = vpack.c.b16 %v3234, %v3230
        %v3331 = vpack.c.b16 %v3235, %v3231
        %v3332 = vpack.c.b16 %v3236, %v3232
        %v3333 = vpack.c.b16 %v3241, %v3237
        %v3334 = vpack.c.b16 %v3242, %v3238
        %v3335 = vpack.c.b16 %v3243, %v3239
        %v3336 = vpack.c.b16 %v3244, %v3240
        %v3337 = vpack.c.b16 %v3249, %v3245
        %v3338 = vpack.c.b16 %v3250, %v3246
        %v3339 = vpack.c.b16 %v3251, %v3247
        %v3340 = vpack.c.b16 %v3252, %v3248
        %v3341 = vpack.c.b16 %v3257, %v3253
        %v3342 = vpack.c.b16 %v3258, %v3254
        %v3343 = vpack.c.b16 %v3259, %v3255
        %v3344 = vpack.c.b16 %v3260, %v3256
        %v3345 = vpack.c.b16 %v3265, %v3261
        %v3346 = vpack.c.b16 %v3266, %v3262
        %v3347 = vpack.c.b16 %v3267, %v3263
        %v3348 = vpack.c.b16 %v3268, %v3264
        %v3349 = vpack.c.b16 %v3273, %v3269
        %v3350 = vpack.c.b16 %v3274, %v3270
        %v3351 = vpack.c.b16 %v3275, %v3271
        %v3352 = vpack.c.b16 %v3276, %v3272
        %v3353 = vpack.c.b16 %v3281, %v3277
        %v3354 = vpack.c.b16 %v3282, %v3278
        %v3355 = vpack.c.b16 %v3283, %v3279
        %v3356 = vpack.c.b16 %v3284, %v3280
        %v3357 = vpack.c.b16 %v3289, %v3285
        %v3358 = vpack.c.b16 %v3290, %v3286
        %v3359 = vpack.c.b16 %v3291, %v3287
        %v3360 = vpack.c.b16 %v3292, %v3288
        %v3361 = vpack.c.b16 %v3297, %v3293
        %v3362 = vpack.c.b16 %v3298, %v3294
        %v3363 = vpack.c.b16 %v3299, %v3295
        %v3364 = vpack.c.b16 %v3300, %v3296
        %3429 = vmatprep.subr.bf16.mxu0 %v3330
        %3430 = vmatpush1.bf16.msra.mxu0 %v3329
        %3431 = vmatprep.subr.bf16.mxu0 %v3326
        %3432 = vmatpush1.bf16.msra.mxu0 %v3325
        %3433 = vmatprep.subr.bf16.mxu0 %v3322
        %3434 = vmatpush1.bf16.msra.mxu0 %v3321
        %3435 = vmatprep.subr.bf16.mxu0 %v3318
        %3436 = vmatpush1.bf16.msra.mxu0 %v3317
        %3437 = vmatprep.subr.bf16.mxu0 %v3314
        %3438 = vmatpush1.bf16.msra.mxu0 %v3313
        %3439 = vmatprep.subr.bf16.mxu0 %v3310
        %3440 = vmatpush1.bf16.msra.mxu0 %v3309
        %3441 = vmatprep.subr.bf16.mxu0 %v3306
        %3442 = vmatpush1.bf16.msra.mxu0 %v3305
        %3443 = vmatprep.subr.bf16.mxu0 %v3302
        %3444 = vmatpush1.bf16.msra.mxu0 %v3301
        %3445 = vmatprep.subr.bf16.mxu0 %v3362
        %3446 = vmatpush2.bf16.msra.mxu0 %v3361
        %3447 = vmatprep.subr.bf16.mxu0 %v3358
        %3448 = vmatpush2.bf16.msra.mxu0 %v3357
        %3449 = vmatprep.subr.bf16.mxu0 %v3354
        %3450 = vmatpush2.bf16.msra.mxu0 %v3353
        %3451 = vmatprep.subr.bf16.mxu0 %v3350
        %3452 = vmatpush2.bf16.msra.mxu0 %v3349
        %3453 = vmatprep.subr.bf16.mxu0 %v3346
        %3454 = vmatpush2.bf16.msra.mxu0 %v3345
        %3455 = vmatprep.subr.bf16.mxu0 %v3342
        %3456 = vmatpush2.bf16.msra.mxu0 %v3341
        %3457 = vmatprep.subr.bf16.mxu0 %v3338
        %3458 = vmatpush2.bf16.msra.mxu0 %v3337
        %3459 = vmatprep.subr.bf16.mxu0 %v3334
        %3460 = vmatpush2.bf16.msra.mxu0 %v3333
        %3461 = vmatprep.mubr.bf16.mxu0 %v3020
        %3462 = vmatmul.mubr.bf16.gmra.mxu0 %v3019
        %v3463 = vpop.f32.mrf.mxu0
        %v3464 = vadd.f32 %v3092, %v3463
        %v3465 = vpop.f32.mrf.mxu0
        %v3466 = vadd.f32 %v3096, %v3465
        %v3467 = vpop.f32.mrf.mxu0
        %v3468 = vadd.f32 %v3092, %v3467
        %v3469 = vpop.f32.mrf.mxu0
        %v3470 = vadd.f32 %v3096, %v3469
        %3471 = vmatprep.mubr.bf16.mxu0 %v3022
        %3472 = vmatmul.mubr.bf16.gmra.mxu0 %v3021
        %v3473 = vpop.f32.mrf.mxu0
        %v3474 = vadd.f32 %v3092, %v3473
        %v3475 = vpop.f32.mrf.mxu0
        %v3476 = vadd.f32 %v3096, %v3475
        %v3477 = vpop.f32.mrf.mxu0
        %v3478 = vadd.f32 %v3092, %v3477
        %v3479 = vpop.f32.mrf.mxu0
        %v3480 = vadd.f32 %v3096, %v3479
        %3481 = vdwg.mxu0
        %3482 = vmatprep.subr.bf16.mxu0 %v3332
        %3483 = vmatpush1.bf16.msra.mxu0 %v3331
        %3484 = vmatprep.subr.bf16.mxu0 %v3328
        %3485 = vmatpush1.bf16.msra.mxu0 %v3327
        %3486 = vmatprep.subr.bf16.mxu0 %v3324
        %3487 = vmatpush1.bf16.msra.mxu0 %v3323
        %3488 = vmatprep.subr.bf16.mxu0 %v3320
        %3489 = vmatpush1.bf16.msra.mxu0 %v3319
        %3490 = vmatprep.subr.bf16.mxu0 %v3316
        %3491 = vmatpush1.bf16.msra.mxu0 %v3315
        %3492 = vmatprep.subr.bf16.mxu0 %v3312
        %3493 = vmatpush1.bf16.msra.mxu0 %v3311
        %3494 = vmatprep.subr.bf16.mxu0 %v3308
        %3495 = vmatpush1.bf16.msra.mxu0 %v3307
        %3496 = vmatprep.subr.bf16.mxu0 %v3304
        %3497 = vmatpush1.bf16.msra.mxu0 %v3303
        %3498 = vmatprep.subr.bf16.mxu0 %v3364
        %3499 = vmatpush2.bf16.msra.mxu0 %v3363
        %3500 = vmatprep.subr.bf16.mxu0 %v3360
        %3501 = vmatpush2.bf16.msra.mxu0 %v3359
        %3502 = vmatprep.subr.bf16.mxu0 %v3356
        %3503 = vmatpush2.bf16.msra.mxu0 %v3355
        %3504 = vmatprep.subr.bf16.mxu0 %v3352
        %3505 = vmatpush2.bf16.msra.mxu0 %v3351
        %3506 = vmatprep.subr.bf16.mxu0 %v3348
        %3507 = vmatpush2.bf16.msra.mxu0 %v3347
        %3508 = vmatprep.subr.bf16.mxu0 %v3344
        %3509 = vmatpush2.bf16.msra.mxu0 %v3343
        %3510 = vmatprep.subr.bf16.mxu0 %v3340
        %3511 = vmatpush2.bf16.msra.mxu0 %v3339
        %3512 = vmatprep.subr.bf16.mxu0 %v3336
        %3513 = vmatpush2.bf16.msra.mxu0 %v3335
        %3514 = vmatprep.mubr.bf16.mxu0 %v3020
        %3515 = vmatmul.mubr.bf16.gmra.mxu0 %v3019
        %v3516 = vpop.f32.mrf.mxu0
        %v3517 = vadd.f32 %v3100, %v3516
        %v3518 = vpop.f32.mrf.mxu0
        %v3519 = vadd.f32 %v3104, %v3518
        %v3520 = vpop.f32.mrf.mxu0
        %v3521 = vadd.f32 %v3100, %v3520
        %v3522 = vpop.f32.mrf.mxu0
        %v3523 = vadd.f32 %v3104, %v3522
        %3524 = vmatprep.mubr.bf16.mxu0 %v3022
        %3525 = vmatmul.mubr.bf16.gmra.mxu0 %v3021
        %v3526 = vpop.f32.mrf.mxu0
        %v3527 = vadd.f32 %v3100, %v3526
        %v3528 = vpop.f32.mrf.mxu0
        %v3529 = vadd.f32 %v3104, %v3528
        %v3530 = vpop.f32.mrf.mxu0
        %v3531 = vadd.f32 %v3100, %v3530
        %v3532 = vpop.f32.mrf.mxu0
        %v3533 = vadd.f32 %v3104, %v3532
        %3534 = vdwg.mxu0
        %v3535 = vmax.f32 %v3464, 0.0
        %v3536 = vmax.f32 %v3466, 0.0
        %v3537 = vmax.f32 %v3517, 0.0
        %v3538 = vmax.f32 %v3519, 0.0
        %v3539 = vmax.f32 %v3468, 0.0
        %v3540 = vmax.f32 %v3470, 0.0
        %v3541 = vmax.f32 %v3521, 0.0
        %v3542 = vmax.f32 %v3523, 0.0
        %v3543 = vmax.f32 %v3474, 0.0
        %v3544 = vmax.f32 %v3476, 0.0
        %v3545 = vmax.f32 %v3527, 0.0
        %v3546 = vmax.f32 %v3529, 0.0
        %v3547 = vmax.f32 %v3478, 0.0
        %v3548 = vmax.f32 %v3480, 0.0
        %v3549 = vmax.f32 %v3531, 0.0
        %v3550 = vmax.f32 %v3533, 0.0
        %v3551 = vpack.c.bf16 %v3539, %v3535
        %v3552 = vpack.c.bf16 %v3540, %v3536
        %v3553 = vpack.c.bf16 %v3541, %v3537
        %v3554 = vpack.c.bf16 %v3542, %v3538
        %v3555 = vpack.c.bf16 %v3547, %v3543
        %v3556 = vpack.c.bf16 %v3548, %v3544
        %v3557 = vpack.c.bf16 %v3549, %v3545
        %v3558 = vpack.c.bf16 %v3550, %v3546
        %v3559 = vld [vmem:[#allocation10] sm:$0xff]
        %v3560 = vld [vmem:[#allocation10 + $0x8] sm:$0xff]
        %v3561 = vld [vmem:[#allocation10 + $0x10] sm:$0xff]
        %v3562 = vld [vmem:[#allocation10 + $0x18] sm:$0xff]
        %v3563 = vld [vmem:[#allocation10 + $0x20] sm:$0xff]
        %v3564 = vld [vmem:[#allocation10 + $0x28] sm:$0xff]
        %v3565 = vld [vmem:[#allocation10 + $0x30] sm:$0xff]
        %v3566 = vld [vmem:[#allocation10 + $0x38] sm:$0xff]
        %v3567 = vld [vmem:[#allocation10 + $0x40] sm:$0xff]
        %v3568 = vld [vmem:[#allocation10 + $0x48] sm:$0xff]
        %v3569 = vld [vmem:[#allocation10 + $0x50] sm:$0xff]
        %v3570 = vld [vmem:[#allocation10 + $0x58] sm:$0xff]
        %v3571 = vld [vmem:[#allocation10 + $0x60] sm:$0xff]
        %v3572 = vld [vmem:[#allocation10 + $0x68] sm:$0xff]
        %v3573 = vld [vmem:[#allocation10 + $0x70] sm:$0xff]
        %v3574 = vld [vmem:[#allocation10 + $0x78] sm:$0xff]
        %v3575 = vld [vmem:[#allocation10 + $0x80] sm:$0xff]
        %v3576 = vld [vmem:[#allocation10 + $0x88] sm:$0xff]
        %v3577 = vld [vmem:[#allocation10 + $0x90] sm:$0xff]
        %v3578 = vld [vmem:[#allocation10 + $0x98] sm:$0xff]
        %v3579 = vld [vmem:[#allocation10 + $0xa0] sm:$0xff]
        %v3580 = vld [vmem:[#allocation10 + $0xa8] sm:$0xff]
        %v3581 = vld [vmem:[#allocation10 + $0xb0] sm:$0xff]
        %v3582 = vld [vmem:[#allocation10 + $0xb8] sm:$0xff]
        %v3583 = vld [vmem:[#allocation10 + $0xc0] sm:$0xff]
        %v3584 = vld [vmem:[#allocation10 + $0xc8] sm:$0xff]
        %v3585 = vld [vmem:[#allocation10 + $0xd0] sm:$0xff]
        %v3586 = vld [vmem:[#allocation10 + $0xd8] sm:$0xff]
        %v3587 = vld [vmem:[#allocation10 + $0xe0] sm:$0xff]
        %v3588 = vld [vmem:[#allocation10 + $0xe8] sm:$0xff]
        %v3589 = vld [vmem:[#allocation10 + $0xf0] sm:$0xff]
        %v3590 = vld [vmem:[#allocation10 + $0xf8] sm:$0xff]
        %v3591 = vld [vmem:[#allocation10 + $0x100] sm:$0xff]
        %v3592 = vld [vmem:[#allocation10 + $0x108] sm:$0xff]
        %v3593 = vld [vmem:[#allocation10 + $0x110] sm:$0xff]
        %v3594 = vld [vmem:[#allocation10 + $0x118] sm:$0xff]
        %v3595 = vld [vmem:[#allocation10 + $0x120] sm:$0xff]
        %v3596 = vld [vmem:[#allocation10 + $0x128] sm:$0xff]
        %v3597 = vld [vmem:[#allocation10 + $0x130] sm:$0xff]
        %v3598 = vld [vmem:[#allocation10 + $0x138] sm:$0xff]
        %v3599 = vld [vmem:[#allocation10 + $0x140] sm:$0xff]
        %v3600 = vld [vmem:[#allocation10 + $0x148] sm:$0xff]
        %v3601 = vld [vmem:[#allocation10 + $0x150] sm:$0xff]
        %v3602 = vld [vmem:[#allocation10 + $0x158] sm:$0xff]
        %v3603 = vld [vmem:[#allocation10 + $0x160] sm:$0xff]
        %v3604 = vld [vmem:[#allocation10 + $0x168] sm:$0xff]
        %v3605 = vld [vmem:[#allocation10 + $0x170] sm:$0xff]
        %v3606 = vld [vmem:[#allocation10 + $0x178] sm:$0xff]
        %v3607 = vld [vmem:[#allocation10 + $0x180] sm:$0xff]
        %v3608 = vld [vmem:[#allocation10 + $0x188] sm:$0xff]
        %v3609 = vld [vmem:[#allocation10 + $0x190] sm:$0xff]
        %v3610 = vld [vmem:[#allocation10 + $0x198] sm:$0xff]
        %v3611 = vld [vmem:[#allocation10 + $0x1a0] sm:$0xff]
        %v3612 = vld [vmem:[#allocation10 + $0x1a8] sm:$0xff]
        %v3613 = vld [vmem:[#allocation10 + $0x1b0] sm:$0xff]
        %v3614 = vld [vmem:[#allocation10 + $0x1b8] sm:$0xff]
        %v3615 = vld [vmem:[#allocation10 + $0x1c0] sm:$0xff]
        %v3616 = vld [vmem:[#allocation10 + $0x1c8] sm:$0xff]
        %v3617 = vld [vmem:[#allocation10 + $0x1d0] sm:$0xff]
        %v3618 = vld [vmem:[#allocation10 + $0x1d8] sm:$0xff]
        %v3619 = vld [vmem:[#allocation10 + $0x1e0] sm:$0xff]
        %v3620 = vld [vmem:[#allocation10 + $0x1e8] sm:$0xff]
        %v3621 = vld [vmem:[#allocation10 + $0x1f0] sm:$0xff]
        %v3622 = vld [vmem:[#allocation10 + $0x1f8] sm:$0xff]
        %v3623 = vld [vmem:[#allocation10 + $0x200] sm:$0xff]
        %v3624 = vld [vmem:[#allocation10 + $0x208] sm:$0xff]
        %v3625 = vld [vmem:[#allocation10 + $0x210] sm:$0xff]
        %v3626 = vld [vmem:[#allocation10 + $0x218] sm:$0xff]
        %v3627 = vld [vmem:[#allocation10 + $0x220] sm:$0xff]
        %v3628 = vld [vmem:[#allocation10 + $0x228] sm:$0xff]
        %v3629 = vld [vmem:[#allocation10 + $0x230] sm:$0xff]
        %v3630 = vld [vmem:[#allocation10 + $0x238] sm:$0xff]
        %v3631 = vld [vmem:[#allocation10 + $0x240] sm:$0xff]
        %v3632 = vld [vmem:[#allocation10 + $0x248] sm:$0xff]
        %v3633 = vld [vmem:[#allocation10 + $0x250] sm:$0xff]
        %v3634 = vld [vmem:[#allocation10 + $0x258] sm:$0xff]
        %v3635 = vld [vmem:[#allocation10 + $0x260] sm:$0xff]
        %v3636 = vld [vmem:[#allocation10 + $0x268] sm:$0xff]
        %v3637 = vld [vmem:[#allocation10 + $0x270] sm:$0xff]
        %v3638 = vld [vmem:[#allocation10 + $0x278] sm:$0xff]
        %v3639 = vld [vmem:[#allocation10 + $0x280] sm:$0xff]
        %v3640 = vld [vmem:[#allocation10 + $0x288] sm:$0xff]
        %v3641 = vld [vmem:[#allocation10 + $0x290] sm:$0xff]
        %v3642 = vld [vmem:[#allocation10 + $0x298] sm:$0xff]
        %v3643 = vld [vmem:[#allocation10 + $0x2a0] sm:$0xff]
        %v3644 = vld [vmem:[#allocation10 + $0x2a8] sm:$0xff]
        %v3645 = vld [vmem:[#allocation10 + $0x2b0] sm:$0xff]
        %v3646 = vld [vmem:[#allocation10 + $0x2b8] sm:$0xff]
        %v3647 = vld [vmem:[#allocation10 + $0x2c0] sm:$0xff]
        %v3648 = vld [vmem:[#allocation10 + $0x2c8] sm:$0xff]
        %v3649 = vld [vmem:[#allocation10 + $0x2d0] sm:$0xff]
        %v3650 = vld [vmem:[#allocation10 + $0x2d8] sm:$0xff]
        %v3651 = vld [vmem:[#allocation10 + $0x2e0] sm:$0xff]
        %v3652 = vld [vmem:[#allocation10 + $0x2e8] sm:$0xff]
        %v3653 = vld [vmem:[#allocation10 + $0x2f0] sm:$0xff]
        %v3654 = vld [vmem:[#allocation10 + $0x2f8] sm:$0xff]
        %v3655 = vld [vmem:[#allocation10 + $0x300] sm:$0xff]
        %v3656 = vld [vmem:[#allocation10 + $0x308] sm:$0xff]
        %v3657 = vld [vmem:[#allocation10 + $0x310] sm:$0xff]
        %v3658 = vld [vmem:[#allocation10 + $0x318] sm:$0xff]
        %v3659 = vld [vmem:[#allocation10 + $0x320] sm:$0xff]
        %v3660 = vld [vmem:[#allocation10 + $0x328] sm:$0xff]
        %v3661 = vld [vmem:[#allocation10 + $0x330] sm:$0xff]
        %v3662 = vld [vmem:[#allocation10 + $0x338] sm:$0xff]
        %v3663 = vld [vmem:[#allocation10 + $0x340] sm:$0xff]
        %v3664 = vld [vmem:[#allocation10 + $0x348] sm:$0xff]
        %v3665 = vld [vmem:[#allocation10 + $0x350] sm:$0xff]
        %v3666 = vld [vmem:[#allocation10 + $0x358] sm:$0xff]
        %v3667 = vld [vmem:[#allocation10 + $0x360] sm:$0xff]
        %v3668 = vld [vmem:[#allocation10 + $0x368] sm:$0xff]
        %v3669 = vld [vmem:[#allocation10 + $0x370] sm:$0xff]
        %v3670 = vld [vmem:[#allocation10 + $0x378] sm:$0xff]
        %v3671 = vld [vmem:[#allocation10 + $0x380] sm:$0xff]
        %v3672 = vld [vmem:[#allocation10 + $0x388] sm:$0xff]
        %v3673 = vld [vmem:[#allocation10 + $0x390] sm:$0xff]
        %v3674 = vld [vmem:[#allocation10 + $0x398] sm:$0xff]
        %v3675 = vld [vmem:[#allocation10 + $0x3a0] sm:$0xff]
        %v3676 = vld [vmem:[#allocation10 + $0x3a8] sm:$0xff]
        %v3677 = vld [vmem:[#allocation10 + $0x3b0] sm:$0xff]
        %v3678 = vld [vmem:[#allocation10 + $0x3b8] sm:$0xff]
        %v3679 = vld [vmem:[#allocation10 + $0x3c0] sm:$0xff]
        %v3680 = vld [vmem:[#allocation10 + $0x3c8] sm:$0xff]
        %v3681 = vld [vmem:[#allocation10 + $0x3d0] sm:$0xff]
        %v3682 = vld [vmem:[#allocation10 + $0x3d8] sm:$0xff]
        %v3683 = vld [vmem:[#allocation10 + $0x3e0] sm:$0xff]
        %v3684 = vld [vmem:[#allocation10 + $0x3e8] sm:$0xff]
        %v3685 = vld [vmem:[#allocation10 + $0x3f0] sm:$0xff]
        %v3686 = vld [vmem:[#allocation10 + $0x3f8] sm:$0xff]
        %v3687 = vld [vmem:[#allocation10 + $0x400] sm:$0xff]
        %v3688 = vld [vmem:[#allocation10 + $0x408] sm:$0xff]
        %v3689 = vld [vmem:[#allocation10 + $0x410] sm:$0xff]
        %v3690 = vld [vmem:[#allocation10 + $0x418] sm:$0xff]
        %v3691 = vld [vmem:[#allocation10 + $0x420] sm:$0xff]
        %v3692 = vld [vmem:[#allocation10 + $0x428] sm:$0xff]
        %v3693 = vld [vmem:[#allocation10 + $0x430] sm:$0xff]
        %v3694 = vld [vmem:[#allocation10 + $0x438] sm:$0xff]
        %v3695 = vld [vmem:[#allocation10 + $0x440] sm:$0xff]
        %v3696 = vld [vmem:[#allocation10 + $0x448] sm:$0xff]
        %v3697 = vld [vmem:[#allocation10 + $0x450] sm:$0xff]
        %v3698 = vld [vmem:[#allocation10 + $0x458] sm:$0xff]
        %v3699 = vld [vmem:[#allocation10 + $0x460] sm:$0xff]
        %v3700 = vld [vmem:[#allocation10 + $0x468] sm:$0xff]
        %v3701 = vld [vmem:[#allocation10 + $0x470] sm:$0xff]
        %v3702 = vld [vmem:[#allocation10 + $0x478] sm:$0xff]
        %v3703 = vld [vmem:[#allocation10 + $0x480] sm:$0xff]
        %v3704 = vld [vmem:[#allocation10 + $0x488] sm:$0xff]
        %v3705 = vld [vmem:[#allocation10 + $0x490] sm:$0xff]
        %v3706 = vld [vmem:[#allocation10 + $0x498] sm:$0xff]
        %v3707 = vld [vmem:[#allocation10 + $0x4a0] sm:$0xff]
        %v3708 = vld [vmem:[#allocation10 + $0x4a8] sm:$0xff]
        %v3709 = vld [vmem:[#allocation10 + $0x4b0] sm:$0xff]
        %v3710 = vld [vmem:[#allocation10 + $0x4b8] sm:$0xff]
        %v3711 = vld [vmem:[#allocation10 + $0x4c0] sm:$0xff]
        %v3712 = vld [vmem:[#allocation10 + $0x4c8] sm:$0xff]
        %v3713 = vld [vmem:[#allocation10 + $0x4d0] sm:$0xff]
        %v3714 = vld [vmem:[#allocation10 + $0x4d8] sm:$0xff]
        %v3715 = vld [vmem:[#allocation10 + $0x4e0] sm:$0xff]
        %v3716 = vld [vmem:[#allocation10 + $0x4e8] sm:$0xff]
        %v3717 = vld [vmem:[#allocation10 + $0x4f0] sm:$0xff]
        %v3718 = vld [vmem:[#allocation10 + $0x4f8] sm:$0xff]
        %v3719 = vld [vmem:[#allocation10 + $0x500] sm:$0xff]
        %v3720 = vld [vmem:[#allocation10 + $0x508] sm:$0xff]
        %v3721 = vld [vmem:[#allocation10 + $0x510] sm:$0xff]
        %v3722 = vld [vmem:[#allocation10 + $0x518] sm:$0xff]
        %v3723 = vld [vmem:[#allocation10 + $0x520] sm:$0xff]
        %v3724 = vld [vmem:[#allocation10 + $0x528] sm:$0xff]
        %v3725 = vld [vmem:[#allocation10 + $0x530] sm:$0xff]
        %v3726 = vld [vmem:[#allocation10 + $0x538] sm:$0xff]
        %v3727 = vld [vmem:[#allocation10 + $0x540] sm:$0xff]
        %v3728 = vld [vmem:[#allocation10 + $0x548] sm:$0xff]
        %v3729 = vld [vmem:[#allocation10 + $0x550] sm:$0xff]
        %v3730 = vld [vmem:[#allocation10 + $0x558] sm:$0xff]
        %v3731 = vld [vmem:[#allocation10 + $0x560] sm:$0xff]
        %v3732 = vld [vmem:[#allocation10 + $0x568] sm:$0xff]
        %v3733 = vld [vmem:[#allocation10 + $0x570] sm:$0xff]
        %v3734 = vld [vmem:[#allocation10 + $0x578] sm:$0xff]
        %v3735 = vld [vmem:[#allocation10 + $0x580] sm:$0xff]
        %v3736 = vld [vmem:[#allocation10 + $0x588] sm:$0xff]
        %v3737 = vld [vmem:[#allocation10 + $0x590] sm:$0xff]
        %v3738 = vld [vmem:[#allocation10 + $0x598] sm:$0xff]
        %v3739 = vld [vmem:[#allocation10 + $0x5a0] sm:$0xff]
        %v3740 = vld [vmem:[#allocation10 + $0x5a8] sm:$0xff]
        %v3741 = vld [vmem:[#allocation10 + $0x5b0] sm:$0xff]
        %v3742 = vld [vmem:[#allocation10 + $0x5b8] sm:$0xff]
        %v3743 = vld [vmem:[#allocation10 + $0x5c0] sm:$0xff]
        %v3744 = vld [vmem:[#allocation10 + $0x5c8] sm:$0xff]
        %v3745 = vld [vmem:[#allocation10 + $0x5d0] sm:$0xff]
        %v3746 = vld [vmem:[#allocation10 + $0x5d8] sm:$0xff]
        %v3747 = vld [vmem:[#allocation10 + $0x5e0] sm:$0xff]
        %v3748 = vld [vmem:[#allocation10 + $0x5e8] sm:$0xff]
        %v3749 = vld [vmem:[#allocation10 + $0x5f0] sm:$0xff]
        %v3750 = vld [vmem:[#allocation10 + $0x5f8] sm:$0xff]
        %v3751 = vld [vmem:[%s12] sm:$0x3f]
        %v3753 = vlaneseq
        %v3754 = vshrl.u32 %v3753, 7
        %v3755 = vsub.s32 0, %v3754
        %v3756 = vrot.slane %v3751, %v3755
        %v3757 = vlaneseq
        %v3758 = vshrl.u32 %v3757, 7
        %v3759 = vsub.s32 1, %v3758
        %v3760 = vrot.slane %v3751, %v3759
        %v3761 = vlaneseq
        %v3762 = vshrl.u32 %v3761, 7
        %v3763 = vsub.s32 2, %v3762
        %v3764 = vrot.slane %v3751, %v3763
        %v3765 = vlaneseq
        %v3766 = vshrl.u32 %v3765, 7
        %v3767 = vsub.s32 3, %v3766
        %v3768 = vrot.slane %v3751, %v3767
        %v3769 = vlaneseq
        %v3770 = vshrl.u32 %v3769, 7
        %v3771 = vsub.s32 4, %v3770
        %v3772 = vrot.slane %v3751, %v3771
        %v3773 = vlaneseq
        %v3774 = vshrl.u32 %v3773, 7
        %v3775 = vsub.s32 5, %v3774
        %v3776 = vrot.slane %v3751, %v3775
        %v3975 = vunpack.c.l.b16 %v3559
        %v3976 = vunpack.c.h.b16 %v3559
        %v3977 = vunpack.c.l.b16 %v3560
        %v3978 = vunpack.c.h.b16 %v3560
        %v3979 = vunpack.c.l.b16 %v3561
        %v3980 = vunpack.c.h.b16 %v3561
        %v3981 = vunpack.c.l.b16 %v3562
        %v3982 = vunpack.c.h.b16 %v3562
        %v3983 = vunpack.c.l.b16 %v3563
        %v3984 = vunpack.c.h.b16 %v3563
        %v3985 = vunpack.c.l.b16 %v3564
        %v3986 = vunpack.c.h.b16 %v3564
        %v3987 = vunpack.c.l.b16 %v3565
        %v3988 = vunpack.c.h.b16 %v3565
        %v3989 = vunpack.c.l.b16 %v3566
        %v3990 = vunpack.c.h.b16 %v3566
        %v3991 = vunpack.c.l.b16 %v3567
        %v3992 = vunpack.c.h.b16 %v3567
        %v3993 = vunpack.c.l.b16 %v3568
        %v3994 = vunpack.c.h.b16 %v3568
        %v3995 = vunpack.c.l.b16 %v3569
        %v3996 = vunpack.c.h.b16 %v3569
        %v3997 = vunpack.c.l.b16 %v3570
        %v3998 = vunpack.c.h.b16 %v3570
        %v3999 = vunpack.c.l.b16 %v3571
        %v4000 = vunpack.c.h.b16 %v3571
        %v4001 = vunpack.c.l.b16 %v3572
        %v4002 = vunpack.c.h.b16 %v3572
        %v4003 = vunpack.c.l.b16 %v3573
        %v4004 = vunpack.c.h.b16 %v3573
        %v4005 = vunpack.c.l.b16 %v3574
        %v4006 = vunpack.c.h.b16 %v3574
        %v4007 = vunpack.c.l.b16 %v3575
        %v4008 = vunpack.c.h.b16 %v3575
        %v4009 = vunpack.c.l.b16 %v3576
        %v4010 = vunpack.c.h.b16 %v3576
        %v4011 = vunpack.c.l.b16 %v3577
        %v4012 = vunpack.c.h.b16 %v3577
        %v4013 = vunpack.c.l.b16 %v3578
        %v4014 = vunpack.c.h.b16 %v3578
        %v4015 = vunpack.c.l.b16 %v3579
        %v4016 = vunpack.c.h.b16 %v3579
        %v4017 = vunpack.c.l.b16 %v3580
        %v4018 = vunpack.c.h.b16 %v3580
        %v4019 = vunpack.c.l.b16 %v3581
        %v4020 = vunpack.c.h.b16 %v3581
        %v4021 = vunpack.c.l.b16 %v3582
        %v4022 = vunpack.c.h.b16 %v3582
        %v4023 = vunpack.c.l.b16 %v3583
        %v4024 = vunpack.c.h.b16 %v3583
        %v4025 = vunpack.c.l.b16 %v3584
        %v4026 = vunpack.c.h.b16 %v3584
        %v4027 = vunpack.c.l.b16 %v3585
        %v4028 = vunpack.c.h.b16 %v3585
        %v4029 = vunpack.c.l.b16 %v3586
        %v4030 = vunpack.c.h.b16 %v3586
        %v4031 = vunpack.c.l.b16 %v3587
        %v4032 = vunpack.c.h.b16 %v3587
        %v4033 = vunpack.c.l.b16 %v3588
        %v4034 = vunpack.c.h.b16 %v3588
        %v4035 = vunpack.c.l.b16 %v3589
        %v4036 = vunpack.c.h.b16 %v3589
        %v4037 = vunpack.c.l.b16 %v3590
        %v4038 = vunpack.c.h.b16 %v3590
        %v4039 = vunpack.c.l.b16 %v3591
        %v4040 = vunpack.c.h.b16 %v3591
        %v4041 = vunpack.c.l.b16 %v3592
        %v4042 = vunpack.c.h.b16 %v3592
        %v4043 = vunpack.c.l.b16 %v3593
        %v4044 = vunpack.c.h.b16 %v3593
        %v4045 = vunpack.c.l.b16 %v3594
        %v4046 = vunpack.c.h.b16 %v3594
        %v4047 = vunpack.c.l.b16 %v3595
        %v4048 = vunpack.c.h.b16 %v3595
        %v4049 = vunpack.c.l.b16 %v3596
        %v4050 = vunpack.c.h.b16 %v3596
        %v4051 = vunpack.c.l.b16 %v3597
        %v4052 = vunpack.c.h.b16 %v3597
        %v4053 = vunpack.c.l.b16 %v3598
        %v4054 = vunpack.c.h.b16 %v3598
        %v4055 = vunpack.c.l.b16 %v3599
        %v4056 = vunpack.c.h.b16 %v3599
        %v4057 = vunpack.c.l.b16 %v3600
        %v4058 = vunpack.c.h.b16 %v3600
        %v4059 = vunpack.c.l.b16 %v3601
        %v4060 = vunpack.c.h.b16 %v3601
        %v4061 = vunpack.c.l.b16 %v3602
        %v4062 = vunpack.c.h.b16 %v3602
        %v4063 = vunpack.c.l.b16 %v3603
        %v4064 = vunpack.c.h.b16 %v3603
        %v4065 = vunpack.c.l.b16 %v3604
        %v4066 = vunpack.c.h.b16 %v3604
        %v4067 = vunpack.c.l.b16 %v3605
        %v4068 = vunpack.c.h.b16 %v3605
        %v4069 = vunpack.c.l.b16 %v3606
        %v4070 = vunpack.c.h.b16 %v3606
        %v4071 = vunpack.c.l.b16 %v3607
        %v4072 = vunpack.c.h.b16 %v3607
        %v4073 = vunpack.c.l.b16 %v3608
        %v4074 = vunpack.c.h.b16 %v3608
        %v4075 = vunpack.c.l.b16 %v3609
        %v4076 = vunpack.c.h.b16 %v3609
        %v4077 = vunpack.c.l.b16 %v3610
        %v4078 = vunpack.c.h.b16 %v3610
        %v4079 = vunpack.c.l.b16 %v3611
        %v4080 = vunpack.c.h.b16 %v3611
        %v4081 = vunpack.c.l.b16 %v3612
        %v4082 = vunpack.c.h.b16 %v3612
        %v4083 = vunpack.c.l.b16 %v3613
        %v4084 = vunpack.c.h.b16 %v3613
        %v4085 = vunpack.c.l.b16 %v3614
        %v4086 = vunpack.c.h.b16 %v3614
        %v4087 = vunpack.c.l.b16 %v3615
        %v4088 = vunpack.c.h.b16 %v3615
        %v4089 = vunpack.c.l.b16 %v3616
        %v4090 = vunpack.c.h.b16 %v3616
        %v4091 = vunpack.c.l.b16 %v3617
        %v4092 = vunpack.c.h.b16 %v3617
        %v4093 = vunpack.c.l.b16 %v3618
        %v4094 = vunpack.c.h.b16 %v3618
        %v4095 = vunpack.c.l.b16 %v3619
        %v4096 = vunpack.c.h.b16 %v3619
        %v4097 = vunpack.c.l.b16 %v3620
        %v4098 = vunpack.c.h.b16 %v3620
        %v4099 = vunpack.c.l.b16 %v3621
        %v4100 = vunpack.c.h.b16 %v3621
        %v4101 = vunpack.c.l.b16 %v3622
        %v4102 = vunpack.c.h.b16 %v3622
        %v4103 = vunpack.c.l.b16 %v3623
        %v4104 = vunpack.c.h.b16 %v3623
        %v4105 = vunpack.c.l.b16 %v3624
        %v4106 = vunpack.c.h.b16 %v3624
        %v4107 = vunpack.c.l.b16 %v3625
        %v4108 = vunpack.c.h.b16 %v3625
        %v4109 = vunpack.c.l.b16 %v3626
        %v4110 = vunpack.c.h.b16 %v3626
        %v4111 = vunpack.c.l.b16 %v3627
        %v4112 = vunpack.c.h.b16 %v3627
        %v4113 = vunpack.c.l.b16 %v3628
        %v4114 = vunpack.c.h.b16 %v3628
        %v4115 = vunpack.c.l.b16 %v3629
        %v4116 = vunpack.c.h.b16 %v3629
        %v4117 = vunpack.c.l.b16 %v3630
        %v4118 = vunpack.c.h.b16 %v3630
        %v4119 = vunpack.c.l.b16 %v3631
        %v4120 = vunpack.c.h.b16 %v3631
        %v4121 = vunpack.c.l.b16 %v3632
        %v4122 = vunpack.c.h.b16 %v3632
        %v4123 = vunpack.c.l.b16 %v3633
        %v4124 = vunpack.c.h.b16 %v3633
        %v4125 = vunpack.c.l.b16 %v3634
        %v4126 = vunpack.c.h.b16 %v3634
        %v4127 = vunpack.c.l.b16 %v3635
        %v4128 = vunpack.c.h.b16 %v3635
        %v4129 = vunpack.c.l.b16 %v3636
        %v4130 = vunpack.c.h.b16 %v3636
        %v4131 = vunpack.c.l.b16 %v3637
        %v4132 = vunpack.c.h.b16 %v3637
        %v4133 = vunpack.c.l.b16 %v3638
        %v4134 = vunpack.c.h.b16 %v3638
        %v4135 = vunpack.c.l.b16 %v3639
        %v4136 = vunpack.c.h.b16 %v3639
        %v4137 = vunpack.c.l.b16 %v3640
        %v4138 = vunpack.c.h.b16 %v3640
        %v4139 = vunpack.c.l.b16 %v3641
        %v4140 = vunpack.c.h.b16 %v3641
        %v4141 = vunpack.c.l.b16 %v3642
        %v4142 = vunpack.c.h.b16 %v3642
        %v4143 = vunpack.c.l.b16 %v3643
        %v4144 = vunpack.c.h.b16 %v3643
        %v4145 = vunpack.c.l.b16 %v3644
        %v4146 = vunpack.c.h.b16 %v3644
        %v4147 = vunpack.c.l.b16 %v3645
        %v4148 = vunpack.c.h.b16 %v3645
        %v4149 = vunpack.c.l.b16 %v3646
        %v4150 = vunpack.c.h.b16 %v3646
        %v4151 = vunpack.c.l.b16 %v3647
        %v4152 = vunpack.c.h.b16 %v3647
        %v4153 = vunpack.c.l.b16 %v3648
        %v4154 = vunpack.c.h.b16 %v3648
        %v4155 = vunpack.c.l.b16 %v3649
        %v4156 = vunpack.c.h.b16 %v3649
        %v4157 = vunpack.c.l.b16 %v3650
        %v4158 = vunpack.c.h.b16 %v3650
        %v4159 = vunpack.c.l.b16 %v3651
        %v4160 = vunpack.c.h.b16 %v3651
        %v4161 = vunpack.c.l.b16 %v3652
        %v4162 = vunpack.c.h.b16 %v3652
        %v4163 = vunpack.c.l.b16 %v3653
        %v4164 = vunpack.c.h.b16 %v3653
        %v4165 = vunpack.c.l.b16 %v3654
        %v4166 = vunpack.c.h.b16 %v3654
        %v4167 = vunpack.c.l.b16 %v3655
        %v4168 = vunpack.c.h.b16 %v3655
        %v4169 = vunpack.c.l.b16 %v3656
        %v4170 = vunpack.c.h.b16 %v3656
        %v4171 = vunpack.c.l.b16 %v3657
        %v4172 = vunpack.c.h.b16 %v3657
        %v4173 = vunpack.c.l.b16 %v3658
        %v4174 = vunpack.c.h.b16 %v3658
        %v4175 = vunpack.c.l.b16 %v3659
        %v4176 = vunpack.c.h.b16 %v3659
        %v4177 = vunpack.c.l.b16 %v3660
        %v4178 = vunpack.c.h.b16 %v3660
        %v4179 = vunpack.c.l.b16 %v3661
        %v4180 = vunpack.c.h.b16 %v3661
        %v4181 = vunpack.c.l.b16 %v3662
        %v4182 = vunpack.c.h.b16 %v3662
        %v4183 = vunpack.c.l.b16 %v3663
        %v4184 = vunpack.c.h.b16 %v3663
        %v4185 = vunpack.c.l.b16 %v3664
        %v4186 = vunpack.c.h.b16 %v3664
        %v4187 = vunpack.c.l.b16 %v3665
        %v4188 = vunpack.c.h.b16 %v3665
        %v4189 = vunpack.c.l.b16 %v3666
        %v4190 = vunpack.c.h.b16 %v3666
        %v4191 = vunpack.c.l.b16 %v3667
        %v4192 = vunpack.c.h.b16 %v3667
        %v4193 = vunpack.c.l.b16 %v3668
        %v4194 = vunpack.c.h.b16 %v3668
        %v4195 = vunpack.c.l.b16 %v3669
        %v4196 = vunpack.c.h.b16 %v3669
        %v4197 = vunpack.c.l.b16 %v3670
        %v4198 = vunpack.c.h.b16 %v3670
        %v4199 = vunpack.c.l.b16 %v3671
        %v4200 = vunpack.c.h.b16 %v3671
        %v4201 = vunpack.c.l.b16 %v3672
        %v4202 = vunpack.c.h.b16 %v3672
        %v4203 = vunpack.c.l.b16 %v3673
        %v4204 = vunpack.c.h.b16 %v3673
        %v4205 = vunpack.c.l.b16 %v3674
        %v4206 = vunpack.c.h.b16 %v3674
        %v4207 = vunpack.c.l.b16 %v3675
        %v4208 = vunpack.c.h.b16 %v3675
        %v4209 = vunpack.c.l.b16 %v3676
        %v4210 = vunpack.c.h.b16 %v3676
        %v4211 = vunpack.c.l.b16 %v3677
        %v4212 = vunpack.c.h.b16 %v3677
        %v4213 = vunpack.c.l.b16 %v3678
        %v4214 = vunpack.c.h.b16 %v3678
        %v4215 = vunpack.c.l.b16 %v3679
        %v4216 = vunpack.c.h.b16 %v3679
        %v4217 = vunpack.c.l.b16 %v3680
        %v4218 = vunpack.c.h.b16 %v3680
        %v4219 = vunpack.c.l.b16 %v3681
        %v4220 = vunpack.c.h.b16 %v3681
        %v4221 = vunpack.c.l.b16 %v3682
        %v4222 = vunpack.c.h.b16 %v3682
        %v4223 = vunpack.c.l.b16 %v3683
        %v4224 = vunpack.c.h.b16 %v3683
        %v4225 = vunpack.c.l.b16 %v3684
        %v4226 = vunpack.c.h.b16 %v3684
        %v4227 = vunpack.c.l.b16 %v3685
        %v4228 = vunpack.c.h.b16 %v3685
        %v4229 = vunpack.c.l.b16 %v3686
        %v4230 = vunpack.c.h.b16 %v3686
        %v4231 = vunpack.c.l.b16 %v3687
        %v4232 = vunpack.c.h.b16 %v3687
        %v4233 = vunpack.c.l.b16 %v3688
        %v4234 = vunpack.c.h.b16 %v3688
        %v4235 = vunpack.c.l.b16 %v3689
        %v4236 = vunpack.c.h.b16 %v3689
        %v4237 = vunpack.c.l.b16 %v3690
        %v4238 = vunpack.c.h.b16 %v3690
        %v4239 = vunpack.c.l.b16 %v3691
        %v4240 = vunpack.c.h.b16 %v3691
        %v4241 = vunpack.c.l.b16 %v3692
        %v4242 = vunpack.c.h.b16 %v3692
        %v4243 = vunpack.c.l.b16 %v3693
        %v4244 = vunpack.c.h.b16 %v3693
        %v4245 = vunpack.c.l.b16 %v3694
        %v4246 = vunpack.c.h.b16 %v3694
        %v4247 = vunpack.c.l.b16 %v3695
        %v4248 = vunpack.c.h.b16 %v3695
        %v4249 = vunpack.c.l.b16 %v3696
        %v4250 = vunpack.c.h.b16 %v3696
        %v4251 = vunpack.c.l.b16 %v3697
        %v4252 = vunpack.c.h.b16 %v3697
        %v4253 = vunpack.c.l.b16 %v3698
        %v4254 = vunpack.c.h.b16 %v3698
        %v4255 = vunpack.c.l.b16 %v3699
        %v4256 = vunpack.c.h.b16 %v3699
        %v4257 = vunpack.c.l.b16 %v3700
        %v4258 = vunpack.c.h.b16 %v3700
        %v4259 = vunpack.c.l.b16 %v3701
        %v4260 = vunpack.c.h.b16 %v3701
        %v4261 = vunpack.c.l.b16 %v3702
        %v4262 = vunpack.c.h.b16 %v3702
        %v4263 = vunpack.c.l.b16 %v3703
        %v4264 = vunpack.c.h.b16 %v3703
        %v4265 = vunpack.c.l.b16 %v3704
        %v4266 = vunpack.c.h.b16 %v3704
        %v4267 = vunpack.c.l.b16 %v3705
        %v4268 = vunpack.c.h.b16 %v3705
        %v4269 = vunpack.c.l.b16 %v3706
        %v4270 = vunpack.c.h.b16 %v3706
        %v4271 = vunpack.c.l.b16 %v3707
        %v4272 = vunpack.c.h.b16 %v3707
        %v4273 = vunpack.c.l.b16 %v3708
        %v4274 = vunpack.c.h.b16 %v3708
        %v4275 = vunpack.c.l.b16 %v3709
        %v4276 = vunpack.c.h.b16 %v3709
        %v4277 = vunpack.c.l.b16 %v3710
        %v4278 = vunpack.c.h.b16 %v3710
        %v4279 = vunpack.c.l.b16 %v3711
        %v4280 = vunpack.c.h.b16 %v3711
        %v4281 = vunpack.c.l.b16 %v3712
        %v4282 = vunpack.c.h.b16 %v3712
        %v4283 = vunpack.c.l.b16 %v3713
        %v4284 = vunpack.c.h.b16 %v3713
        %v4285 = vunpack.c.l.b16 %v3714
        %v4286 = vunpack.c.h.b16 %v3714
        %v4287 = vunpack.c.l.b16 %v3715
        %v4288 = vunpack.c.h.b16 %v3715
        %v4289 = vunpack.c.l.b16 %v3716
        %v4290 = vunpack.c.h.b16 %v3716
        %v4291 = vunpack.c.l.b16 %v3717
        %v4292 = vunpack.c.h.b16 %v3717
        %v4293 = vunpack.c.l.b16 %v3718
        %v4294 = vunpack.c.h.b16 %v3718
        %v4295 = vunpack.c.l.b16 %v3719
        %v4296 = vunpack.c.h.b16 %v3719
        %v4297 = vunpack.c.l.b16 %v3720
        %v4298 = vunpack.c.h.b16 %v3720
        %v4299 = vunpack.c.l.b16 %v3721
        %v4300 = vunpack.c.h.b16 %v3721
        %v4301 = vunpack.c.l.b16 %v3722
        %v4302 = vunpack.c.h.b16 %v3722
        %v4303 = vunpack.c.l.b16 %v3723
        %v4304 = vunpack.c.h.b16 %v3723
        %v4305 = vunpack.c.l.b16 %v3724
        %v4306 = vunpack.c.h.b16 %v3724
        %v4307 = vunpack.c.l.b16 %v3725
        %v4308 = vunpack.c.h.b16 %v3725
        %v4309 = vunpack.c.l.b16 %v3726
        %v4310 = vunpack.c.h.b16 %v3726
        %v4311 = vunpack.c.l.b16 %v3727
        %v4312 = vunpack.c.h.b16 %v3727
        %v4313 = vunpack.c.l.b16 %v3728
        %v4314 = vunpack.c.h.b16 %v3728
        %v4315 = vunpack.c.l.b16 %v3729
        %v4316 = vunpack.c.h.b16 %v3729
        %v4317 = vunpack.c.l.b16 %v3730
        %v4318 = vunpack.c.h.b16 %v3730
        %v4319 = vunpack.c.l.b16 %v3731
        %v4320 = vunpack.c.h.b16 %v3731
        %v4321 = vunpack.c.l.b16 %v3732
        %v4322 = vunpack.c.h.b16 %v3732
        %v4323 = vunpack.c.l.b16 %v3733
        %v4324 = vunpack.c.h.b16 %v3733
        %v4325 = vunpack.c.l.b16 %v3734
        %v4326 = vunpack.c.h.b16 %v3734
        %v4327 = vunpack.c.l.b16 %v3735
        %v4328 = vunpack.c.h.b16 %v3735
        %v4329 = vunpack.c.l.b16 %v3736
        %v4330 = vunpack.c.h.b16 %v3736
        %v4331 = vunpack.c.l.b16 %v3737
        %v4332 = vunpack.c.h.b16 %v3737
        %v4333 = vunpack.c.l.b16 %v3738
        %v4334 = vunpack.c.h.b16 %v3738
        %v4335 = vunpack.c.l.b16 %v3739
        %v4336 = vunpack.c.h.b16 %v3739
        %v4337 = vunpack.c.l.b16 %v3740
        %v4338 = vunpack.c.h.b16 %v3740
        %v4339 = vunpack.c.l.b16 %v3741
        %v4340 = vunpack.c.h.b16 %v3741
        %v4341 = vunpack.c.l.b16 %v3742
        %v4342 = vunpack.c.h.b16 %v3742
        %v4343 = vunpack.c.l.b16 %v3743
        %v4344 = vunpack.c.h.b16 %v3743
        %v4345 = vunpack.c.l.b16 %v3744
        %v4346 = vunpack.c.h.b16 %v3744
        %v4347 = vunpack.c.l.b16 %v3745
        %v4348 = vunpack.c.h.b16 %v3745
        %v4349 = vunpack.c.l.b16 %v3746
        %v4350 = vunpack.c.h.b16 %v3746
        %v4351 = vunpack.c.l.b16 %v3747
        %v4352 = vunpack.c.h.b16 %v3747
        %v4353 = vunpack.c.l.b16 %v3748
        %v4354 = vunpack.c.h.b16 %v3748
        %v4355 = vunpack.c.l.b16 %v3749
        %v4356 = vunpack.c.h.b16 %v3749
        %v4357 = vunpack.c.l.b16 %v3750
        %v4358 = vunpack.c.h.b16 %v3750
        %v4359 = vpack.c.b16 %v3981, %v3975
        %v4360 = vpack.c.b16 %v3982, %v3976
        %v4361 = vpack.c.b16 %v3983, %v3977
        %v4362 = vpack.c.b16 %v3984, %v3978
        %v4363 = vpack.c.b16 %v3985, %v3979
        %v4364 = vpack.c.b16 %v3986, %v3980
        %v4365 = vpack.c.b16 %v3993, %v3987
        %v4366 = vpack.c.b16 %v3994, %v3988
        %v4367 = vpack.c.b16 %v3995, %v3989
        %v4368 = vpack.c.b16 %v3996, %v3990
        %v4369 = vpack.c.b16 %v3997, %v3991
        %v4370 = vpack.c.b16 %v3998, %v3992
        %v4371 = vpack.c.b16 %v4005, %v3999
        %v4372 = vpack.c.b16 %v4006, %v4000
        %v4373 = vpack.c.b16 %v4007, %v4001
        %v4374 = vpack.c.b16 %v4008, %v4002
        %v4375 = vpack.c.b16 %v4009, %v4003
        %v4376 = vpack.c.b16 %v4010, %v4004
        %v4377 = vpack.c.b16 %v4017, %v4011
        %v4378 = vpack.c.b16 %v4018, %v4012
        %v4379 = vpack.c.b16 %v4019, %v4013
        %v4380 = vpack.c.b16 %v4020, %v4014
        %v4381 = vpack.c.b16 %v4021, %v4015
        %v4382 = vpack.c.b16 %v4022, %v4016
        %v4383 = vpack.c.b16 %v4029, %v4023
        %v4384 = vpack.c.b16 %v4030, %v4024
        %v4385 = vpack.c.b16 %v4031, %v4025
        %v4386 = vpack.c.b16 %v4032, %v4026
        %v4387 = vpack.c.b16 %v4033, %v4027
        %v4388 = vpack.c.b16 %v4034, %v4028
        %v4389 = vpack.c.b16 %v4041, %v4035
        %v4390 = vpack.c.b16 %v4042, %v4036
        %v4391 = vpack.c.b16 %v4043, %v4037
        %v4392 = vpack.c.b16 %v4044, %v4038
        %v4393 = vpack.c.b16 %v4045, %v4039
        %v4394 = vpack.c.b16 %v4046, %v4040
        %v4395 = vpack.c.b16 %v4053, %v4047
        %v4396 = vpack.c.b16 %v4054, %v4048
        %v4397 = vpack.c.b16 %v4055, %v4049
        %v4398 = vpack.c.b16 %v4056, %v4050
        %v4399 = vpack.c.b16 %v4057, %v4051
        %v4400 = vpack.c.b16 %v4058, %v4052
        %v4401 = vpack.c.b16 %v4065, %v4059
        %v4402 = vpack.c.b16 %v4066, %v4060
        %v4403 = vpack.c.b16 %v4067, %v4061
        %v4404 = vpack.c.b16 %v4068, %v4062
        %v4405 = vpack.c.b16 %v4069, %v4063
        %v4406 = vpack.c.b16 %v4070, %v4064
        %v4407 = vpack.c.b16 %v4077, %v4071
        %v4408 = vpack.c.b16 %v4078, %v4072
        %v4409 = vpack.c.b16 %v4079, %v4073
        %v4410 = vpack.c.b16 %v4080, %v4074
        %v4411 = vpack.c.b16 %v4081, %v4075
        %v4412 = vpack.c.b16 %v4082, %v4076
        %v4413 = vpack.c.b16 %v4089, %v4083
        %v4414 = vpack.c.b16 %v4090, %v4084
        %v4415 = vpack.c.b16 %v4091, %v4085
        %v4416 = vpack.c.b16 %v4092, %v4086
        %v4417 = vpack.c.b16 %v4093, %v4087
        %v4418 = vpack.c.b16 %v4094, %v4088
        %v4419 = vpack.c.b16 %v4101, %v4095
        %v4420 = vpack.c.b16 %v4102, %v4096
        %v4421 = vpack.c.b16 %v4103, %v4097
        %v4422 = vpack.c.b16 %v4104, %v4098
        %v4423 = vpack.c.b16 %v4105, %v4099
        %v4424 = vpack.c.b16 %v4106, %v4100
        %v4425 = vpack.c.b16 %v4113, %v4107
        %v4426 = vpack.c.b16 %v4114, %v4108
        %v4427 = vpack.c.b16 %v4115, %v4109
        %v4428 = vpack.c.b16 %v4116, %v4110
        %v4429 = vpack.c.b16 %v4117, %v4111
        %v4430 = vpack.c.b16 %v4118, %v4112
        %v4431 = vpack.c.b16 %v4125, %v4119
        %v4432 = vpack.c.b16 %v4126, %v4120
        %v4433 = vpack.c.b16 %v4127, %v4121
        %v4434 = vpack.c.b16 %v4128, %v4122
        %v4435 = vpack.c.b16 %v4129, %v4123
        %v4436 = vpack.c.b16 %v4130, %v4124
        %v4437 = vpack.c.b16 %v4137, %v4131
        %v4438 = vpack.c.b16 %v4138, %v4132
        %v4439 = vpack.c.b16 %v4139, %v4133
        %v4440 = vpack.c.b16 %v4140, %v4134
        %v4441 = vpack.c.b16 %v4141, %v4135
        %v4442 = vpack.c.b16 %v4142, %v4136
        %v4443 = vpack.c.b16 %v4149, %v4143
        %v4444 = vpack.c.b16 %v4150, %v4144
        %v4445 = vpack.c.b16 %v4151, %v4145
        %v4446 = vpack.c.b16 %v4152, %v4146
        %v4447 = vpack.c.b16 %v4153, %v4147
        %v4448 = vpack.c.b16 %v4154, %v4148
        %v4449 = vpack.c.b16 %v4161, %v4155
        %v4450 = vpack.c.b16 %v4162, %v4156
        %v4451 = vpack.c.b16 %v4163, %v4157
        %v4452 = vpack.c.b16 %v4164, %v4158
        %v4453 = vpack.c.b16 %v4165, %v4159
        %v4454 = vpack.c.b16 %v4166, %v4160
        %v4455 = vpack.c.b16 %v4173, %v4167
        %v4456 = vpack.c.b16 %v4174, %v4168
        %v4457 = vpack.c.b16 %v4175, %v4169
        %v4458 = vpack.c.b16 %v4176, %v4170
        %v4459 = vpack.c.b16 %v4177, %v4171
        %v4460 = vpack.c.b16 %v4178, %v4172
        %v4461 = vpack.c.b16 %v4185, %v4179
        %v4462 = vpack.c.b16 %v4186, %v4180
        %v4463 = vpack.c.b16 %v4187, %v4181
        %v4464 = vpack.c.b16 %v4188, %v4182
        %v4465 = vpack.c.b16 %v4189, %v4183
        %v4466 = vpack.c.b16 %v4190, %v4184
        %v4467 = vpack.c.b16 %v4197, %v4191
        %v4468 = vpack.c.b16 %v4198, %v4192
        %v4469 = vpack.c.b16 %v4199, %v4193
        %v4470 = vpack.c.b16 %v4200, %v4194
        %v4471 = vpack.c.b16 %v4201, %v4195
        %v4472 = vpack.c.b16 %v4202, %v4196
        %v4473 = vpack.c.b16 %v4209, %v4203
        %v4474 = vpack.c.b16 %v4210, %v4204
        %v4475 = vpack.c.b16 %v4211, %v4205
        %v4476 = vpack.c.b16 %v4212, %v4206
        %v4477 = vpack.c.b16 %v4213, %v4207
        %v4478 = vpack.c.b16 %v4214, %v4208
        %v4479 = vpack.c.b16 %v4221, %v4215
        %v4480 = vpack.c.b16 %v4222, %v4216
        %v4481 = vpack.c.b16 %v4223, %v4217
        %v4482 = vpack.c.b16 %v4224, %v4218
        %v4483 = vpack.c.b16 %v4225, %v4219
        %v4484 = vpack.c.b16 %v4226, %v4220
        %v4485 = vpack.c.b16 %v4233, %v4227
        %v4486 = vpack.c.b16 %v4234, %v4228
        %v4487 = vpack.c.b16 %v4235, %v4229
        %v4488 = vpack.c.b16 %v4236, %v4230
        %v4489 = vpack.c.b16 %v4237, %v4231
        %v4490 = vpack.c.b16 %v4238, %v4232
        %v4491 = vpack.c.b16 %v4245, %v4239
        %v4492 = vpack.c.b16 %v4246, %v4240
        %v4493 = vpack.c.b16 %v4247, %v4241
        %v4494 = vpack.c.b16 %v4248, %v4242
        %v4495 = vpack.c.b16 %v4249, %v4243
        %v4496 = vpack.c.b16 %v4250, %v4244
        %v4497 = vpack.c.b16 %v4257, %v4251
        %v4498 = vpack.c.b16 %v4258, %v4252
        %v4499 = vpack.c.b16 %v4259, %v4253
        %v4500 = vpack.c.b16 %v4260, %v4254
        %v4501 = vpack.c.b16 %v4261, %v4255
        %v4502 = vpack.c.b16 %v4262, %v4256
        %v4503 = vpack.c.b16 %v4269, %v4263
        %v4504 = vpack.c.b16 %v4270, %v4264
        %v4505 = vpack.c.b16 %v4271, %v4265
        %v4506 = vpack.c.b16 %v4272, %v4266
        %v4507 = vpack.c.b16 %v4273, %v4267
        %v4508 = vpack.c.b16 %v4274, %v4268
        %v4509 = vpack.c.b16 %v4281, %v4275
        %v4510 = vpack.c.b16 %v4282, %v4276
        %v4511 = vpack.c.b16 %v4283, %v4277
        %v4512 = vpack.c.b16 %v4284, %v4278
        %v4513 = vpack.c.b16 %v4285, %v4279
        %v4514 = vpack.c.b16 %v4286, %v4280
        %v4515 = vpack.c.b16 %v4293, %v4287
        %v4516 = vpack.c.b16 %v4294, %v4288
        %v4517 = vpack.c.b16 %v4295, %v4289
        %v4518 = vpack.c.b16 %v4296, %v4290
        %v4519 = vpack.c.b16 %v4297, %v4291
        %v4520 = vpack.c.b16 %v4298, %v4292
        %v4521 = vpack.c.b16 %v4305, %v4299
        %v4522 = vpack.c.b16 %v4306, %v4300
        %v4523 = vpack.c.b16 %v4307, %v4301
        %v4524 = vpack.c.b16 %v4308, %v4302
        %v4525 = vpack.c.b16 %v4309, %v4303
        %v4526 = vpack.c.b16 %v4310, %v4304
        %v4527 = vpack.c.b16 %v4317, %v4311
        %v4528 = vpack.c.b16 %v4318, %v4312
        %v4529 = vpack.c.b16 %v4319, %v4313
        %v4530 = vpack.c.b16 %v4320, %v4314
        %v4531 = vpack.c.b16 %v4321, %v4315
        %v4532 = vpack.c.b16 %v4322, %v4316
        %v4533 = vpack.c.b16 %v4329, %v4323
        %v4534 = vpack.c.b16 %v4330, %v4324
        %v4535 = vpack.c.b16 %v4331, %v4325
        %v4536 = vpack.c.b16 %v4332, %v4326
        %v4537 = vpack.c.b16 %v4333, %v4327
        %v4538 = vpack.c.b16 %v4334, %v4328
        %v4539 = vpack.c.b16 %v4341, %v4335
        %v4540 = vpack.c.b16 %v4342, %v4336
        %v4541 = vpack.c.b16 %v4343, %v4337
        %v4542 = vpack.c.b16 %v4344, %v4338
        %v4543 = vpack.c.b16 %v4345, %v4339
        %v4544 = vpack.c.b16 %v4346, %v4340
        %v4545 = vpack.c.b16 %v4353, %v4347
        %v4546 = vpack.c.b16 %v4354, %v4348
        %v4547 = vpack.c.b16 %v4355, %v4349
        %v4548 = vpack.c.b16 %v4356, %v4350
        %v4549 = vpack.c.b16 %v4357, %v4351
        %v4550 = vpack.c.b16 %v4358, %v4352
        %4743 = vmatprep.subr.bf16.mxu0 %v4402
        %4744 = vmatpush1.bf16.msra.mxu0 %v4401
        %4745 = vmatprep.subr.bf16.mxu0 %v4396
        %4746 = vmatpush1.bf16.msra.mxu0 %v4395
        %4747 = vmatprep.subr.bf16.mxu0 %v4390
        %4748 = vmatpush1.bf16.msra.mxu0 %v4389
        %4749 = vmatprep.subr.bf16.mxu0 %v4384
        %4750 = vmatpush1.bf16.msra.mxu0 %v4383
        %4751 = vmatprep.subr.bf16.mxu0 %v4378
        %4752 = vmatpush1.bf16.msra.mxu0 %v4377
        %4753 = vmatprep.subr.bf16.mxu0 %v4372
        %4754 = vmatpush1.bf16.msra.mxu0 %v4371
        %4755 = vmatprep.subr.bf16.mxu0 %v4366
        %4756 = vmatpush1.bf16.msra.mxu0 %v4365
        %4757 = vmatprep.subr.bf16.mxu0 %v4360
        %4758 = vmatpush1.bf16.msra.mxu0 %v4359
        %4759 = vmatprep.subr.bf16.mxu0 %v4450
        %4760 = vmatpush2.bf16.msra.mxu0 %v4449
        %4761 = vmatprep.subr.bf16.mxu0 %v4444
        %4762 = vmatpush2.bf16.msra.mxu0 %v4443
        %4763 = vmatprep.subr.bf16.mxu0 %v4438
        %4764 = vmatpush2.bf16.msra.mxu0 %v4437
        %4765 = vmatprep.subr.bf16.mxu0 %v4432
        %4766 = vmatpush2.bf16.msra.mxu0 %v4431
        %4767 = vmatprep.subr.bf16.mxu0 %v4426
        %4768 = vmatpush2.bf16.msra.mxu0 %v4425
        %4769 = vmatprep.subr.bf16.mxu0 %v4420
        %4770 = vmatpush2.bf16.msra.mxu0 %v4419
        %4771 = vmatprep.subr.bf16.mxu0 %v4414
        %4772 = vmatpush2.bf16.msra.mxu0 %v4413
        %4773 = vmatprep.subr.bf16.mxu0 %v4408
        %4774 = vmatpush2.bf16.msra.mxu0 %v4407
        %4775 = vmatprep.mubr.bf16.mxu0 %v3552
        %4776 = vmatmul.mubr.bf16.gmra.mxu0 %v3551
        %v4777 = vpop.f32.mrf.mxu0
        %v4778 = vadd.f32 %v3756, %v4777
        %v4779 = vpop.f32.mrf.mxu0
        %v4780 = vadd.f32 %v3760, %v4779
        %v4781 = vpop.f32.mrf.mxu0
        %v4782 = vadd.f32 %v3756, %v4781
        %v4783 = vpop.f32.mrf.mxu0
        %v4784 = vadd.f32 %v3760, %v4783
        %4785 = vmatprep.mubr.bf16.mxu0 %v3556
        %4786 = vmatmul.mubr.bf16.gmra.mxu0 %v3555
        %v4787 = vpop.f32.mrf.mxu0
        %v4788 = vadd.f32 %v3756, %v4787
        %v4789 = vpop.f32.mrf.mxu0
        %v4790 = vadd.f32 %v3760, %v4789
        %v4791 = vpop.f32.mrf.mxu0
        %v4792 = vadd.f32 %v3756, %v4791
        %v4793 = vpop.f32.mrf.mxu0
        %v4794 = vadd.f32 %v3760, %v4793
        %4795 = vdwg.mxu0
        %4796 = vmatprep.subr.bf16.mxu0 %v4498
        %4797 = vmatpush1.bf16.msra.mxu0 %v4497
        %4798 = vmatprep.subr.bf16.mxu0 %v4492
        %4799 = vmatpush1.bf16.msra.mxu0 %v4491
        %4800 = vmatprep.subr.bf16.mxu0 %v4486
        %4801 = vmatpush1.bf16.msra.mxu0 %v4485
        %4802 = vmatprep.subr.bf16.mxu0 %v4480
        %4803 = vmatpush1.bf16.msra.mxu0 %v4479
        %4804 = vmatprep.subr.bf16.mxu0 %v4474
        %4805 = vmatpush1.bf16.msra.mxu0 %v4473
        %4806 = vmatprep.subr.bf16.mxu0 %v4468
        %4807 = vmatpush1.bf16.msra.mxu0 %v4467
        %4808 = vmatprep.subr.bf16.mxu0 %v4462
        %4809 = vmatpush1.bf16.msra.mxu0 %v4461
        %4810 = vmatprep.subr.bf16.mxu0 %v4456
        %4811 = vmatpush1.bf16.msra.mxu0 %v4455
        %4812 = vmatprep.subr.bf16.mxu0 %v4546
        %4813 = vmatpush2.bf16.msra.mxu0 %v4545
        %4814 = vmatprep.subr.bf16.mxu0 %v4540
        %4815 = vmatpush2.bf16.msra.mxu0 %v4539
        %4816 = vmatprep.subr.bf16.mxu0 %v4534
        %4817 = vmatpush2.bf16.msra.mxu0 %v4533
        %4818 = vmatprep.subr.bf16.mxu0 %v4528
        %4819 = vmatpush2.bf16.msra.mxu0 %v4527
        %4820 = vmatprep.subr.bf16.mxu0 %v4522
        %4821 = vmatpush2.bf16.msra.mxu0 %v4521
        %4822 = vmatprep.subr.bf16.mxu0 %v4516
        %4823 = vmatpush2.bf16.msra.mxu0 %v4515
        %4824 = vmatprep.subr.bf16.mxu0 %v4510
        %4825 = vmatpush2.bf16.msra.mxu0 %v4509
        %4826 = vmatprep.subr.bf16.mxu0 %v4504
        %4827 = vmatpush2.bf16.msra.mxu0 %v4503
        %4828 = vmatprep.mubr.bf16.mxu0 %v3554
        %4829 = vmatmul.mubr.bf16.gmra.mxu0 %v3553
        %v4830 = vpop.f32.mrf.mxu0
        %v4831 = vadd.f32 %v4778, %v4830
        %v4832 = vpop.f32.mrf.mxu0
        %v4833 = vadd.f32 %v4780, %v4832
        %v4834 = vpop.f32.mrf.mxu0
        %v4835 = vadd.f32 %v4782, %v4834
        %v4836 = vpop.f32.mrf.mxu0
        %v4837 = vadd.f32 %v4784, %v4836
        %4838 = vmatprep.mubr.bf16.mxu0 %v3558
        %4839 = vmatmul.mubr.bf16.gmra.mxu0 %v3557
        %v4840 = vpop.f32.mrf.mxu0
        %v4841 = vadd.f32 %v4788, %v4840
        %v4842 = vpop.f32.mrf.mxu0
        %v4843 = vadd.f32 %v4790, %v4842
        %v4844 = vpop.f32.mrf.mxu0
        %v4845 = vadd.f32 %v4792, %v4844
        %v4846 = vpop.f32.mrf.mxu0
        %v4847 = vadd.f32 %v4794, %v4846
        %4848 = vdwg.mxu0
        %4849 = vmatprep.subr.bf16.mxu0 %v4404
        %4850 = vmatpush1.bf16.msra.mxu0 %v4403
        %4851 = vmatprep.subr.bf16.mxu0 %v4398
        %4852 = vmatpush1.bf16.msra.mxu0 %v4397
        %4853 = vmatprep.subr.bf16.mxu0 %v4392
        %4854 = vmatpush1.bf16.msra.mxu0 %v4391
        %4855 = vmatprep.subr.bf16.mxu0 %v4386
        %4856 = vmatpush1.bf16.msra.mxu0 %v4385
        %4857 = vmatprep.subr.bf16.mxu0 %v4380
        %4858 = vmatpush1.bf16.msra.mxu0 %v4379
        %4859 = vmatprep.subr.bf16.mxu0 %v4374
        %4860 = vmatpush1.bf16.msra.mxu0 %v4373
        %4861 = vmatprep.subr.bf16.mxu0 %v4368
        %4862 = vmatpush1.bf16.msra.mxu0 %v4367
        %4863 = vmatprep.subr.bf16.mxu0 %v4362
        %4864 = vmatpush1.bf16.msra.mxu0 %v4361
        %4865 = vmatprep.subr.bf16.mxu0 %v4452
        %4866 = vmatpush2.bf16.msra.mxu0 %v4451
        %4867 = vmatprep.subr.bf16.mxu0 %v4446
        %4868 = vmatpush2.bf16.msra.mxu0 %v4445
        %4869 = vmatprep.subr.bf16.mxu0 %v4440
        %4870 = vmatpush2.bf16.msra.mxu0 %v4439
        %4871 = vmatprep.subr.bf16.mxu0 %v4434
        %4872 = vmatpush2.bf16.msra.mxu0 %v4433
        %4873 = vmatprep.subr.bf16.mxu0 %v4428
        %4874 = vmatpush2.bf16.msra.mxu0 %v4427
        %4875 = vmatprep.subr.bf16.mxu0 %v4422
        %4876 = vmatpush2.bf16.msra.mxu0 %v4421
        %4877 = vmatprep.subr.bf16.mxu0 %v4416
        %4878 = vmatpush2.bf16.msra.mxu0 %v4415
        %4879 = vmatprep.subr.bf16.mxu0 %v4410
        %4880 = vmatpush2.bf16.msra.mxu0 %v4409
        %4881 = vmatprep.mubr.bf16.mxu0 %v3552
        %4882 = vmatmul.mubr.bf16.gmra.mxu0 %v3551
        %v4883 = vpop.f32.mrf.mxu0
        %v4884 = vadd.f32 %v3764, %v4883
        %v4885 = vpop.f32.mrf.mxu0
        %v4886 = vadd.f32 %v3768, %v4885
        %v4887 = vpop.f32.mrf.mxu0
        %v4888 = vadd.f32 %v3764, %v4887
        %v4889 = vpop.f32.mrf.mxu0
        %v4890 = vadd.f32 %v3768, %v4889
        %4891 = vmatprep.mubr.bf16.mxu0 %v3556
        %4892 = vmatmul.mubr.bf16.gmra.mxu0 %v3555
        %v4893 = vpop.f32.mrf.mxu0
        %v4894 = vadd.f32 %v3764, %v4893
        %v4895 = vpop.f32.mrf.mxu0
        %v4896 = vadd.f32 %v3768, %v4895
        %v4897 = vpop.f32.mrf.mxu0
        %v4898 = vadd.f32 %v3764, %v4897
        %v4899 = vpop.f32.mrf.mxu0
        %v4900 = vadd.f32 %v3768, %v4899
        %4901 = vdwg.mxu0
        %4902 = vmatprep.subr.bf16.mxu0 %v4500
        %4903 = vmatpush1.bf16.msra.mxu0 %v4499
        %4904 = vmatprep.subr.bf16.mxu0 %v4494
        %4905 = vmatpush1.bf16.msra.mxu0 %v4493
        %4906 = vmatprep.subr.bf16.mxu0 %v4488
        %4907 = vmatpush1.bf16.msra.mxu0 %v4487
        %4908 = vmatprep.subr.bf16.mxu0 %v4482
        %4909 = vmatpush1.bf16.msra.mxu0 %v4481
        %4910 = vmatprep.subr.bf16.mxu0 %v4476
        %4911 = vmatpush1.bf16.msra.mxu0 %v4475
        %4912 = vmatprep.subr.bf16.mxu0 %v4470
        %4913 = vmatpush1.bf16.msra.mxu0 %v4469
        %4914 = vmatprep.subr.bf16.mxu0 %v4464
        %4915 = vmatpush1.bf16.msra.mxu0 %v4463
        %4916 = vmatprep.subr.bf16.mxu0 %v4458
        %4917 = vmatpush1.bf16.msra.mxu0 %v4457
        %4918 = vmatprep.subr.bf16.mxu0 %v4548
        %4919 = vmatpush2.bf16.msra.mxu0 %v4547
        %4920 = vmatprep.subr.bf16.mxu0 %v4542
        %4921 = vmatpush2.bf16.msra.mxu0 %v4541
        %4922 = vmatprep.subr.bf16.mxu0 %v4536
        %4923 = vmatpush2.bf16.msra.mxu0 %v4535
        %4924 = vmatprep.subr.bf16.mxu0 %v4530
        %4925 = vmatpush2.bf16.msra.mxu0 %v4529
        %4926 = vmatprep.subr.bf16.mxu0 %v4524
        %4927 = vmatpush2.bf16.msra.mxu0 %v4523
        %4928 = vmatprep.subr.bf16.mxu0 %v4518
        %4929 = vmatpush2.bf16.msra.mxu0 %v4517
        %4930 = vmatprep.subr.bf16.mxu0 %v4512
        %4931 = vmatpush2.bf16.msra.mxu0 %v4511
        %4932 = vmatprep.subr.bf16.mxu0 %v4506
        %4933 = vmatpush2.bf16.msra.mxu0 %v4505
        %4934 = vmatprep.mubr.bf16.mxu0 %v3554
        %4935 = vmatmul.mubr.bf16.gmra.mxu0 %v3553
        %v4936 = vpop.f32.mrf.mxu0
        %v4937 = vadd.f32 %v4884, %v4936
        %v4938 = vpop.f32.mrf.mxu0
        %v4939 = vadd.f32 %v4886, %v4938
        %v4940 = vpop.f32.mrf.mxu0
        %v4941 = vadd.f32 %v4888, %v4940
        %v4942 = vpop.f32.mrf.mxu0
        %v4943 = vadd.f32 %v4890, %v4942
        %4944 = vmatprep.mubr.bf16.mxu0 %v3558
        %4945 = vmatmul.mubr.bf16.gmra.mxu0 %v3557
        %v4946 = vpop.f32.mrf.mxu0
        %v4947 = vadd.f32 %v4894, %v4946
        %v4948 = vpop.f32.mrf.mxu0
        %v4949 = vadd.f32 %v4896, %v4948
        %v4950 = vpop.f32.mrf.mxu0
        %v4951 = vadd.f32 %v4898, %v4950
        %v4952 = vpop.f32.mrf.mxu0
        %v4953 = vadd.f32 %v4900, %v4952
        %4954 = vdwg.mxu0
        %4955 = vmatprep.subr.bf16.mxu0 %v4406
        %4956 = vmatpush1.bf16.msra.mxu0 %v4405
        %4957 = vmatprep.subr.bf16.mxu0 %v4400
        %4958 = vmatpush1.bf16.msra.mxu0 %v4399
        %4959 = vmatprep.subr.bf16.mxu0 %v4394
        %4960 = vmatpush1.bf16.msra.mxu0 %v4393
        %4961 = vmatprep.subr.bf16.mxu0 %v4388
        %4962 = vmatpush1.bf16.msra.mxu0 %v4387
        %4963 = vmatprep.subr.bf16.mxu0 %v4382
        %4964 = vmatpush1.bf16.msra.mxu0 %v4381
        %4965 = vmatprep.subr.bf16.mxu0 %v4376
        %4966 = vmatpush1.bf16.msra.mxu0 %v4375
        %4967 = vmatprep.subr.bf16.mxu0 %v4370
        %4968 = vmatpush1.bf16.msra.mxu0 %v4369
        %4969 = vmatprep.subr.bf16.mxu0 %v4364
        %4970 = vmatpush1.bf16.msra.mxu0 %v4363
        %4971 = vmatprep.subr.bf16.mxu0 %v4454
        %4972 = vmatpush2.bf16.msra.mxu0 %v4453
        %4973 = vmatprep.subr.bf16.mxu0 %v4448
        %4974 = vmatpush2.bf16.msra.mxu0 %v4447
        %4975 = vmatprep.subr.bf16.mxu0 %v4442
        %4976 = vmatpush2.bf16.msra.mxu0 %v4441
        %4977 = vmatprep.subr.bf16.mxu0 %v4436
        %4978 = vmatpush2.bf16.msra.mxu0 %v4435
        %4979 = vmatprep.subr.bf16.mxu0 %v4430
        %4980 = vmatpush2.bf16.msra.mxu0 %v4429
        %4981 = vmatprep.subr.bf16.mxu0 %v4424
        %4982 = vmatpush2.bf16.msra.mxu0 %v4423
        %4983 = vmatprep.subr.bf16.mxu0 %v4418
        %4984 = vmatpush2.bf16.msra.mxu0 %v4417
        %4985 = vmatprep.subr.bf16.mxu0 %v4412
        %4986 = vmatpush2.bf16.msra.mxu0 %v4411
        %4987 = vmatprep.mubr.bf16.mxu0 %v3552
        %4988 = vmatmul.mubr.bf16.gmra.mxu0 %v3551
        %v4989 = vpop.f32.mrf.mxu0
        %v4990 = vadd.f32 %v3772, %v4989
        %v4991 = vpop.f32.mrf.mxu0
        %v4992 = vadd.f32 %v3776, %v4991
        %v4993 = vpop.f32.mrf.mxu0
        %v4994 = vadd.f32 %v3772, %v4993
        %v4995 = vpop.f32.mrf.mxu0
        %v4996 = vadd.f32 %v3776, %v4995
        %4997 = vmatprep.mubr.bf16.mxu0 %v3556
        %4998 = vmatmul.mubr.bf16.gmra.mxu0 %v3555
        %v4999 = vpop.f32.mrf.mxu0
        %v5000 = vadd.f32 %v3772, %v4999
        %v5001 = vpop.f32.mrf.mxu0
        %v5002 = vadd.f32 %v3776, %v5001
        %v5003 = vpop.f32.mrf.mxu0
        %v5004 = vadd.f32 %v3772, %v5003
        %v5005 = vpop.f32.mrf.mxu0
        %v5006 = vadd.f32 %v3776, %v5005
        %5007 = vdwg.mxu0
        %5008 = vmatprep.subr.bf16.mxu0 %v4502
        %5009 = vmatpush1.bf16.msra.mxu0 %v4501
        %5010 = vmatprep.subr.bf16.mxu0 %v4496
        %5011 = vmatpush1.bf16.msra.mxu0 %v4495
        %5012 = vmatprep.subr.bf16.mxu0 %v4490
        %5013 = vmatpush1.bf16.msra.mxu0 %v4489
        %5014 = vmatprep.subr.bf16.mxu0 %v4484
        %5015 = vmatpush1.bf16.msra.mxu0 %v4483
        %5016 = vmatprep.subr.bf16.mxu0 %v4478
        %5017 = vmatpush1.bf16.msra.mxu0 %v4477
        %5018 = vmatprep.subr.bf16.mxu0 %v4472
        %5019 = vmatpush1.bf16.msra.mxu0 %v4471
        %5020 = vmatprep.subr.bf16.mxu0 %v4466
        %5021 = vmatpush1.bf16.msra.mxu0 %v4465
        %5022 = vmatprep.subr.bf16.mxu0 %v4460
        %5023 = vmatpush1.bf16.msra.mxu0 %v4459
        %5024 = vmatprep.subr.bf16.mxu0 %v4550
        %5025 = vmatpush2.bf16.msra.mxu0 %v4549
        %5026 = vmatprep.subr.bf16.mxu0 %v4544
        %5027 = vmatpush2.bf16.msra.mxu0 %v4543
        %5028 = vmatprep.subr.bf16.mxu0 %v4538
        %5029 = vmatpush2.bf16.msra.mxu0 %v4537
        %5030 = vmatprep.subr.bf16.mxu0 %v4532
        %5031 = vmatpush2.bf16.msra.mxu0 %v4531
        %5032 = vmatprep.subr.bf16.mxu0 %v4526
        %5033 = vmatpush2.bf16.msra.mxu0 %v4525
        %5034 = vmatprep.subr.bf16.mxu0 %v4520
        %5035 = vmatpush2.bf16.msra.mxu0 %v4519
        %5036 = vmatprep.subr.bf16.mxu0 %v4514
        %5037 = vmatpush2.bf16.msra.mxu0 %v4513
        %5038 = vmatprep.subr.bf16.mxu0 %v4508
        %5039 = vmatpush2.bf16.msra.mxu0 %v4507
        %5040 = vmatprep.mubr.bf16.mxu0 %v3554
        %5041 = vmatmul.mubr.bf16.gmra.mxu0 %v3553
        %v5042 = vpop.f32.mrf.mxu0
        %v5043 = vadd.f32 %v4990, %v5042
        %v5044 = vpop.f32.mrf.mxu0
        %v5045 = vadd.f32 %v4992, %v5044
        %v5046 = vpop.f32.mrf.mxu0
        %v5047 = vadd.f32 %v4994, %v5046
        %v5048 = vpop.f32.mrf.mxu0
        %v5049 = vadd.f32 %v4996, %v5048
        %5050 = vmatprep.mubr.bf16.mxu0 %v3558
        %5051 = vmatmul.mubr.bf16.gmra.mxu0 %v3557
        %v5052 = vpop.f32.mrf.mxu0
        %v5053 = vadd.f32 %v5000, %v5052
        %v5054 = vpop.f32.mrf.mxu0
        %v5055 = vadd.f32 %v5002, %v5054
        %v5056 = vpop.f32.mrf.mxu0
        %v5057 = vadd.f32 %v5004, %v5056
        %v5058 = vpop.f32.mrf.mxu0
        %v5059 = vadd.f32 %v5006, %v5058
        %5060 = vdwg.mxu0
        %5061 = vst [vmem:[%s547] sm:$0xff] %v4831
        %5062 = vst [vmem:[%s547 + $0x8] sm:$0xff] %v4833
        %5063 = vst [vmem:[%s547 + $0x10] sm:$0xff] %v4937
        %5064 = vst [vmem:[%s547 + $0x18] sm:$0xff] %v4939
        %5065 = vst [vmem:[%s547 + $0x20] sm:$0xff] %v5043
        %5066 = vst [vmem:[%s547 + $0x28] sm:$0xff] %v5045
        %5067 = vst [vmem:[%s547 + $0x30] sm:$0xff] %v4835
        %5068 = vst [vmem:[%s547 + $0x38] sm:$0xff] %v4837
        %5069 = vst [vmem:[%s547 + $0x40] sm:$0xff] %v4941
        %5070 = vst [vmem:[%s547 + $0x48] sm:$0xff] %v4943
        %5071 = vst [vmem:[%s547 + $0x50] sm:$0xff] %v5047
        %5072 = vst [vmem:[%s547 + $0x58] sm:$0xff] %v5049
        %5073 = vst [vmem:[%s547 + $0x60] sm:$0xff] %v4841
        %5074 = vst [vmem:[%s547 + $0x68] sm:$0xff] %v4843
        %5075 = vst [vmem:[%s547 + $0x70] sm:$0xff] %v4947
        %5076 = vst [vmem:[%s547 + $0x78] sm:$0xff] %v4949
        %5077 = vst [vmem:[%s547 + $0x80] sm:$0xff] %v5053
        %5078 = vst [vmem:[%s547 + $0x88] sm:$0xff] %v5055
        %5079 = vst [vmem:[%s547 + $0x90] sm:$0xff] %v4845
        %5080 = vst [vmem:[%s547 + $0x98] sm:$0xff] %v4847
        %5081 = vst [vmem:[%s547 + $0xa0] sm:$0xff] %v4951
        %5082 = vst [vmem:[%s547 + $0xa8] sm:$0xff] %v4953
        %5083 = vst [vmem:[%s547 + $0xb0] sm:$0xff] %v5057
        %5084 = vst [vmem:[%s547 + $0xb8] sm:$0xff] %v5059
        %s5085 = sand.u32 %s321, 1
        %s5086 = scalar_lea.sflag [#allocation4], %s5085
        %s5087 = sand.u32 %s321, 1
        %s5088 = smul.addr %s5087, 32
        %s5089 = scalar_lea.vmem [#allocation11], %s5088
        %s5090 = sand.u32 %s347, 1
        %s5091 = scalar_lea.sflag [#allocation13], %s5090
        %s5092 = sand.u32 %s347, 1
        %s5093 = smul.addr %s5092, 192
        %s5094 = scalar_lea.vmem [#allocation12], %s5093
        // Predicated region
        $region93: #{contrastive_autoencoder_forward.1} parent=71 // pred_check
          %p5095 = pneg %p331
        $region94: #{contrastive_autoencoder_forward.1} parent=71 // pred_check_branch
          %5097 = sbr.rel (%p5095) target = $region96
        $region95: #{contrastive_autoencoder_forward.1} parent=71 // pred_region
          %s5098 = smul.u32 4, %s35
          %s5100 = ssub.s32 512, 512
          %5101 = vsyncadd %s5086, %s5100
          %s5102 = smul.addr %s5098, 128
          %s5103 = scalar_lea.hbm %s13, %s5102
          %s5104 = sshll.u32 %s5089, 4
          %s5105 = int_to_ptr.vmem [resolvable:$true] %s5104
          %5110 = dma.vmem_to_hbm [thread:$0]  %s5105, 512, %s5103, %s5086, 128, 128, 8
        $region96: #{contrastive_autoencoder_forward.1} parent=71 // pred_fallthru
          _
        // Predicated region
        $region97: #{contrastive_autoencoder_forward.1} parent=71 // pred_check
          %p5111 = pneg %p357
        $region98: #{contrastive_autoencoder_forward.1} parent=71 // pred_check_branch
          %5113 = sbr.rel (%p5111) target = $region100
        $region99: #{contrastive_autoencoder_forward.1} parent=71 // pred_region
          %s5114 = smul.u32 4, %s35
          %s5116 = ssub.s32 3072, 3072
          %5117 = vsyncadd %s5091, %s5116
          %s5118 = smul.addr %s5114, 6
          %s5119 = smul.addr %s5118, 128
          %s5120 = scalar_lea.hbm %s14, %s5119
          %s5121 = sshll.u32 %s5094, 4
          %s5122 = int_to_ptr.vmem [resolvable:$true] %s5121
          %5127 = dma.vmem_to_hbm [thread:$0]  %s5122, 3072, %s5120, %s5091, 768, 768, 48
        $region100: #{contrastive_autoencoder_forward.1} parent=71 // pred_fallthru
          _
      $region72: #{contrastive_autoencoder_forward.1} parent=5 // pred_fallthru
        _
      %p5128 = scmp.le.s32.totalorder 2, %s30
      // Predicated region
      $region101: #{contrastive_autoencoder_forward.1} parent=5 // pred_check
        %p5129 = pneg %p5128
      $region102: #{contrastive_autoencoder_forward.1} parent=5 // pred_check_branch
        %5131 = sbr.rel (%p5129) target = $region104
      $region103: #{contrastive_autoencoder_forward.1} parent=5 // pred_region
        %s5132 = ssub.s32 %s30, 2
        // Predicated region
        $region105: #{contrastive_autoencoder_forward.1} parent=103 // pred_check
          %p5133 = pneg %p337
        $region106: #{contrastive_autoencoder_forward.1} parent=103 // pred_check_branch
          %5135 = sbr.rel (%p5133) target = $region108
        $region107: #{contrastive_autoencoder_forward.1} parent=103 // pred_region
          %s5136 = sand.u32 %s322, 1
          %s5137 = scalar_lea.sflag [#allocation4], %s5136
          %s5138 = sand.u32 %s322, 1
          %s5139 = smul.addr %s5138, 32
          %s5140 = scalar_lea.vmem [#allocation11], %s5139
          %5141 = dma.done %s5137, 512
        $region108: #{contrastive_autoencoder_forward.1} parent=103 // pred_fallthru
          _
        // Predicated region
        $region109: #{contrastive_autoencoder_forward.1} parent=103 // pred_check
          %p5142 = pneg %p363
        $region110: #{contrastive_autoencoder_forward.1} parent=103 // pred_check_branch
          %5144 = sbr.rel (%p5142) target = $region112
        $region111: #{contrastive_autoencoder_forward.1} parent=103 // pred_region
          %s5145 = sand.u32 %s348, 1
          %s5146 = scalar_lea.sflag [#allocation13], %s5145
          %s5147 = sand.u32 %s348, 1
          %s5148 = smul.addr %s5147, 192
          %s5149 = scalar_lea.vmem [#allocation12], %s5148
          %5150 = dma.done %s5146, 3072
        $region112: #{contrastive_autoencoder_forward.1} parent=103 // pred_fallthru
          _
      $region104: #{contrastive_autoencoder_forward.1} parent=5 // pred_fallthru
        _
    $region6: #{contrastive_autoencoder_forward.1} parent=1 // loop_footer
      %s34 = sadd.s32 1, %s30
    $region7: #{contrastive_autoencoder_forward.1} parent=1 // loop_footer_branch
      %29 = sbr.rel target = $region3
    $region8: #{contrastive_autoencoder_forward.1} parent=1 // loop_exit
      _
    %5151 = vsyncpa [#allocation3], 1
    %s5152 = scalar_lea.sflag [#allocation3], 1
    %5153 = vsyncpa %s5152, 1
    %5154 = vsyncpa [#allocation6], 1
    %5155 = vsyncpa [#allocation9], 1
    %5156 = vsyncpa [#allocation4], 1
    %s5157 = scalar_lea.sflag [#allocation4], 1
    %5158 = vsyncpa %s5157, 1
    %5159 = vsyncpa [#allocation13], 1
    %s5160 = scalar_lea.sflag [#allocation13], 1
    %5161 = vsyncpa %s5160, 1

</llo_original>
